<compile_context>
chip_gen: v6e
topology: v6e:2x2x1
jax: 0.10.0
libtpu: 0.0.40
codegen_flags: <defaults>
</compile_context>

<pallas_src>
import jax
import jax.numpy as jnp
from jax import lax
from jax.experimental import pallas as pl
from jax.experimental.pallas import tpu as pltpu

BN_EPS = 1e-5          # torch.nn.BatchNorm1d default
KERNEL_MUL = 2.0       # mmd.mmd_rbf_noaccelerate defaults
KERNEL_NUM = 5
LANE = 128
SUBLANE = 8


# ---------------------------------------------------------------------------
# Pallas kernel: bottleneck(src,tgt) -> classifier -> CE -> MMD -> total loss
# (one grid step == one independent (src,tgt) mini-batch)
# ---------------------------------------------------------------------------
def dan_forward_kernel(alpha_ref, lab_ref, s_ref, t_ref, wb_ref, bb_ref,
                       w1_ref, b1_ref, w2_ref, b2_ref, loss_ref, h_scr):
    b = s_ref.shape[0]           # B source rows (== B target rows)
    n = 2 * b
    c = w2_ref.shape[1]          # padded #classes (multiple of 128)

    # --- bottleneck_layer (BN folded into wb/bb on host; Dropout = id in eval) ---
    wb = wb_ref[...]                                             # (2048, 256) bf16
    bb = bb_ref[...]                                             # (1, 256) f32
    h_s = jnp.maximum(jnp.dot(s_ref[...], wb,
                              preferred_element_type=jnp.float32) + bb, 0.0)
    h_t = jnp.maximum(jnp.dot(t_ref[...], wb,
                              preferred_element_type=jnp.float32) + bb, 0.0)
    h_scr[:b, :] = h_s                                           # assemble [s_h ; t_h]
    h_scr[b:, :] = h_t

    # --- classifier_layer on source rows: Linear->ReLU->Dropout(id)->Linear ---
    h1 = jnp.maximum(jnp.dot(h_s.astype(jnp.bfloat16), w1_ref[...],
                             preferred_element_type=jnp.float32) + b1_ref[...], 0.0)
    logits = jnp.dot(h1.astype(jnp.bfloat16), w2_ref[...],
                     preferred_element_type=jnp.float32) + b2_ref[...]   # (B, Cpad)

    # --- nn.CrossEntropyLoss (mean) with integer labels; pad classes have -1e9 bias ---
    m = jnp.max(logits, axis=-1, keepdims=True)
    z = logits - m
    lse = jnp.log(jnp.sum(jnp.exp(z), axis=-1, keepdims=True))
    log_probs = z - lse                                          # (B, Cpad) f32
    cls = lax.broadcasted_iota(jnp.int32, (b, c), 1)
    picked = jnp.where(cls == lab_ref[...], log_probs, 0.0)
    class_loss = -jnp.sum(picked) * (1.0 / float(b))

    # --- mmd.mmd_rbf_noaccelerate over [s_h ; t_h] ---
    h = h_scr[...]                                               # (2B, 256) f32
    hb = h.astype(jnp.bfloat16)
    gram = lax.dot_general(hb, hb, (((1,), (1,)), ((), ())),
                           preferred_element_type=jnp.float32)   # (n, n), single-pass MXU
    hh = h * h
    sq_row = jnp.sum(hh, axis=-1, keepdims=True)                 # ||x_i||^2  (n, 1) f32
    ones_row = jnp.ones((1, h.shape[1]), jnp.float32)
    sq_col = lax.dot_general(ones_row, hh, (((1,), (1,)), ((), ())),
                             preferred_element_type=jnp.float32) # ||x_j||^2  (1, n)
    l2_raw = sq_row + sq_col - 2.0 * gram                        # pairwise sq. distances
    # bandwidth: torch uses the raw (unclamped) sum; hoist the reciprocal out of the loop.
    inv_bw = (float(n * n - n) * (KERNEL_MUL ** (KERNEL_NUM // 2))) / jnp.sum(l2_raw)
    l2 = jnp.maximum(l2_raw, 0.0)                                # guard bf16 cancellation
    kernels = None
    for i in range(KERNEL_NUM):
        coeff = -(KERNEL_MUL ** (-i))                            # compile-time constant
        term = jnp.exp(l2 * (inv_bw * coeff))
        kernels = term if kernels is None else kernels + term
    # mean(XX + YY - XY - YX) over the four (b,b) blocks via a +/-1 sign mask.
    row = lax.broadcasted_iota(jnp.int32, (n, n), 0)
    col = lax.broadcasted_iota(jnp.int32, (n, n), 1)
    sign = jnp.where((row < b) == (col < b), 1.0, -1.0)
    mmd_loss = jnp.sum(kernels * sign) * (1.0 / float(b * b))

    total = class_loss + alpha_ref[0, 0] * mmd_loss
    loss_ref[...] = jnp.broadcast_to(total, loss_ref.shape)      # lane-dense (8,128) store


# ---------------------------------------------------------------------------
# wrappers
# ---------------------------------------------------------------------------
def dan_forward_batched(kparams, s_feats, s_labels, t_feats, alpha=1.0):
    """s_feats/t_feats: (N, B, 2048), s_labels: (N, B). Returns (N,) losses."""
    s = jnp.asarray(s_feats).astype(jnp.bfloat16)
    t = jnp.asarray(t_feats).astype(jnp.bfloat16)
    nb, b, f = s.shape
    labels = jnp.asarray(s_labels, jnp.int32).reshape(nb, b, 1)
    alpha_arr = jnp.asarray(alpha, jnp.float32).reshape(1, 1)

    bw = kparams["wb"].shape[1]
    w = kparams["w1"].shape[1]
    cp = kparams["w2"].shape[1]
    const2 = lambda i: (0, 0)          # weights: DMA'd once, VMEM-resident across steps

    out = pl.pallas_call(
        dan_forward_kernel,
        out_shape=jax.ShapeDtypeStruct((nb, SUBLANE, LANE), jnp.float32),
        grid=(nb,),
        in_specs=[
            pl.BlockSpec((1, 1), const2, memory_space=pltpu.MemorySpace.SMEM),  # alpha
            pl.BlockSpec((None, b, 1), lambda i: (i, 0, 0)),                    # labels
            pl.BlockSpec((None, b, f), lambda i: (i, 0, 0)),                    # src feats
            pl.BlockSpec((None, b, f), lambda i: (i, 0, 0)),                    # tgt feats
            pl.BlockSpec((f, bw), const2),                                      # wb
            pl.BlockSpec((1, bw), const2),                                      # bb
            pl.BlockSpec((bw, w), const2),                                      # w1
            pl.BlockSpec((1, w), const2),                                       # b1
            pl.BlockSpec((w, cp), const2),                                      # w2 (padded)
            pl.BlockSpec((1, cp), const2),                                      # b2 (padded)
        ],
        out_specs=pl.BlockSpec((None, SUBLANE, LANE), lambda i: (i, 0, 0)),
        scratch_shapes=[pltpu.VMEM((2 * b, bw), jnp.float32)],
        compiler_params=pltpu.CompilerParams(dimension_semantics=("parallel",)),
    )(alpha_arr, labels, s, t, kparams["wb"], kparams["bb"],
      kparams["w1"], kparams["b1"], kparams["w2"], kparams["b2"])
    return out[:, 0, 0]


def dan_forward(kparams, s_feats, s_labels, t_feats, alpha=1.0):
    """Single-batch convenience wrapper (matches DANModel.forward semantics)."""
    losses = dan_forward_batched(kparams, jnp.asarray(s_feats)[None],
                                 jnp.asarray(s_labels)[None],
                                 jnp.asarray(t_feats)[None], alpha)
    return losses[0]


# ---------------------------------------------------------------------------
# host-side parameter preparation: fold eval BN into the bottleneck Linear, cast
# matmul weights to bf16 (biases stay f32), pad the head to a lane-dense 128 cols.
# ---------------------------------------------------------------------------
def prepare_kernel_params(p):
    scale = p["gamma"] * lax.rsqrt(p["rvar"] + BN_EPS)           # (1, 256)
    wb = (p["wb"] * scale).astype(jnp.bfloat16)                  # (2048, 256)
    bb = ((p["bb"] - p["rmean"]) * scale + p["beta"]).astype(jnp.float32)
    c = p["w2"].shape[1]
    cp = ((c + LANE - 1) // LANE) * LANE
    w2 = (jnp.zeros((p["w2"].shape[0], cp), jnp.float32)
          .at[:, :c].set(p["w2"]).astype(jnp.bfloat16))          # (1024, 128)
    b2 = jnp.full((1, cp), -1e9, jnp.float32).at[:, :c].set(p["b2"])
    return dict(wb=wb, bb=bb,
                w1=p["w1"].astype(jnp.bfloat16), b1=p["b1"].astype(jnp.float32),
                w2=w2, b2=b2)


# ---------------------------------------------------------------------------
# plain-JAX reference (no Pallas): full f32, un-folded BN, eval-mode semantics
# ---------------------------------------------------------------------------
def _mmd_rbf(s, t, kernel_mul=KERNEL_MUL, kernel_num=KERNEL_NUM):
    b = s.shape[0]
    n = 2 * b
    total = jnp.concatenate([s, t], axis=0)
    gram = total @ total.T
    sq = jnp.sum(total * total, axis=-1, keepdims=True)
    l2 = sq + sq.T - 2.0 * gram
    bandwidth = jnp.sum(l2) / float(n * n - n)
    bandwidth = bandwidth / (kernel_mul ** (kernel_num // 2))
    kernels = sum(jnp.exp(-l2 / (bandwidth * (kernel_mul ** i)))
                  for i in range(kernel_num))
    xx, yy = kernels[:b, :b], kernels[b:, b:]
    xy, yx = kernels[:b, b:], kernels[b:, :b]
    return jnp.mean(xx + yy - xy - yx)


def dan_forward_ref_f32(p, s_feats, s_labels, t_feats, alpha=1.0):
    def bottleneck(x):
        z = x @ p["wb"] + p["bb"]
        z = (z - p["rmean"]) * lax.rsqrt(p["rvar"] + BN_EPS) * p["gamma"] + p["beta"]
        return jnp.maximum(z, 0.0)
    s_h = bottleneck(s_feats)
    t_h = bottleneck(t_feats)
    h1 = jnp.maximum(s_h @ p["w1"] + p["b1"], 0.0)
    logits = h1 @ p["w2"] + p["b2"]
    log_probs = jax.nn.log_softmax(logits, axis=-1)
    onehot = jax.nn.one_hot(s_labels, p["w2"].shape[1], dtype=jnp.float32)
    class_loss = -jnp.sum(onehot * log_probs) / s_feats.shape[0]
    return class_loss + alpha * _mmd_rbf(s_h, t_h)


# ---------------------------------------------------------------------------
# deterministic parameter init (shapes from DANModel.__init__)
# ---------------------------------------------------------------------------
def init_params(key, num_classes=16, bottleneck_width=256, width=1024, feat_dim=2048):
    ks = jax.random.split(key, 7)

    def linear(k, fan_in, fan_out):
        lim = 1.0 / float(fan_in) ** 0.5
        kw, kb = jax.random.split(k)
        w = jax.random.uniform(kw, (fan_in, fan_out), jnp.float32, -lim, lim)
        b = jax.random.uniform(kb, (1, fan_out), jnp.float32, -lim, lim)
        return w, b

    wb, bb = linear(ks[0], feat_dim, bottleneck_width)        # Linear(2048, 256)
    w1, b1 = linear(ks[1], bottleneck_width, width)           # Linear(256, 1024)
    w2, b2 = linear(ks[2], width, num_classes)                # Linear(1024, C)
    gamma = 1.0 + 0.1 * jax.random.normal(ks[3], (1, bottleneck_width), jnp.float32)
    beta = 0.1 * jax.random.normal(ks[4], (1, bottleneck_width), jnp.float32)
    rmean = 0.1 * jax.random.normal(ks[5], (1, bottleneck_width), jnp.float32)
    rvar = 1.0 + 0.1 * jax.random.uniform(ks[6], (1, bottleneck_width), jnp.float32)
    return dict(wb=wb, bb=bb, gamma=gamma, beta=beta, rmean=rmean, rvar=rvar,
                w1=w1, b1=b1, w2=w2, b2=b2)


if __name__ == "__main__":
    key = jax.random.PRNGKey(0)
    kp_key, ksrc, ktgt, klab = jax.random.split(key, 4)

    NB, B, FEAT, NUM_CLASSES = 4, 8, 2048, 16   # 2048 = resnet50 pooled feature width
    fparams = init_params(kp_key, num_classes=NUM_CLASSES, feat_dim=FEAT)
    kparams = prepare_kernel_params(fparams)

    s_feats = jax.random.normal(ksrc, (NB, B, FEAT), jnp.float32)
    t_feats = jax.random.normal(ktgt, (NB, B, FEAT), jnp.float32) + 0.5
    s_labels = jax.random.randint(klab, (NB, B), 0, NUM_CLASSES)

    losses = jax.block_until_ready(
        dan_forward_batched(kparams, s_feats, s_labels, t_feats, alpha=1.0))

    ref = jnp.stack([dan_forward_ref_f32(fparams, s_feats[i], s_labels[i],
                                         t_feats[i], alpha=1.0)
                     for i in range(NB)])

    assert losses.shape == (NB,)
    assert bool(jnp.all(jnp.isfinite(losses))), "non-finite loss"
    rel = jnp.max(jnp.abs(losses - ref) / jnp.maximum(1.0, jnp.abs(ref)))
    assert float(rel) <= 5e-2, (losses, ref)
    print("KERNEL_OK")
</pallas_src>

<mosaic_0001>
module attributes {stable_mosaic.version = 11 : i64} {
  func.func @dan_forward_kernel(%arg0: i32, %arg1: memref<1x1xf32, #tpu.memory_space<smem>>, %arg2: memref<1x8x1xi32, #tpu.memory_space<vmem>>, %arg3: memref<1x8x2048xbf16, #tpu.memory_space<vmem>>, %arg4: memref<1x8x2048xbf16, #tpu.memory_space<vmem>>, %arg5: memref<2048x256xbf16, #tpu.memory_space<vmem>>, %arg6: memref<1x256xf32, #tpu.memory_space<vmem>>, %arg7: memref<256x1024xbf16, #tpu.memory_space<vmem>>, %arg8: memref<1x1024xf32, #tpu.memory_space<vmem>>, %arg9: memref<1024x128xbf16, #tpu.memory_space<vmem>>, %arg10: memref<1x128xf32, #tpu.memory_space<vmem>>, %arg11: memref<1x8x128xf32, #tpu.memory_space<vmem>>, %arg12: memref<16x256xf32, #tpu.memory_space<vmem>>) attributes {dimension_semantics = [#tpu.dimension_semantics<parallel>], iteration_bounds = array<i64: 4>, scalar_prefetch = 0 : i64, scratch_operands = 1 : i64, tpu.core_type = #tpu.core_type<tc>, window_params = [{transform_indices = @transform_0, window_bounds = array<i64: 1, 1>}, {transform_indices = @transform_1, window_bounds = array<i64: 1, 8, 1>}, {transform_indices = @transform_2, window_bounds = array<i64: 1, 8, 2048>}, {transform_indices = @transform_3, window_bounds = array<i64: 1, 8, 2048>}, {pipeline_mode = #tpu.pipeline_mode<synchronous>, transform_indices = @transform_4, window_bounds = array<i64: 2048, 256>}, {pipeline_mode = #tpu.pipeline_mode<synchronous>, transform_indices = @transform_5, window_bounds = array<i64: 1, 256>}, {pipeline_mode = #tpu.pipeline_mode<synchronous>, transform_indices = @transform_6, window_bounds = array<i64: 256, 1024>}, {pipeline_mode = #tpu.pipeline_mode<synchronous>, transform_indices = @transform_7, window_bounds = array<i64: 1, 1024>}, {pipeline_mode = #tpu.pipeline_mode<synchronous>, transform_indices = @transform_8, window_bounds = array<i64: 1024, 128>}, {pipeline_mode = #tpu.pipeline_mode<synchronous>, transform_indices = @transform_9, window_bounds = array<i64: 1, 128>}, {transform_indices = @transform_10, window_bounds = array<i64: 1, 8, 128>}]} {
    %c0 = arith.constant 0 : index
    %c0_0 = arith.constant 0 : index
    %0 = vector.load %arg5[%c0, %c0_0] : memref<2048x256xbf16, #tpu.memory_space<vmem>>, vector<2048x256xbf16>
    %c0_1 = arith.constant 0 : index
    %c0_2 = arith.constant 0 : index
    %1 = vector.load %arg6[%c0_1, %c0_2] : memref<1x256xf32, #tpu.memory_space<vmem>>, vector<1x256xf32>
    %c0_3 = arith.constant 0 : index
    %c0_4 = arith.constant 0 : index
    %c0_5 = arith.constant 0 : index
    %2 = vector.load %arg3[%c0_3, %c0_4, %c0_5] : memref<1x8x2048xbf16, #tpu.memory_space<vmem>>, vector<1x8x2048xbf16>
    %3 = vector.shape_cast %2 : vector<1x8x2048xbf16> to vector<8x2048xbf16>
    %cst = arith.constant dense<0.000000e+00> : vector<8x256xf32>
    %4 = tpu.matmul %3, %0, %cst {dimension_numbers = #tpu.dot_dimension_numbers<[1], [0], [0], [1], [0, 0, 1, 1], [], []>} : vector<8x2048xbf16>, vector<2048x256xbf16>, vector<8x256xf32> -> vector<8x256xf32>
    %5 = vector.broadcast %1 : vector<1x256xf32> to vector<8x256xf32>
    %6 = arith.addf %4, %5 : vector<8x256xf32>
    %cst_6 = arith.constant 0.000000e+00 : f32
    %7 = vector.broadcast %cst_6 : f32 to vector<8x256xf32>
    %8 = arith.maximumf %6, %7 : vector<8x256xf32>
    %c0_7 = arith.constant 0 : index
    %c0_8 = arith.constant 0 : index
    %c0_9 = arith.constant 0 : index
    %9 = vector.load %arg4[%c0_7, %c0_8, %c0_9] : memref<1x8x2048xbf16, #tpu.memory_space<vmem>>, vector<1x8x2048xbf16>
    %10 = vector.shape_cast %9 : vector<1x8x2048xbf16> to vector<8x2048xbf16>
    %cst_10 = arith.constant dense<0.000000e+00> : vector<8x256xf32>
    %11 = tpu.matmul %10, %0, %cst_10 {dimension_numbers = #tpu.dot_dimension_numbers<[1], [0], [0], [1], [0, 0, 1, 1], [], []>} : vector<8x2048xbf16>, vector<2048x256xbf16>, vector<8x256xf32> -> vector<8x256xf32>
    %12 = vector.broadcast %1 : vector<1x256xf32> to vector<8x256xf32>
    %13 = arith.addf %11, %12 : vector<8x256xf32>
    %cst_11 = arith.constant 0.000000e+00 : f32
    %14 = vector.broadcast %cst_11 : f32 to vector<8x256xf32>
    %15 = arith.maximumf %13, %14 : vector<8x256xf32>
    %c0_12 = arith.constant 0 : index
    %c0_13 = arith.constant 0 : index
    %16 = vector.load %arg12[%c0_12, %c0_13] : memref<16x256xf32, #tpu.memory_space<vmem>>, vector<8x256xf32>
    tpu.vector_store %arg12[%c0_12, %c0_13], %8 {strides = array<i32>} : memref<16x256xf32, #tpu.memory_space<vmem>>, vector<8x256xf32>,
    %c8 = arith.constant 8 : index
    %c0_14 = arith.constant 0 : index
    %17 = vector.load %arg12[%c8, %c0_14] : memref<16x256xf32, #tpu.memory_space<vmem>>, vector<8x256xf32>
    tpu.vector_store %arg12[%c8, %c0_14], %15 {strides = array<i32>} : memref<16x256xf32, #tpu.memory_space<vmem>>, vector<8x256xf32>,
    %18 = arith.truncf %8 : vector<8x256xf32> to vector<8x256xbf16>
    %c0_15 = arith.constant 0 : index
    %c0_16 = arith.constant 0 : index
    %19 = vector.load %arg7[%c0_15, %c0_16] : memref<256x1024xbf16, #tpu.memory_space<vmem>>, vector<256x1024xbf16>
    %cst_17 = arith.constant dense<0.000000e+00> : vector<8x1024xf32>
    %20 = tpu.matmul %18, %19, %cst_17 {dimension_numbers = #tpu.dot_dimension_numbers<[1], [0], [0], [1], [0, 0, 1, 1], [], []>} : vector<8x256xbf16>, vector<256x1024xbf16>, vector<8x1024xf32> -> vector<8x1024xf32>
    %c0_18 = arith.constant 0 : index
    %c0_19 = arith.constant 0 : index
    %21 = vector.load %arg8[%c0_18, %c0_19] : memref<1x1024xf32, #tpu.memory_space<vmem>>, vector<1x1024xf32>
    %22 = vector.broadcast %21 : vector<1x1024xf32> to vector<8x1024xf32>
    %23 = arith.addf %20, %22 : vector<8x1024xf32>
    %cst_20 = arith.constant 0.000000e+00 : f32
    %24 = vector.broadcast %cst_20 : f32 to vector<8x1024xf32>
    %25 = arith.maximumf %23, %24 : vector<8x1024xf32>
    %26 = arith.truncf %25 : vector<8x1024xf32> to vector<8x1024xbf16>
    %c0_21 = arith.constant 0 : index
    %c0_22 = arith.constant 0 : index
    %27 = vector.load %arg9[%c0_21, %c0_22] : memref<1024x128xbf16, #tpu.memory_space<vmem>>, vector<1024x128xbf16>
    %cst_23 = arith.constant dense<0.000000e+00> : vector<8x128xf32>
    %28 = tpu.matmul %26, %27, %cst_23 {dimension_numbers = #tpu.dot_dimension_numbers<[1], [0], [0], [1], [0, 0, 1, 1], [], []>} : vector<8x1024xbf16>, vector<1024x128xbf16>, vector<8x128xf32> -> vector<8x128xf32>
    %c0_24 = arith.constant 0 : index
    %c0_25 = arith.constant 0 : index
    %29 = vector.load %arg10[%c0_24, %c0_25] : memref<1x128xf32, #tpu.memory_space<vmem>>, vector<1x128xf32>
    %30 = vector.broadcast %29 : vector<1x128xf32> to vector<8x128xf32>
    %31 = arith.addf %28, %30 : vector<8x128xf32>
    %cst_26 = arith.constant dense<0xFF800000> : vector<8xf32>
    %32 = vector.multi_reduction <maximumf>, %31, %cst_26 [1] : vector<8x128xf32> to vector<8xf32>
    %33 = vector.shape_cast %32 : vector<8xf32> to vector<8x1xf32>
    %34 = vector.broadcast %33 : vector<8x1xf32> to vector<8x128xf32>
    %35 = arith.subf %31, %34 : vector<8x128xf32>
    %36 = math.exp %35 : vector<8x128xf32>
    %cst_27 = arith.constant dense<0.000000e+00> : vector<8xf32>
    %37 = vector.multi_reduction <add>, %36, %cst_27 [1] : vector<8x128xf32> to vector<8xf32>
    %38 = vector.shape_cast %37 : vector<8xf32> to vector<8x1xf32>
    %39 = math.log %38 : vector<8x1xf32>
    %40 = vector.broadcast %39 : vector<8x1xf32> to vector<8x128xf32>
    %41 = arith.subf %35, %40 : vector<8x128xf32>
    %42 = tpu.iota {dimensions = array<i32: 1>} : vector<8x128xi32>
    %c0_28 = arith.constant 0 : index
    %c0_29 = arith.constant 0 : index
    %c0_30 = arith.constant 0 : index
    %43 = vector.load %arg2[%c0_28, %c0_29, %c0_30] : memref<1x8x1xi32, #tpu.memory_space<vmem>>, vector<1x8x1xi32>
    %44 = vector.shape_cast %43 : vector<1x8x1xi32> to vector<8x1xi32>
    %45 = vector.broadcast %44 : vector<8x1xi32> to vector<8x128xi32>
    %46 = arith.cmpi eq, %42, %45 : vector<8x128xi32>
    %cst_31 = arith.constant 0.000000e+00 : f32
    %47 = vector.broadcast %cst_31 : f32 to vector<8x128xf32>
    %48 = arith.select %46, %41, %47 : vector<8x128xi1>, vector<8x128xf32>
    %49 = vector.shape_cast %48 : vector<8x128xf32> to vector<1x8x128xf32>
    %cst_32 = arith.constant dense<0.000000e+00> : vector<1xf32>
    %50 = vector.multi_reduction <add>, %49, %cst_32 [1, 2] : vector<1x8x128xf32> to vector<1xf32>
    %51 = vector.shape_cast %50 : vector<1xf32> to vector<1x1x1xf32>
    %52 = vector.extract %51[0, 0, 0] : f32 from vector<1x1x1xf32>
    %cst_33 = arith.constant 0.000000e+00 : f32
    %53 = arith.subf %cst_33, %52 : f32
    %cst_34 = arith.constant 1.250000e-01 : f32
    %54 = arith.mulf %53, %cst_34 : f32
    %c0_35 = arith.constant 0 : index
    %c0_36 = arith.constant 0 : index
    %55 = vector.load %arg12[%c0_35, %c0_36] : memref<16x256xf32, #tpu.memory_space<vmem>>, vector<16x256xf32>
    %56 = arith.truncf %55 : vector<16x256xf32> to vector<16x256xbf16>
    %cst_37 = arith.constant dense<0.000000e+00> : vector<16x16xf32>
    %57 = tpu.matmul %56, %56, %cst_37 {dimension_numbers = #tpu.dot_dimension_numbers<[1], [1], [0], [0], [0, 0, 1, 0], [], []>} : vector<16x256xbf16>, vector<16x256xbf16>, vector<16x16xf32> -> vector<16x16xf32>
    %58 = arith.mulf %55, %55 : vector<16x256xf32>
    %cst_38 = arith.constant dense<0.000000e+00> : vector<16xf32>
    %59 = vector.multi_reduction <add>, %58, %cst_38 [1] : vector<16x256xf32> to vector<16xf32>
    %60 = vector.shape_cast %59 : vector<16xf32> to vector<16x1xf32>
    %cst_39 = arith.constant 1.000000e+00 : f32
    %61 = vector.broadcast %cst_39 : f32 to vector<1x256xf32>
    %cst_40 = arith.constant dense<0.000000e+00> : vector<1x16xf32>
    %62 = tpu.matmul %61, %58, %cst_40 {dimension_numbers = #tpu.dot_dimension_numbers<[1], [1], [0], [0], [0, 0, 1, 0], [], []>} : vector<1x256xf32>, vector<16x256xf32>, vector<1x16xf32> -> vector<1x16xf32>
    %63 = vector.broadcast %60 : vector<16x1xf32> to vector<16x16xf32>
    %64 = vector.broadcast %62 : vector<1x16xf32> to vector<16x16xf32>
    %65 = arith.addf %63, %64 : vector<16x16xf32>
    %cst_41 = arith.constant 2.000000e+00 : f32
    %66 = vector.broadcast %cst_41 : f32 to vector<16x16xf32>
    %67 = arith.mulf %66, %57 : vector<16x16xf32>
    %68 = arith.subf %65, %67 : vector<16x16xf32>
    %69 = vector.shape_cast %68 : vector<16x16xf32> to vector<1x16x16xf32>
    %cst_42 = arith.constant dense<0.000000e+00> : vector<1xf32>
    %70 = vector.multi_reduction <add>, %69, %cst_42 [1, 2] : vector<1x16x16xf32> to vector<1xf32>
    %71 = vector.shape_cast %70 : vector<1xf32> to vector<1x1x1xf32>
    %72 = vector.extract %71[0, 0, 0] : f32 from vector<1x1x1xf32>
    %cst_43 = arith.constant 9.600000e+02 : f32
    %73 = arith.divf %cst_43, %72 : f32
    %cst_44 = arith.constant 0.000000e+00 : f32
    %74 = vector.broadcast %cst_44 : f32 to vector<16x16xf32>
    %75 = arith.maximumf %68, %74 : vector<16x16xf32>
    %cst_45 = arith.constant -1.000000e+00 : f32
    %76 = arith.mulf %73, %cst_45 : f32
    %77 = vector.broadcast %76 : f32 to vector<16x16xf32>
    %78 = arith.mulf %75, %77 : vector<16x16xf32>
    %79 = math.exp %78 : vector<16x16xf32>
    %cst_46 = arith.constant -5.000000e-01 : f32
    %80 = arith.mulf %73, %cst_46 : f32
    %81 = vector.broadcast %80 : f32 to vector<16x16xf32>
    %82 = arith.mulf %75, %81 : vector<16x16xf32>
    %83 = math.exp %82 : vector<16x16xf32>
    %84 = arith.addf %79, %83 : vector<16x16xf32>
    %cst_47 = arith.constant -2.500000e-01 : f32
    %85 = arith.mulf %73, %cst_47 : f32
    %86 = vector.broadcast %85 : f32 to vector<16x16xf32>
    %87 = arith.mulf %75, %86 : vector<16x16xf32>
    %88 = math.exp %87 : vector<16x16xf32>
    %89 = arith.addf %84, %88 : vector<16x16xf32>
    %cst_48 = arith.constant -1.250000e-01 : f32
    %90 = arith.mulf %73, %cst_48 : f32
    %91 = vector.broadcast %90 : f32 to vector<16x16xf32>
    %92 = arith.mulf %75, %91 : vector<16x16xf32>
    %93 = math.exp %92 : vector<16x16xf32>
    %94 = arith.addf %89, %93 : vector<16x16xf32>
    %cst_49 = arith.constant -6.250000e-02 : f32
    %95 = arith.mulf %73, %cst_49 : f32
    %96 = vector.broadcast %95 : f32 to vector<16x16xf32>
    %97 = arith.mulf %75, %96 : vector<16x16xf32>
    %98 = math.exp %97 : vector<16x16xf32>
    %99 = arith.addf %94, %98 : vector<16x16xf32>
    %100 = tpu.iota {dimensions = array<i32: 0>} : vector<16x16xi32>
    %101 = tpu.iota {dimensions = array<i32: 1>} : vector<16x16xi32>
    %c8_i32 = arith.constant 8 : i32
    %102 = vector.broadcast %c8_i32 : i32 to vector<16x16xi32>
    %103 = arith.cmpi slt, %100, %102 : vector<16x16xi32>
    %c8_i32_50 = arith.constant 8 : i32
    %104 = vector.broadcast %c8_i32_50 : i32 to vector<16x16xi32>
    %105 = arith.cmpi slt, %101, %104 : vector<16x16xi32>
    %106 = arith.xori %103, %105 : vector<16x16xi1>
    %cst_51 = arith.constant dense<true> : vector<16x16xi1>
    %107 = arith.xori %106, %cst_51 : vector<16x16xi1>
    %cst_52 = arith.constant 1.000000e+00 : f32
    %cst_53 = arith.constant -1.000000e+00 : f32
    %108 = vector.broadcast %cst_52 : f32 to vector<16x16xf32>
    %109 = vector.broadcast %cst_53 : f32 to vector<16x16xf32>
    %110 = arith.select %107, %108, %109 : vector<16x16xi1>, vector<16x16xf32>
    %111 = arith.mulf %99, %110 : vector<16x16xf32>
    %112 = vector.shape_cast %111 : vector<16x16xf32> to vector<1x16x16xf32>
    %cst_54 = arith.constant dense<0.000000e+00> : vector<1xf32>
    %113 = vector.multi_reduction <add>, %112, %cst_54 [1, 2] : vector<1x16x16xf32> to vector<1xf32>
    %114 = vector.shape_cast %113 : vector<1xf32> to vector<1x1x1xf32>
    %115 = vector.extract %114[0, 0, 0] : f32 from vector<1x1x1xf32>
    %cst_55 = arith.constant 1.562500e-02 : f32
    %116 = arith.mulf %115, %cst_55 : f32
    %c0_56 = arith.constant 0 : index
    %c0_57 = arith.constant 0 : index
    %117 = memref.load %arg1[%c0_56, %c0_57] : memref<1x1xf32, #tpu.memory_space<smem>>
    %118 = arith.mulf %117, %116 : f32
    %119 = arith.addf %54, %118 : f32
    %120 = vector.broadcast %119 : f32 to vector<8x128xf32>
    %c0_58 = arith.constant 0 : index
    %c0_59 = arith.constant 0 : index
    %c0_60 = arith.constant 0 : index
    %121 = vector.load %arg11[%c0_58, %c0_59, %c0_60] : memref<1x8x128xf32, #tpu.memory_space<vmem>>, vector<1x8x128xf32>
    %122 = vector.shape_cast %121 : vector<1x8x128xf32> to vector<8x128xf32>
    %123 = vector.shape_cast %120 : vector<8x128xf32> to vector<1x8x128xf32>
    tpu.vector_store %arg11[%c0_58, %c0_59, %c0_60], %123 {strides = array<i32>} : memref<1x8x128xf32, #tpu.memory_space<vmem>>, vector<1x8x128xf32>,
    return
  }
  func.func @transform_0(%arg0: i32) -> (i32, i32) {
    %c0_i32 = arith.constant 0 : i32
    %c0_i32_0 = arith.constant 0 : i32
    %c0_i32_1 = arith.constant 0 : i32
    return %c0_i32, %c0_i32_0 : i32, i32
  }
  func.func @transform_1(%arg0: i32) -> (i32, i32, i32) {
    %c0_i32 = arith.constant 0 : i32
    %c0_i32_0 = arith.constant 0 : i32
    %c0_i32_1 = arith.constant 0 : i32
    return %arg0, %c0_i32, %c0_i32_0 : i32, i32, i32
  }
  func.func @transform_2(%arg0: i32) -> (i32, i32, i32) {
    %c0_i32 = arith.constant 0 : i32
    %c0_i32_0 = arith.constant 0 : i32
    %c0_i32_1 = arith.constant 0 : i32
    return %arg0, %c0_i32, %c0_i32_0 : i32, i32, i32
  }
  func.func @transform_3(%arg0: i32) -> (i32, i32, i32) {
    %c0_i32 = arith.constant 0 : i32
    %c0_i32_0 = arith.constant 0 : i32
    %c0_i32_1 = arith.constant 0 : i32
    return %arg0, %c0_i32, %c0_i32_0 : i32, i32, i32
  }
  func.func @transform_4(%arg0: i32) -> (i32, i32) {
    %c0_i32 = arith.constant 0 : i32
    %c0_i32_0 = arith.constant 0 : i32
    %c0_i32_1 = arith.constant 0 : i32
    return %c0_i32, %c0_i32_0 : i32, i32
  }
  func.func @transform_5(%arg0: i32) -> (i32, i32) {
    %c0_i32 = arith.constant 0 : i32
    %c0_i32_0 = arith.constant 0 : i32
    %c0_i32_1 = arith.constant 0 : i32
    return %c0_i32, %c0_i32_0 : i32, i32
  }
  func.func @transform_6(%arg0: i32) -> (i32, i32) {
    %c0_i32 = arith.constant 0 : i32
    %c0_i32_0 = arith.constant 0 : i32
    %c0_i32_1 = arith.constant 0 : i32
    return %c0_i32, %c0_i32_0 : i32, i32
  }
  func.func @transform_7(%arg0: i32) -> (i32, i32) {
    %c0_i32 = arith.constant 0 : i32
    %c0_i32_0 = arith.constant 0 : i32
    %c0_i32_1 = arith.constant 0 : i32
    return %c0_i32, %c0_i32_0 : i32, i32
  }
  func.func @transform_8(%arg0: i32) -> (i32, i32) {
    %c0_i32 = arith.constant 0 : i32
    %c0_i32_0 = arith.constant 0 : i32
    %c0_i32_1 = arith.constant 0 : i32
    return %c0_i32, %c0_i32_0 : i32, i32
  }
  func.func @transform_9(%arg0: i32) -> (i32, i32) {
    %c0_i32 = arith.constant 0 : i32
    %c0_i32_0 = arith.constant 0 : i32
    %c0_i32_1 = arith.constant 0 : i32
    return %c0_i32, %c0_i32_0 : i32, i32
  }
  func.func @transform_10(%arg0: i32) -> (i32, i32, i32) {
    %c0_i32 = arith.constant 0 : i32
    %c0_i32_0 = arith.constant 0 : i32
    %c0_i32_1 = arith.constant 0 : i32
    return %arg0, %c0_i32, %c0_i32_0 : i32, i32, i32
  }
}

</mosaic_0001>

<llo_original>
// kernel: tpu_custom_call.1
$region0: #{tpu_custom_call.1}
  #allocation0 [shape = 'u32[]', space=smem, size = 0x4, offset = 0x4, fixed_abs, tag = 'smem constant byte address 0x4 - core index']
  #allocation1 [shape = 'u32[144,128]{1,0:T(1,128)}', space=vmem, size = 0x12000, scoped, tag = 'internal scratch']
  #allocation2 [shape = 'f32[16,256]{1,0:T(8,128)}', space=vmem, size = 0x4000, scoped, tag = 'scratch operand']
  #allocation3 [shape = 'f32[1,1]{1,0:T(1,128)S(6)}', space=smem, size = 0x200, scoped, tag = 'scoped memory for tpu_custom_call.1']
  %s0 = inlined_call_operand.<no memory space> [shape: f32[1,1], index: 0, kind: input, shape index: {}]
  %s1 = inlined_call_operand.vmem [shape: s32[4,8,1], index: 1, kind: input, shape index: {}]
  %s2 = inlined_call_operand.hbm [shape: bf16[4,8,2048], index: 2, kind: input, shape index: {}]
  %s3 = inlined_call_operand.hbm [shape: bf16[4,8,2048], index: 3, kind: input, shape index: {}]
  %s4 = inlined_call_operand.hbm [shape: bf16[2048,256], index: 4, kind: input, shape index: {}]
  %s5 = inlined_call_operand.vmem [shape: f32[1,256], index: 5, kind: input, shape index: {}]
  %s6 = inlined_call_operand.hbm [shape: bf16[256,1024], index: 6, kind: input, shape index: {}]
  %s7 = inlined_call_operand.vmem [shape: f32[1,1024], index: 7, kind: input, shape index: {}]
  %s8 = inlined_call_operand.hbm [shape: bf16[1024,128], index: 8, kind: input, shape index: {}]
  %s9 = inlined_call_operand.vmem [shape: f32[1,128], index: 9, kind: input, shape index: {}]
  %s10 = inlined_call_operand.hbm [shape: f32[4,8,128], index: 10, kind: output, shape index: {}]
  %s11 = sld [smem:[#allocation0]]
  $region93: #{tpu_custom_call.1} parent=0
    _
  %s13 = ssub.s32 1, %s11
  %s14 = scalar_select 0, %s13, %s11
  %15 = sst [smem:[#allocation3]] %s0
  $region1: #{tpu_custom_call.1} parent=0
    #allocation4 [shape = 'u8[65536]{0}', space=vmem, size = 0x10000, scoped, tag = 'input window, operand 2']
    #allocation5 [shape = 's32[2]{0}', space=sflag, size = 0x8, scoped, tag = 'scoped memory for tpu_custom_call.1']
    #allocation6 [shape = 's32[2]{0}', space=sflag, size = 0x8, scoped, tag = 'scoped memory for tpu_custom_call.1']
    #allocation7 [shape = 'u8[65536]{0}', space=vmem, size = 0x10000, scoped, tag = 'input window, operand 3']
    #allocation8 [shape = 's32[2]{0}', space=sflag, size = 0x8, scoped, tag = 'scoped memory for tpu_custom_call.1']
    #allocation9 [shape = 'u8[1048576]{0}', space=vmem, size = 0x100000, scoped, tag = 'input window, operand 4, single buffered']
    #allocation10 [shape = 'u8[524288]{0}', space=vmem, size = 0x80000, scoped, tag = 'input window, operand 6, single buffered']
    #allocation11 [shape = 's32[1]{0}', space=sflag, size = 0x4, scoped, tag = 'scoped memory for tpu_custom_call.1']
    #allocation12 [shape = 'u8[262144]{0}', space=vmem, size = 0x40000, scoped, tag = 'input window, operand 8, single buffered']
    #allocation13 [shape = 'u8[8192]{0}', space=vmem, size = 0x2000, scoped, tag = 'output window, operand 0']
    %16 = vsyncpa [#allocation5], 0
    %s17 = scalar_lea.sflag [#allocation5], 1
    %18 = vsyncpa %s17, 0
    %19 = vsyncpa [#allocation8], 0
    %s20 = scalar_lea.sflag [#allocation8], 1
    %21 = vsyncpa %s20, 0
    %22 = vsyncpa [#allocation11], 0
    %23 = vsyncpa [#allocation6], 0
    %s24 = scalar_lea.sflag [#allocation6], 1
    %25 = vsyncpa %s24, 0
    loop: start=0, step=1, limit=6
    $region2: #{tpu_custom_call.1} parent=1 // loop_pre_header
      _
    $region3: #{tpu_custom_call.1} parent=1 // loop_header
      %s27 = sphi 0, %s31
      %p28 = scmp.ge.s32.totalorder %s27, 6
      %s35 = sphi 0, %s35
      %s37 = sphi 0, %s35
      %s38 = sphi 0, %s37
      %s52 = sphi 0, %s38
      %s58 = sphi 0, %s60
      %s61 = sphi 0, %s58
      %s62 = sphi 0, %s61
      %s78 = sphi 0, %s62
      %s84 = sphi 0, %s86
      %s87 = sphi 0, %s84
      %s88 = sphi 0, %s87
      %s104 = sphi 0, %s88
      %s110 = sphi 0, %s112
      %s113 = sphi 0, %s110
      %s114 = sphi 0, %s113
      %s130 = sphi 0, %s114
      %s134 = sphi 0, %s134
      %s136 = sphi 0, %s134
      %s137 = sphi 0, %s136
      %s151 = sphi 0, %s137
      %s155 = sphi 0, %s155
      %s157 = sphi 0, %s155
      %s158 = sphi 0, %s157
      %s172 = sphi 0, %s158
      %s176 = sphi 0, %s176
      %s178 = sphi 0, %s176
      %s179 = sphi 0, %s178
      %s193 = sphi 0, %s179
      %s197 = sphi 0, %s197
      %s199 = sphi 0, %s197
      %s200 = sphi 0, %s199
      %s214 = sphi 0, %s200
      %s218 = sphi 0, %s218
      %s220 = sphi 0, %s218
      %s221 = sphi 0, %s220
      %s235 = sphi 0, %s221
      %s239 = sphi 0, %s239
      %s241 = sphi 0, %s239
      %s242 = sphi 0, %s241
      %s256 = sphi 0, %s242
      %s262 = sphi 0, %s264
      %s265 = sphi 0, %s262
      %s266 = sphi 0, %s265
      %s282 = sphi 0, %s266
    $region4: #{tpu_custom_call.1} parent=1 // loop_header_branch
      %30 = sbr.rel (%p28) target = $region8
    $region5: #{tpu_custom_call.1} parent=1 // loop_body
      %s32 = ssub.s32 %s27, 1
      %s33 = ssub.s32 %s27, 2
      %s34 = sadd.s32 %s27, 1
      %s36 = sadd.s32 %s35, 1
      %p39 = scmp.eq.s32.totalorder %s27, 3
      %p40 = scmp.ne.s32.totalorder %s35, %s37
      %p41 = scmp.eq.s32.totalorder %s27, 0
      %p42 = por %p40, %p41
      %p43 = scmp.ne.s32.totalorder %s35, %s37
      %p44 = scmp.eq.s32.totalorder %s32, 3
      %p45 = por %p43, %p44
      %p46 = scmp.ne.s32.totalorder %s37, %s38
      %p47 = scmp.eq.s32.totalorder %s32, 0
      %p48 = por %p46, %p47
      %p49 = scmp.ne.s32.totalorder %s37, %s38
      %p50 = scmp.eq.s32.totalorder %s33, 3
      %p51 = por %p49, %p50
      %p53 = scmp.ne.s32.totalorder %s38, %s52
      %p54 = scmp.eq.s32.totalorder %s33, 0
      %p55 = por %p53, %p54
      %s56 = ssub.s32 %s27, %s34
      %p57 = scmp.eq.s32.totalorder %s56, 0
      %s59 = sadd.s32 %s58, 1
      %s60 = scalar_select %p57, %s58, %s59
      %p63 = pneg %p57
      %p64 = scmp.eq.s32.totalorder %s27, 3
      %p65 = por %p63, %p64
      %p66 = scmp.ne.s32.totalorder %s58, %s61
      %p67 = scmp.eq.s32.totalorder %s27, 0
      %p68 = por %p66, %p67
      %p69 = scmp.ne.s32.totalorder %s58, %s61
      %p70 = scmp.eq.s32.totalorder %s32, 3
      %p71 = por %p69, %p70
      %p72 = scmp.ne.s32.totalorder %s61, %s62
      %p73 = scmp.eq.s32.totalorder %s32, 0
      %p74 = por %p72, %p73
      %p75 = scmp.ne.s32.totalorder %s61, %s62
      %p76 = scmp.eq.s32.totalorder %s33, 3
      %p77 = por %p75, %p76
      %p79 = scmp.ne.s32.totalorder %s62, %s78
      %p80 = scmp.eq.s32.totalorder %s33, 0
      %p81 = por %p79, %p80
      %s82 = ssub.s32 %s27, %s34
      %p83 = scmp.eq.s32.totalorder %s82, 0
      %s85 = sadd.s32 %s84, 1
      %s86 = scalar_select %p83, %s84, %s85
      %p89 = pneg %p83
      %p90 = scmp.eq.s32.totalorder %s27, 3
      %p91 = por %p89, %p90
      %p92 = scmp.ne.s32.totalorder %s84, %s87
      %p93 = scmp.eq.s32.totalorder %s27, 0
      %p94 = por %p92, %p93
      %p95 = scmp.ne.s32.totalorder %s84, %s87
      %p96 = scmp.eq.s32.totalorder %s32, 3
      %p97 = por %p95, %p96
      %p98 = scmp.ne.s32.totalorder %s87, %s88
      %p99 = scmp.eq.s32.totalorder %s32, 0
      %p100 = por %p98, %p99
      %p101 = scmp.ne.s32.totalorder %s87, %s88
      %p102 = scmp.eq.s32.totalorder %s33, 3
      %p103 = por %p101, %p102
      %p105 = scmp.ne.s32.totalorder %s88, %s104
      %p106 = scmp.eq.s32.totalorder %s33, 0
      %p107 = por %p105, %p106
      %s108 = ssub.s32 %s27, %s34
      %p109 = scmp.eq.s32.totalorder %s108, 0
      %s111 = sadd.s32 %s110, 1
      %s112 = scalar_select %p109, %s110, %s111
      %p115 = pneg %p109
      %p116 = scmp.eq.s32.totalorder %s27, 3
      %p117 = por %p115, %p116
      %p118 = scmp.ne.s32.totalorder %s110, %s113
      %p119 = scmp.eq.s32.totalorder %s27, 0
      %p120 = por %p118, %p119
      %p121 = scmp.ne.s32.totalorder %s110, %s113
      %p122 = scmp.eq.s32.totalorder %s32, 3
      %p123 = por %p121, %p122
      %p124 = scmp.ne.s32.totalorder %s113, %s114
      %p125 = scmp.eq.s32.totalorder %s32, 0
      %p126 = por %p124, %p125
      %p127 = scmp.ne.s32.totalorder %s113, %s114
      %p128 = scmp.eq.s32.totalorder %s33, 3
      %p129 = por %p127, %p128
      %p131 = scmp.ne.s32.totalorder %s114, %s130
      %p132 = scmp.eq.s32.totalorder %s33, 0
      %p133 = por %p131, %p132
      %s135 = sadd.s32 %s134, 1
      %p138 = scmp.eq.s32.totalorder %s27, 3
      %p139 = scmp.ne.s32.totalorder %s134, %s136
      %p140 = scmp.eq.s32.totalorder %s27, 0
      %p141 = por %p139, %p140
      %p142 = scmp.ne.s32.totalorder %s134, %s136
      %p143 = scmp.eq.s32.totalorder %s32, 3
      %p144 = por %p142, %p143
      %p145 = scmp.ne.s32.totalorder %s136, %s137
      %p146 = scmp.eq.s32.totalorder %s32, 0
      %p147 = por %p145, %p146
      %p148 = scmp.ne.s32.totalorder %s136, %s137
      %p149 = scmp.eq.s32.totalorder %s33, 3
      %p150 = por %p148, %p149
      %p152 = scmp.ne.s32.totalorder %s137, %s151
      %p153 = scmp.eq.s32.totalorder %s33, 0
      %p154 = por %p152, %p153
      %s156 = sadd.s32 %s155, 1
      %p159 = scmp.eq.s32.totalorder %s27, 3
      %p160 = scmp.ne.s32.totalorder %s155, %s157
      %p161 = scmp.eq.s32.totalorder %s27, 0
      %p162 = por %p160, %p161
      %p163 = scmp.ne.s32.totalorder %s155, %s157
      %p164 = scmp.eq.s32.totalorder %s32, 3
      %p165 = por %p163, %p164
      %p166 = scmp.ne.s32.totalorder %s157, %s158
      %p167 = scmp.eq.s32.totalorder %s32, 0
      %p168 = por %p166, %p167
      %p169 = scmp.ne.s32.totalorder %s157, %s158
      %p170 = scmp.eq.s32.totalorder %s33, 3
      %p171 = por %p169, %p170
      %p173 = scmp.ne.s32.totalorder %s158, %s172
      %p174 = scmp.eq.s32.totalorder %s33, 0
      %p175 = por %p173, %p174
      %s177 = sadd.s32 %s176, 1
      %p180 = scmp.eq.s32.totalorder %s27, 3
      %p181 = scmp.ne.s32.totalorder %s176, %s178
      %p182 = scmp.eq.s32.totalorder %s27, 0
      %p183 = por %p181, %p182
      %p184 = scmp.ne.s32.totalorder %s176, %s178
      %p185 = scmp.eq.s32.totalorder %s32, 3
      %p186 = por %p184, %p185
      %p187 = scmp.ne.s32.totalorder %s178, %s179
      %p188 = scmp.eq.s32.totalorder %s32, 0
      %p189 = por %p187, %p188
      %p190 = scmp.ne.s32.totalorder %s178, %s179
      %p191 = scmp.eq.s32.totalorder %s33, 3
      %p192 = por %p190, %p191
      %p194 = scmp.ne.s32.totalorder %s179, %s193
      %p195 = scmp.eq.s32.totalorder %s33, 0
      %p196 = por %p194, %p195
      %s198 = sadd.s32 %s197, 1
      %p201 = scmp.eq.s32.totalorder %s27, 3
      %p202 = scmp.ne.s32.totalorder %s197, %s199
      %p203 = scmp.eq.s32.totalorder %s27, 0
      %p204 = por %p202, %p203
      %p205 = scmp.ne.s32.totalorder %s197, %s199
      %p206 = scmp.eq.s32.totalorder %s32, 3
      %p207 = por %p205, %p206
      %p208 = scmp.ne.s32.totalorder %s199, %s200
      %p209 = scmp.eq.s32.totalorder %s32, 0
      %p210 = por %p208, %p209
      %p211 = scmp.ne.s32.totalorder %s199, %s200
      %p212 = scmp.eq.s32.totalorder %s33, 3
      %p213 = por %p211, %p212
      %p215 = scmp.ne.s32.totalorder %s200, %s214
      %p216 = scmp.eq.s32.totalorder %s33, 0
      %p217 = por %p215, %p216
      %s219 = sadd.s32 %s218, 1
      %p222 = scmp.eq.s32.totalorder %s27, 3
      %p223 = scmp.ne.s32.totalorder %s218, %s220
      %p224 = scmp.eq.s32.totalorder %s27, 0
      %p225 = por %p223, %p224
      %p226 = scmp.ne.s32.totalorder %s218, %s220
      %p227 = scmp.eq.s32.totalorder %s32, 3
      %p228 = por %p226, %p227
      %p229 = scmp.ne.s32.totalorder %s220, %s221
      %p230 = scmp.eq.s32.totalorder %s32, 0
      %p231 = por %p229, %p230
      %p232 = scmp.ne.s32.totalorder %s220, %s221
      %p233 = scmp.eq.s32.totalorder %s33, 3
      %p234 = por %p232, %p233
      %p236 = scmp.ne.s32.totalorder %s221, %s235
      %p237 = scmp.eq.s32.totalorder %s33, 0
      %p238 = por %p236, %p237
      %s240 = sadd.s32 %s239, 1
      %p243 = scmp.eq.s32.totalorder %s27, 3
      %p244 = scmp.ne.s32.totalorder %s239, %s241
      %p245 = scmp.eq.s32.totalorder %s27, 0
      %p246 = por %p244, %p245
      %p247 = scmp.ne.s32.totalorder %s239, %s241
      %p248 = scmp.eq.s32.totalorder %s32, 3
      %p249 = por %p247, %p248
      %p250 = scmp.ne.s32.totalorder %s241, %s242
      %p251 = scmp.eq.s32.totalorder %s32, 0
      %p252 = por %p250, %p251
      %p253 = scmp.ne.s32.totalorder %s241, %s242
      %p254 = scmp.eq.s32.totalorder %s33, 3
      %p255 = por %p253, %p254
      %p257 = scmp.ne.s32.totalorder %s242, %s256
      %p258 = scmp.eq.s32.totalorder %s33, 0
      %p259 = por %p257, %p258
      %s260 = ssub.s32 %s27, %s34
      %p261 = scmp.eq.s32.totalorder %s260, 0
      %s263 = sadd.s32 %s262, 1
      %s264 = scalar_select %p261, %s262, %s263
      %p267 = pneg %p261
      %p268 = scmp.eq.s32.totalorder %s27, 3
      %p269 = por %p267, %p268
      %p270 = scmp.ne.s32.totalorder %s262, %s265
      %p271 = scmp.eq.s32.totalorder %s27, 0
      %p272 = por %p270, %p271
      %p273 = scmp.ne.s32.totalorder %s262, %s265
      %p274 = scmp.eq.s32.totalorder %s32, 3
      %p275 = por %p273, %p274
      %p276 = scmp.ne.s32.totalorder %s265, %s266
      %p277 = scmp.eq.s32.totalorder %s32, 0
      %p278 = por %p276, %p277
      %p279 = scmp.ne.s32.totalorder %s265, %s266
      %p280 = scmp.eq.s32.totalorder %s33, 3
      %p281 = por %p279, %p280
      %p283 = scmp.ne.s32.totalorder %s266, %s282
      %p284 = scmp.eq.s32.totalorder %s33, 0
      %p285 = por %p283, %p284
      %p286 = scmp.le.s32.totalorder 1, %s27
      %p287 = scmp.lt.s32.totalorder %s27, 5
      %p288 = pnand %p286, %p287
      %p289 = pneg %p288
      // Predicated region
      $region9: #{tpu_custom_call.1} parent=5 // pred_check
        _
      $region10: #{tpu_custom_call.1} parent=5 // pred_check_branch
        %291 = sbr.rel (%p288) target = $region12
      $region11: #{tpu_custom_call.1} parent=5 // pred_region
        %s292 = ssub.s32 %s27, 1
        // Predicated region
        $region13: #{tpu_custom_call.1} parent=11 // pred_check
          %p293 = pneg %p48
        $region14: #{tpu_custom_call.1} parent=11 // pred_check_branch
          %295 = sbr.rel (%p293) target = $region16
        $region15: #{tpu_custom_call.1} parent=11 // pred_region
          _
        $region16: #{tpu_custom_call.1} parent=11 // pred_fallthru
          _
        // Predicated region
        $region17: #{tpu_custom_call.1} parent=11 // pred_check
          %p296 = pneg %p147
        $region18: #{tpu_custom_call.1} parent=11 // pred_check_branch
          %298 = sbr.rel (%p296) target = $region20
        $region19: #{tpu_custom_call.1} parent=11 // pred_region
          %s300 = ssub.s32 32768, 32768
          %301 = vsyncadd [#allocation8], %s300
          %s302 = sshll.u32 [#allocation9], 4
          %s303 = int_to_ptr.vmem [resolvable:$true] %s302
          %308 = dma.hbm_to_vmem [thread:$0]  %s4, 32768, %s303, [#allocation8], 128, 128, 8
        $region20: #{tpu_custom_call.1} parent=11 // pred_fallthru
          _
        // Predicated region
        $region21: #{tpu_custom_call.1} parent=11 // pred_check
          %p309 = pneg %p168
        $region22: #{tpu_custom_call.1} parent=11 // pred_check_branch
          %311 = sbr.rel (%p309) target = $region24
        $region23: #{tpu_custom_call.1} parent=11 // pred_region
          _
        $region24: #{tpu_custom_call.1} parent=11 // pred_fallthru
          _
        // Predicated region
        $region25: #{tpu_custom_call.1} parent=11 // pred_check
          %p312 = pneg %p189
        $region26: #{tpu_custom_call.1} parent=11 // pred_check_branch
          %314 = sbr.rel (%p312) target = $region28
        $region27: #{tpu_custom_call.1} parent=11 // pred_region
          %s316 = ssub.s32 16384, 16384
          %317 = vsyncadd [#allocation11], %s316
          %s318 = sshll.u32 [#allocation10], 4
          %s319 = int_to_ptr.vmem [resolvable:$true] %s318
          %324 = dma.hbm_to_vmem [thread:$0]  %s6, 16384, %s319, [#allocation11], 512, 512, 32
        $region28: #{tpu_custom_call.1} parent=11 // pred_fallthru
          _
        // Predicated region
        $region29: #{tpu_custom_call.1} parent=11 // pred_check
          %p325 = pneg %p210
        $region30: #{tpu_custom_call.1} parent=11 // pred_check_branch
          %327 = sbr.rel (%p325) target = $region32
        $region31: #{tpu_custom_call.1} parent=11 // pred_region
          _
        $region32: #{tpu_custom_call.1} parent=11 // pred_fallthru
          _
        // Predicated region
        $region33: #{tpu_custom_call.1} parent=11 // pred_check
          %p328 = pneg %p231
        $region34: #{tpu_custom_call.1} parent=11 // pred_check_branch
          %330 = sbr.rel (%p328) target = $region36
        $region35: #{tpu_custom_call.1} parent=11 // pred_region
          %s332 = ssub.s32 8192, 8192
          %333 = vsyncadd [#allocation11], %s332
          %s334 = sshll.u32 [#allocation12], 4
          %s335 = int_to_ptr.vmem [resolvable:$true] %s334
          %340 = dma.hbm_to_vmem [thread:$0]  %s8, 8192, %s335, [#allocation11], 64, 64, 4
        $region36: #{tpu_custom_call.1} parent=11 // pred_fallthru
          _
        // Predicated region
        $region37: #{tpu_custom_call.1} parent=11 // pred_check
          %p341 = pneg %p252
        $region38: #{tpu_custom_call.1} parent=11 // pred_check_branch
          %343 = sbr.rel (%p341) target = $region40
        $region39: #{tpu_custom_call.1} parent=11 // pred_region
          _
        $region40: #{tpu_custom_call.1} parent=11 // pred_fallthru
          _
      $region12: #{tpu_custom_call.1} parent=5 // pred_fallthru
        _
      %p344 = scmp.lt.s32.totalorder %s27, 4
      // Predicated region
      $region41: #{tpu_custom_call.1} parent=5 // pred_check
        %p345 = pneg %p344
      $region42: #{tpu_custom_call.1} parent=5 // pred_check_branch
        %347 = sbr.rel (%p345) target = $region44
      $region43: #{tpu_custom_call.1} parent=5 // pred_region
        // Predicated region
        $region45: #{tpu_custom_call.1} parent=43 // pred_check
          %p348 = pneg %p68
        $region46: #{tpu_custom_call.1} parent=43 // pred_check_branch
          %350 = sbr.rel (%p348) target = $region48
        $region47: #{tpu_custom_call.1} parent=43 // pred_region
          %p351 = scmp.lt.s32.totalorder %s27, 3
          %s352 = scalar_select %p351, %s27, 3
          %s353 = smul.addr %s352, 8
          %s354 = scalar_lea.vmem %s1, %s353
        $region48: #{tpu_custom_call.1} parent=43 // pred_fallthru
          _
        // Predicated region
        $region49: #{tpu_custom_call.1} parent=43 // pred_check
          %p355 = pneg %p94
        $region50: #{tpu_custom_call.1} parent=43 // pred_check_branch
          %357 = sbr.rel (%p355) target = $region52
        $region51: #{tpu_custom_call.1} parent=43 // pred_region
          %s358 = sand.u32 %s84, 1
          %s359 = scalar_lea.sflag [#allocation5], %s358
          %s360 = sand.u32 %s84, 1
          %s361 = smul.addr %s360, 64
          %s362 = scalar_lea.vmem [#allocation4], %s361
          %s364 = ssub.s32 1024, 1024
          %365 = vsyncadd %s359, %s364
          %s366 = smul.addr %s27, 16
          %s367 = smul.addr %s366, 64
          %s368 = scalar_lea.hbm %s2, %s367
          %s370 = sshll.u32 %s362, 4
          %s371 = int_to_ptr.vmem [resolvable:$true] %s370
          %373 = dma.hbm_to_vmem [thread:$0]  %s368, 1024, %s371, %s359
        $region52: #{tpu_custom_call.1} parent=43 // pred_fallthru
          _
        // Predicated region
        $region53: #{tpu_custom_call.1} parent=43 // pred_check
          %p374 = pneg %p120
        $region54: #{tpu_custom_call.1} parent=43 // pred_check_branch
          %376 = sbr.rel (%p374) target = $region56
        $region55: #{tpu_custom_call.1} parent=43 // pred_region
          %s377 = sand.u32 %s27, 1
          %s378 = scalar_lea.sflag [#allocation8], %s377
          %s379 = sand.u32 %s110, 1
          %s380 = smul.addr %s379, 64
          %s381 = scalar_lea.vmem [#allocation7], %s380
          %s383 = ssub.s32 1024, 1024
          %384 = vsyncadd %s378, %s383
          %s385 = smul.addr %s27, 16
          %s386 = smul.addr %s385, 64
          %s387 = scalar_lea.hbm %s3, %s386
          %s389 = sshll.u32 %s381, 4
          %s390 = int_to_ptr.vmem [resolvable:$true] %s389
          %392 = dma.hbm_to_vmem [thread:$0]  %s387, 1024, %s390, %s378
        $region56: #{tpu_custom_call.1} parent=43 // pred_fallthru
          _
      $region44: #{tpu_custom_call.1} parent=5 // pred_fallthru
        _
      %p393 = scmp.le.s32.totalorder 1, %s27
      %p394 = scmp.lt.s32.totalorder %s27, 5
      %p395 = pnand %p393, %p394
      %p396 = pneg %p395
      // Predicated region
      $region57: #{tpu_custom_call.1} parent=5 // pred_check
        _
      $region58: #{tpu_custom_call.1} parent=5 // pred_check_branch
        %398 = sbr.rel (%p395) target = $region60
      $region59: #{tpu_custom_call.1} parent=5 // pred_region
        %s399 = ssub.s32 %s27, 1
        %s400 = sand.u32 %s87, 1
        %s401 = scalar_lea.sflag [#allocation5], %s400
        %s402 = sand.u32 %s87, 1
        %s403 = smul.addr %s402, 64
        %s404 = scalar_lea.vmem [#allocation4], %s403
        // Predicated region
        $region61: #{tpu_custom_call.1} parent=59 // pred_check
          %p405 = pneg %p100
        $region62: #{tpu_custom_call.1} parent=59 // pred_check_branch
          %407 = sbr.rel (%p405) target = $region64
        $region63: #{tpu_custom_call.1} parent=59 // pred_region
          %408 = dma.done %s401, 1024
        $region64: #{tpu_custom_call.1} parent=59 // pred_fallthru
          _
        %s409 = sand.u32 %s32, 1
        %s410 = scalar_lea.sflag [#allocation8], %s409
        %s411 = sand.u32 %s113, 1
        %s412 = smul.addr %s411, 64
        %s413 = scalar_lea.vmem [#allocation7], %s412
        // Predicated region
        $region65: #{tpu_custom_call.1} parent=59 // pred_check
          %p414 = pneg %p126
        $region66: #{tpu_custom_call.1} parent=59 // pred_check_branch
          %416 = sbr.rel (%p414) target = $region68
        $region67: #{tpu_custom_call.1} parent=59 // pred_region
          %417 = dma.done %s410, 1024
        $region68: #{tpu_custom_call.1} parent=59 // pred_fallthru
          _
        // Predicated region
        $region69: #{tpu_custom_call.1} parent=59 // pred_check
          %p418 = pneg %p147
        $region70: #{tpu_custom_call.1} parent=59 // pred_check_branch
          %420 = sbr.rel (%p418) target = $region72
        $region71: #{tpu_custom_call.1} parent=59 // pred_region
          %421 = dma.done [#allocation8], 32768
        $region72: #{tpu_custom_call.1} parent=59 // pred_fallthru
          _
        // Predicated region
        $region73: #{tpu_custom_call.1} parent=59 // pred_check
          %p422 = pneg %p189
        $region74: #{tpu_custom_call.1} parent=59 // pred_check_branch
          %424 = sbr.rel (%p422) target = $region76
        $region75: #{tpu_custom_call.1} parent=59 // pred_region
          %425 = dma.done [#allocation11], 16384
        $region76: #{tpu_custom_call.1} parent=59 // pred_fallthru
          _
        // Predicated region
        $region77: #{tpu_custom_call.1} parent=59 // pred_check
          %p426 = pneg %p231
        $region78: #{tpu_custom_call.1} parent=59 // pred_check_branch
          %428 = sbr.rel (%p426) target = $region80
        $region79: #{tpu_custom_call.1} parent=59 // pred_region
          %429 = dma.done [#allocation11], 8192
        $region80: #{tpu_custom_call.1} parent=59 // pred_fallthru
          _
        %p430 = pneg %p48
        %p431 = pneg %p45
        %p432 = scmp.lt.s32.totalorder %s32, 3
        %s433 = scalar_select %p432, %s32, 3
        %s434 = smul.addr %s433, 8
        %s435 = scalar_lea.vmem %s1, %s434
        %p436 = pneg %p74
        %p437 = pneg %p71
        %s438 = sand.u32 %s87, 1
        %s439 = scalar_lea.sflag [#allocation5], %s438
        %s440 = sand.u32 %s87, 1
        %s441 = smul.addr %s440, 64
        %s442 = scalar_lea.vmem [#allocation4], %s441
        %p443 = pneg %p100
        %p444 = pneg %p97
        %s445 = sand.u32 %s32, 1
        %s446 = scalar_lea.sflag [#allocation8], %s445
        %s447 = sand.u32 %s113, 1
        %s448 = smul.addr %s447, 64
        %s449 = scalar_lea.vmem [#allocation7], %s448
        %p450 = pneg %p126
        %p451 = pneg %p123
        %p452 = pneg %p147
        %p453 = pneg %p144
        %p454 = pneg %p168
        %p455 = pneg %p165
        %p456 = pneg %p189
        %p457 = pneg %p186
        %p458 = pneg %p210
        %p459 = pneg %p207
        %p460 = pneg %p231
        %p461 = pneg %p228
        %p462 = pneg %p252
        %p463 = pneg %p249
        %p464 = pneg %p278
        %p465 = pneg %p275
        %s466 = sand.u32 %s265, 1
        %s467 = scalar_lea.sflag [#allocation6], %s466
        %s468 = sand.u32 %s265, 1
        %s469 = smul.addr %s468, 8
        %s470 = scalar_lea.vmem [#allocation13], %s469
        %p471 = scmp.lt.s32.totalorder %s32, 3
        %s472 = scalar_select %p471, %s32, 3
        %s473 = smul.addr %s472, 8
        %s474 = scalar_lea.vmem %s1, %s473
        %v476 = vld [vmem:[#allocation9] sm:$0xff]
        %v477 = vld [vmem:[#allocation9 + $0x8] sm:$0xff]
        %v478 = vld [vmem:[#allocation9 + $0x10] sm:$0xff]
        %v479 = vld [vmem:[#allocation9 + $0x18] sm:$0xff]
        %v480 = vld [vmem:[#allocation9 + $0x20] sm:$0xff]
        %v481 = vld [vmem:[#allocation9 + $0x28] sm:$0xff]
        %v482 = vld [vmem:[#allocation9 + $0x30] sm:$0xff]
        %v483 = vld [vmem:[#allocation9 + $0x38] sm:$0xff]
        %v484 = vld [vmem:[#allocation9 + $0x40] sm:$0xff]
        %v485 = vld [vmem:[#allocation9 + $0x48] sm:$0xff]
        %v486 = vld [vmem:[#allocation9 + $0x50] sm:$0xff]
        %v487 = vld [vmem:[#allocation9 + $0x58] sm:$0xff]
        %v488 = vld [vmem:[#allocation9 + $0x60] sm:$0xff]
        %v489 = vld [vmem:[#allocation9 + $0x68] sm:$0xff]
        %v490 = vld [vmem:[#allocation9 + $0x70] sm:$0xff]
        %v491 = vld [vmem:[#allocation9 + $0x78] sm:$0xff]
        %v492 = vld [vmem:[#allocation9 + $0x80] sm:$0xff]
        %v493 = vld [vmem:[#allocation9 + $0x88] sm:$0xff]
        %v494 = vld [vmem:[#allocation9 + $0x90] sm:$0xff]
        %v495 = vld [vmem:[#allocation9 + $0x98] sm:$0xff]
        %v496 = vld [vmem:[#allocation9 + $0xa0] sm:$0xff]
        %v497 = vld [vmem:[#allocation9 + $0xa8] sm:$0xff]
        %v498 = vld [vmem:[#allocation9 + $0xb0] sm:$0xff]
        %v499 = vld [vmem:[#allocation9 + $0xb8] sm:$0xff]
        %v500 = vld [vmem:[#allocation9 + $0xc0] sm:$0xff]
        %v501 = vld [vmem:[#allocation9 + $0xc8] sm:$0xff]
        %v502 = vld [vmem:[#allocation9 + $0xd0] sm:$0xff]
        %v503 = vld [vmem:[#allocation9 + $0xd8] sm:$0xff]
        %v504 = vld [vmem:[#allocation9 + $0xe0] sm:$0xff]
        %v505 = vld [vmem:[#allocation9 + $0xe8] sm:$0xff]
        %v506 = vld [vmem:[#allocation9 + $0xf0] sm:$0xff]
        %v507 = vld [vmem:[#allocation9 + $0xf8] sm:$0xff]
        %v508 = vld [vmem:[#allocation9 + $0x100] sm:$0xff]
        %v509 = vld [vmem:[#allocation9 + $0x108] sm:$0xff]
        %v510 = vld [vmem:[#allocation9 + $0x110] sm:$0xff]
        %v511 = vld [vmem:[#allocation9 + $0x118] sm:$0xff]
        %v512 = vld [vmem:[#allocation9 + $0x120] sm:$0xff]
        %v513 = vld [vmem:[#allocation9 + $0x128] sm:$0xff]
        %v514 = vld [vmem:[#allocation9 + $0x130] sm:$0xff]
        %v515 = vld [vmem:[#allocation9 + $0x138] sm:$0xff]
        %v516 = vld [vmem:[#allocation9 + $0x140] sm:$0xff]
        %v517 = vld [vmem:[#allocation9 + $0x148] sm:$0xff]
        %v518 = vld [vmem:[#allocation9 + $0x150] sm:$0xff]
        %v519 = vld [vmem:[#allocation9 + $0x158] sm:$0xff]
        %v520 = vld [vmem:[#allocation9 + $0x160] sm:$0xff]
        %v521 = vld [vmem:[#allocation9 + $0x168] sm:$0xff]
        %v522 = vld [vmem:[#allocation9 + $0x170] sm:$0xff]
        %v523 = vld [vmem:[#allocation9 + $0x178] sm:$0xff]
        %v524 = vld [vmem:[#allocation9 + $0x180] sm:$0xff]
        %v525 = vld [vmem:[#allocation9 + $0x188] sm:$0xff]
        %v526 = vld [vmem:[#allocation9 + $0x190] sm:$0xff]
        %v527 = vld [vmem:[#allocation9 + $0x198] sm:$0xff]
        %v528 = vld [vmem:[#allocation9 + $0x1a0] sm:$0xff]
        %v529 = vld [vmem:[#allocation9 + $0x1a8] sm:$0xff]
        %v530 = vld [vmem:[#allocation9 + $0x1b0] sm:$0xff]
        %v531 = vld [vmem:[#allocation9 + $0x1b8] sm:$0xff]
        %v532 = vld [vmem:[#allocation9 + $0x1c0] sm:$0xff]
        %v533 = vld [vmem:[#allocation9 + $0x1c8] sm:$0xff]
        %v534 = vld [vmem:[#allocation9 + $0x1d0] sm:$0xff]
        %v535 = vld [vmem:[#allocation9 + $0x1d8] sm:$0xff]
        %v536 = vld [vmem:[#allocation9 + $0x1e0] sm:$0xff]
        %v537 = vld [vmem:[#allocation9 + $0x1e8] sm:$0xff]
        %v538 = vld [vmem:[#allocation9 + $0x1f0] sm:$0xff]
        %v539 = vld [vmem:[#allocation9 + $0x1f8] sm:$0xff]
        %v540 = vld [vmem:[#allocation9 + $0x200] sm:$0xff]
        %v541 = vld [vmem:[#allocation9 + $0x208] sm:$0xff]
        %v542 = vld [vmem:[#allocation9 + $0x210] sm:$0xff]
        %v543 = vld [vmem:[#allocation9 + $0x218] sm:$0xff]
        %v544 = vld [vmem:[#allocation9 + $0x220] sm:$0xff]
        %v545 = vld [vmem:[#allocation9 + $0x228] sm:$0xff]
        %v546 = vld [vmem:[#allocation9 + $0x230] sm:$0xff]
        %v547 = vld [vmem:[#allocation9 + $0x238] sm:$0xff]
        %v548 = vld [vmem:[#allocation9 + $0x240] sm:$0xff]
        %v549 = vld [vmem:[#allocation9 + $0x248] sm:$0xff]
        %v550 = vld [vmem:[#allocation9 + $0x250] sm:$0xff]
        %v551 = vld [vmem:[#allocation9 + $0x258] sm:$0xff]
        %v552 = vld [vmem:[#allocation9 + $0x260] sm:$0xff]
        %v553 = vld [vmem:[#allocation9 + $0x268] sm:$0xff]
        %v554 = vld [vmem:[#allocation9 + $0x270] sm:$0xff]
        %v555 = vld [vmem:[#allocation9 + $0x278] sm:$0xff]
        %v556 = vld [vmem:[#allocation9 + $0x280] sm:$0xff]
        %v557 = vld [vmem:[#allocation9 + $0x288] sm:$0xff]
        %v558 = vld [vmem:[#allocation9 + $0x290] sm:$0xff]
        %v559 = vld [vmem:[#allocation9 + $0x298] sm:$0xff]
        %v560 = vld [vmem:[#allocation9 + $0x2a0] sm:$0xff]
        %v561 = vld [vmem:[#allocation9 + $0x2a8] sm:$0xff]
        %v562 = vld [vmem:[#allocation9 + $0x2b0] sm:$0xff]
        %v563 = vld [vmem:[#allocation9 + $0x2b8] sm:$0xff]
        %v564 = vld [vmem:[#allocation9 + $0x2c0] sm:$0xff]
        %v565 = vld [vmem:[#allocation9 + $0x2c8] sm:$0xff]
        %v566 = vld [vmem:[#allocation9 + $0x2d0] sm:$0xff]
        %v567 = vld [vmem:[#allocation9 + $0x2d8] sm:$0xff]
        %v568 = vld [vmem:[#allocation9 + $0x2e0] sm:$0xff]
        %v569 = vld [vmem:[#allocation9 + $0x2e8] sm:$0xff]
        %v570 = vld [vmem:[#allocation9 + $0x2f0] sm:$0xff]
        %v571 = vld [vmem:[#allocation9 + $0x2f8] sm:$0xff]
        %v572 = vld [vmem:[#allocation9 + $0x300] sm:$0xff]
        %v573 = vld [vmem:[#allocation9 + $0x308] sm:$0xff]
        %v574 = vld [vmem:[#allocation9 + $0x310] sm:$0xff]
        %v575 = vld [vmem:[#allocation9 + $0x318] sm:$0xff]
        %v576 = vld [vmem:[#allocation9 + $0x320] sm:$0xff]
        %v577 = vld [vmem:[#allocation9 + $0x328] sm:$0xff]
        %v578 = vld [vmem:[#allocation9 + $0x330] sm:$0xff]
        %v579 = vld [vmem:[#allocation9 + $0x338] sm:$0xff]
        %v580 = vld [vmem:[#allocation9 + $0x340] sm:$0xff]
        %v581 = vld [vmem:[#allocation9 + $0x348] sm:$0xff]
        %v582 = vld [vmem:[#allocation9 + $0x350] sm:$0xff]
        %v583 = vld [vmem:[#allocation9 + $0x358] sm:$0xff]
        %v584 = vld [vmem:[#allocation9 + $0x360] sm:$0xff]
        %v585 = vld [vmem:[#allocation9 + $0x368] sm:$0xff]
        %v586 = vld [vmem:[#allocation9 + $0x370] sm:$0xff]
        %v587 = vld [vmem:[#allocation9 + $0x378] sm:$0xff]
        %v588 = vld [vmem:[#allocation9 + $0x380] sm:$0xff]
        %v589 = vld [vmem:[#allocation9 + $0x388] sm:$0xff]
        %v590 = vld [vmem:[#allocation9 + $0x390] sm:$0xff]
        %v591 = vld [vmem:[#allocation9 + $0x398] sm:$0xff]
        %v592 = vld [vmem:[#allocation9 + $0x3a0] sm:$0xff]
        %v593 = vld [vmem:[#allocation9 + $0x3a8] sm:$0xff]
        %v594 = vld [vmem:[#allocation9 + $0x3b0] sm:$0xff]
        %v595 = vld [vmem:[#allocation9 + $0x3b8] sm:$0xff]
        %v596 = vld [vmem:[#allocation9 + $0x3c0] sm:$0xff]
        %v597 = vld [vmem:[#allocation9 + $0x3c8] sm:$0xff]
        %v598 = vld [vmem:[#allocation9 + $0x3d0] sm:$0xff]
        %v599 = vld [vmem:[#allocation9 + $0x3d8] sm:$0xff]
        %v600 = vld [vmem:[#allocation9 + $0x3e0] sm:$0xff]
        %v601 = vld [vmem:[#allocation9 + $0x3e8] sm:$0xff]
        %v602 = vld [vmem:[#allocation9 + $0x3f0] sm:$0xff]
        %v603 = vld [vmem:[#allocation9 + $0x3f8] sm:$0xff]
        %v604 = vld [vmem:[#allocation9 + $0x400] sm:$0xff]
        %v605 = vld [vmem:[#allocation9 + $0x408] sm:$0xff]
        %v606 = vld [vmem:[#allocation9 + $0x410] sm:$0xff]
        %v607 = vld [vmem:[#allocation9 + $0x418] sm:$0xff]
        %v608 = vld [vmem:[#allocation9 + $0x420] sm:$0xff]
        %v609 = vld [vmem:[#allocation9 + $0x428] sm:$0xff]
        %v610 = vld [vmem:[#allocation9 + $0x430] sm:$0xff]
        %v611 = vld [vmem:[#allocation9 + $0x438] sm:$0xff]
        %v612 = vld [vmem:[#allocation9 + $0x440] sm:$0xff]
        %v613 = vld [vmem:[#allocation9 + $0x448] sm:$0xff]
        %v614 = vld [vmem:[#allocation9 + $0x450] sm:$0xff]
        %v615 = vld [vmem:[#allocation9 + $0x458] sm:$0xff]
        %v616 = vld [vmem:[#allocation9 + $0x460] sm:$0xff]
        %v617 = vld [vmem:[#allocation9 + $0x468] sm:$0xff]
        %v618 = vld [vmem:[#allocation9 + $0x470] sm:$0xff]
        %v619 = vld [vmem:[#allocation9 + $0x478] sm:$0xff]
        %v620 = vld [vmem:[#allocation9 + $0x480] sm:$0xff]
        %v621 = vld [vmem:[#allocation9 + $0x488] sm:$0xff]
        %v622 = vld [vmem:[#allocation9 + $0x490] sm:$0xff]
        %v623 = vld [vmem:[#allocation9 + $0x498] sm:$0xff]
        %v624 = vld [vmem:[#allocation9 + $0x4a0] sm:$0xff]
        %v625 = vld [vmem:[#allocation9 + $0x4a8] sm:$0xff]
        %v626 = vld [vmem:[#allocation9 + $0x4b0] sm:$0xff]
        %v627 = vld [vmem:[#allocation9 + $0x4b8] sm:$0xff]
        %v628 = vld [vmem:[#allocation9 + $0x4c0] sm:$0xff]
        %v629 = vld [vmem:[#allocation9 + $0x4c8] sm:$0xff]
        %v630 = vld [vmem:[#allocation9 + $0x4d0] sm:$0xff]
        %v631 = vld [vmem:[#allocation9 + $0x4d8] sm:$0xff]
        %v632 = vld [vmem:[#allocation9 + $0x4e0] sm:$0xff]
        %v633 = vld [vmem:[#allocation9 + $0x4e8] sm:$0xff]
        %v634 = vld [vmem:[#allocation9 + $0x4f0] sm:$0xff]
        %v635 = vld [vmem:[#allocation9 + $0x4f8] sm:$0xff]
        %v636 = vld [vmem:[#allocation9 + $0x500] sm:$0xff]
        %v637 = vld [vmem:[#allocation9 + $0x508] sm:$0xff]
        %v638 = vld [vmem:[#allocation9 + $0x510] sm:$0xff]
        %v639 = vld [vmem:[#allocation9 + $0x518] sm:$0xff]
        %v640 = vld [vmem:[#allocation9 + $0x520] sm:$0xff]
        %v641 = vld [vmem:[#allocation9 + $0x528] sm:$0xff]
        %v642 = vld [vmem:[#allocation9 + $0x530] sm:$0xff]
        %v643 = vld [vmem:[#allocation9 + $0x538] sm:$0xff]
        %v644 = vld [vmem:[#allocation9 + $0x540] sm:$0xff]
        %v645 = vld [vmem:[#allocation9 + $0x548] sm:$0xff]
        %v646 = vld [vmem:[#allocation9 + $0x550] sm:$0xff]
        %v647 = vld [vmem:[#allocation9 + $0x558] sm:$0xff]
        %v648 = vld [vmem:[#allocation9 + $0x560] sm:$0xff]
        %v649 = vld [vmem:[#allocation9 + $0x568] sm:$0xff]
        %v650 = vld [vmem:[#allocation9 + $0x570] sm:$0xff]
        %v651 = vld [vmem:[#allocation9 + $0x578] sm:$0xff]
        %v652 = vld [vmem:[#allocation9 + $0x580] sm:$0xff]
        %v653 = vld [vmem:[#allocation9 + $0x588] sm:$0xff]
        %v654 = vld [vmem:[#allocation9 + $0x590] sm:$0xff]
        %v655 = vld [vmem:[#allocation9 + $0x598] sm:$0xff]
        %v656 = vld [vmem:[#allocation9 + $0x5a0] sm:$0xff]
        %v657 = vld [vmem:[#allocation9 + $0x5a8] sm:$0xff]
        %v658 = vld [vmem:[#allocation9 + $0x5b0] sm:$0xff]
        %v659 = vld [vmem:[#allocation9 + $0x5b8] sm:$0xff]
        %v660 = vld [vmem:[#allocation9 + $0x5c0] sm:$0xff]
        %v661 = vld [vmem:[#allocation9 + $0x5c8] sm:$0xff]
        %v662 = vld [vmem:[#allocation9 + $0x5d0] sm:$0xff]
        %v663 = vld [vmem:[#allocation9 + $0x5d8] sm:$0xff]
        %v664 = vld [vmem:[#allocation9 + $0x5e0] sm:$0xff]
        %v665 = vld [vmem:[#allocation9 + $0x5e8] sm:$0xff]
        %v666 = vld [vmem:[#allocation9 + $0x5f0] sm:$0xff]
        %v667 = vld [vmem:[#allocation9 + $0x5f8] sm:$0xff]
        %v668 = vld [vmem:[#allocation9 + $0x600] sm:$0xff]
        %v669 = vld [vmem:[#allocation9 + $0x608] sm:$0xff]
        %v670 = vld [vmem:[#allocation9 + $0x610] sm:$0xff]
        %v671 = vld [vmem:[#allocation9 + $0x618] sm:$0xff]
        %v672 = vld [vmem:[#allocation9 + $0x620] sm:$0xff]
        %v673 = vld [vmem:[#allocation9 + $0x628] sm:$0xff]
        %v674 = vld [vmem:[#allocation9 + $0x630] sm:$0xff]
        %v675 = vld [vmem:[#allocation9 + $0x638] sm:$0xff]
        %v676 = vld [vmem:[#allocation9 + $0x640] sm:$0xff]
        %v677 = vld [vmem:[#allocation9 + $0x648] sm:$0xff]
        %v678 = vld [vmem:[#allocation9 + $0x650] sm:$0xff]
        %v679 = vld [vmem:[#allocation9 + $0x658] sm:$0xff]
        %v680 = vld [vmem:[#allocation9 + $0x660] sm:$0xff]
        %v681 = vld [vmem:[#allocation9 + $0x668] sm:$0xff]
        %v682 = vld [vmem:[#allocation9 + $0x670] sm:$0xff]
        %v683 = vld [vmem:[#allocation9 + $0x678] sm:$0xff]
        %v684 = vld [vmem:[#allocation9 + $0x680] sm:$0xff]
        %v685 = vld [vmem:[#allocation9 + $0x688] sm:$0xff]
        %v686 = vld [vmem:[#allocation9 + $0x690] sm:$0xff]
        %v687 = vld [vmem:[#allocation9 + $0x698] sm:$0xff]
        %v688 = vld [vmem:[#allocation9 + $0x6a0] sm:$0xff]
        %v689 = vld [vmem:[#allocation9 + $0x6a8] sm:$0xff]
        %v690 = vld [vmem:[#allocation9 + $0x6b0] sm:$0xff]
        %v691 = vld [vmem:[#allocation9 + $0x6b8] sm:$0xff]
        %v692 = vld [vmem:[#allocation9 + $0x6c0] sm:$0xff]
        %v693 = vld [vmem:[#allocation9 + $0x6c8] sm:$0xff]
        %v694 = vld [vmem:[#allocation9 + $0x6d0] sm:$0xff]
        %v695 = vld [vmem:[#allocation9 + $0x6d8] sm:$0xff]
        %v696 = vld [vmem:[#allocation9 + $0x6e0] sm:$0xff]
        %v697 = vld [vmem:[#allocation9 + $0x6e8] sm:$0xff]
        %v698 = vld [vmem:[#allocation9 + $0x6f0] sm:$0xff]
        %v699 = vld [vmem:[#allocation9 + $0x6f8] sm:$0xff]
        %v700 = vld [vmem:[#allocation9 + $0x700] sm:$0xff]
        %v701 = vld [vmem:[#allocation9 + $0x708] sm:$0xff]
        %v702 = vld [vmem:[#allocation9 + $0x710] sm:$0xff]
        %v703 = vld [vmem:[#allocation9 + $0x718] sm:$0xff]
        %v704 = vld [vmem:[#allocation9 + $0x720] sm:$0xff]
        %v705 = vld [vmem:[#allocation9 + $0x728] sm:$0xff]
        %v706 = vld [vmem:[#allocation9 + $0x730] sm:$0xff]
        %v707 = vld [vmem:[#allocation9 + $0x738] sm:$0xff]
        %v708 = vld [vmem:[#allocation9 + $0x740] sm:$0xff]
        %v709 = vld [vmem:[#allocation9 + $0x748] sm:$0xff]
        %v710 = vld [vmem:[#allocation9 + $0x750] sm:$0xff]
        %v711 = vld [vmem:[#allocation9 + $0x758] sm:$0xff]
        %v712 = vld [vmem:[#allocation9 + $0x760] sm:$0xff]
        %v713 = vld [vmem:[#allocation9 + $0x768] sm:$0xff]
        %v714 = vld [vmem:[#allocation9 + $0x770] sm:$0xff]
        %v715 = vld [vmem:[#allocation9 + $0x778] sm:$0xff]
        %v716 = vld [vmem:[#allocation9 + $0x780] sm:$0xff]
        %v717 = vld [vmem:[#allocation9 + $0x788] sm:$0xff]
        %v718 = vld [vmem:[#allocation9 + $0x790] sm:$0xff]
        %v719 = vld [vmem:[#allocation9 + $0x798] sm:$0xff]
        %v720 = vld [vmem:[#allocation9 + $0x7a0] sm:$0xff]
        %v721 = vld [vmem:[#allocation9 + $0x7a8] sm:$0xff]
        %v722 = vld [vmem:[#allocation9 + $0x7b0] sm:$0xff]
        %v723 = vld [vmem:[#allocation9 + $0x7b8] sm:$0xff]
        %v724 = vld [vmem:[#allocation9 + $0x7c0] sm:$0xff]
        %v725 = vld [vmem:[#allocation9 + $0x7c8] sm:$0xff]
        %v726 = vld [vmem:[#allocation9 + $0x7d0] sm:$0xff]
        %v727 = vld [vmem:[#allocation9 + $0x7d8] sm:$0xff]
        %v728 = vld [vmem:[#allocation9 + $0x7e0] sm:$0xff]
        %v729 = vld [vmem:[#allocation9 + $0x7e8] sm:$0xff]
        %v730 = vld [vmem:[#allocation9 + $0x7f0] sm:$0xff]
        %v731 = vld [vmem:[#allocation9 + $0x7f8] sm:$0xff]
        %v732 = vld [vmem:[%s5] sm:$0x3]
        %v733 = vld [vmem:[%s404] sm:$0xff]
        %v734 = vld [vmem:[%s404 + $0x8] sm:$0xff]
        %v735 = vld [vmem:[%s404 + $0x10] sm:$0xff]
        %v736 = vld [vmem:[%s404 + $0x18] sm:$0xff]
        %v737 = vld [vmem:[%s404 + $0x20] sm:$0xff]
        %v738 = vld [vmem:[%s404 + $0x28] sm:$0xff]
        %v739 = vld [vmem:[%s404 + $0x30] sm:$0xff]
        %v740 = vld [vmem:[%s404 + $0x38] sm:$0xff]
        %v742 = vlaneseq
        %v743 = vshrl.u32 %v742, 7
        %v744 = vsub.s32 0, %v743
        %v745 = vrot.slane %v732, %v744
        %v746 = vlaneseq
        %v747 = vshrl.u32 %v746, 7
        %v748 = vsub.s32 1, %v747
        %v749 = vrot.slane %v732, %v748
        %v760 = vunpack.c.l.b16 %v733
        %v761 = vunpack.c.h.b16 %v733
        %v762 = vunpack.c.l.b16 %v734
        %v763 = vunpack.c.h.b16 %v734
        %v764 = vunpack.c.l.b16 %v735
        %v765 = vunpack.c.h.b16 %v735
        %v766 = vunpack.c.l.b16 %v736
        %v767 = vunpack.c.h.b16 %v736
        %v768 = vunpack.c.l.b16 %v737
        %v769 = vunpack.c.h.b16 %v737
        %v770 = vunpack.c.l.b16 %v738
        %v771 = vunpack.c.h.b16 %v738
        %v772 = vunpack.c.l.b16 %v739
        %v773 = vunpack.c.h.b16 %v739
        %v774 = vunpack.c.l.b16 %v740
        %v775 = vunpack.c.h.b16 %v740
        %v776 = vpack.c.b16 %v760, %v760
        %v777 = vpack.c.b16 %v761, %v761
        %v778 = vpack.c.b16 %v762, %v762
        %v779 = vpack.c.b16 %v763, %v763
        %v780 = vpack.c.b16 %v764, %v764
        %v781 = vpack.c.b16 %v765, %v765
        %v782 = vpack.c.b16 %v766, %v766
        %v783 = vpack.c.b16 %v767, %v767
        %v784 = vpack.c.b16 %v768, %v768
        %v785 = vpack.c.b16 %v769, %v769
        %v786 = vpack.c.b16 %v770, %v770
        %v787 = vpack.c.b16 %v771, %v771
        %v788 = vpack.c.b16 %v772, %v772
        %v789 = vpack.c.b16 %v773, %v773
        %v790 = vpack.c.b16 %v774, %v774
        %v791 = vpack.c.b16 %v775, %v775
        %v1064 = vunpack.c.l.b16 %v476
        %v1065 = vunpack.c.h.b16 %v476
        %v1066 = vunpack.c.l.b16 %v477
        %v1067 = vunpack.c.h.b16 %v477
        %v1068 = vunpack.c.l.b16 %v478
        %v1069 = vunpack.c.h.b16 %v478
        %v1070 = vunpack.c.l.b16 %v479
        %v1071 = vunpack.c.h.b16 %v479
        %v1072 = vunpack.c.l.b16 %v480
        %v1073 = vunpack.c.h.b16 %v480
        %v1074 = vunpack.c.l.b16 %v481
        %v1075 = vunpack.c.h.b16 %v481
        %v1076 = vunpack.c.l.b16 %v482
        %v1077 = vunpack.c.h.b16 %v482
        %v1078 = vunpack.c.l.b16 %v483
        %v1079 = vunpack.c.h.b16 %v483
        %v1080 = vunpack.c.l.b16 %v484
        %v1081 = vunpack.c.h.b16 %v484
        %v1082 = vunpack.c.l.b16 %v485
        %v1083 = vunpack.c.h.b16 %v485
        %v1084 = vunpack.c.l.b16 %v486
        %v1085 = vunpack.c.h.b16 %v486
        %v1086 = vunpack.c.l.b16 %v487
        %v1087 = vunpack.c.h.b16 %v487
        %v1088 = vunpack.c.l.b16 %v488
        %v1089 = vunpack.c.h.b16 %v488
        %v1090 = vunpack.c.l.b16 %v489
        %v1091 = vunpack.c.h.b16 %v489
        %v1092 = vunpack.c.l.b16 %v490
        %v1093 = vunpack.c.h.b16 %v490
        %v1094 = vunpack.c.l.b16 %v491
        %v1095 = vunpack.c.h.b16 %v491
        %v1096 = vunpack.c.l.b16 %v492
        %v1097 = vunpack.c.h.b16 %v492
        %v1098 = vunpack.c.l.b16 %v493
        %v1099 = vunpack.c.h.b16 %v493
        %v1100 = vunpack.c.l.b16 %v494
        %v1101 = vunpack.c.h.b16 %v494
        %v1102 = vunpack.c.l.b16 %v495
        %v1103 = vunpack.c.h.b16 %v495
        %v1104 = vunpack.c.l.b16 %v496
        %v1105 = vunpack.c.h.b16 %v496
        %v1106 = vunpack.c.l.b16 %v497
        %v1107 = vunpack.c.h.b16 %v497
        %v1108 = vunpack.c.l.b16 %v498
        %v1109 = vunpack.c.h.b16 %v498
        %v1110 = vunpack.c.l.b16 %v499
        %v1111 = vunpack.c.h.b16 %v499
        %v1112 = vunpack.c.l.b16 %v500
        %v1113 = vunpack.c.h.b16 %v500
        %v1114 = vunpack.c.l.b16 %v501
        %v1115 = vunpack.c.h.b16 %v501
        %v1116 = vunpack.c.l.b16 %v502
        %v1117 = vunpack.c.h.b16 %v502
        %v1118 = vunpack.c.l.b16 %v503
        %v1119 = vunpack.c.h.b16 %v503
        %v1120 = vunpack.c.l.b16 %v504
        %v1121 = vunpack.c.h.b16 %v504
        %v1122 = vunpack.c.l.b16 %v505
        %v1123 = vunpack.c.h.b16 %v505
        %v1124 = vunpack.c.l.b16 %v506
        %v1125 = vunpack.c.h.b16 %v506
        %v1126 = vunpack.c.l.b16 %v507
        %v1127 = vunpack.c.h.b16 %v507
        %v1128 = vunpack.c.l.b16 %v508
        %v1129 = vunpack.c.h.b16 %v508
        %v1130 = vunpack.c.l.b16 %v509
        %v1131 = vunpack.c.h.b16 %v509
        %v1132 = vunpack.c.l.b16 %v510
        %v1133 = vunpack.c.h.b16 %v510
        %v1134 = vunpack.c.l.b16 %v511
        %v1135 = vunpack.c.h.b16 %v511
        %v1136 = vunpack.c.l.b16 %v512
        %v1137 = vunpack.c.h.b16 %v512
        %v1138 = vunpack.c.l.b16 %v513
        %v1139 = vunpack.c.h.b16 %v513
        %v1140 = vunpack.c.l.b16 %v514
        %v1141 = vunpack.c.h.b16 %v514
        %v1142 = vunpack.c.l.b16 %v515
        %v1143 = vunpack.c.h.b16 %v515
        %v1144 = vunpack.c.l.b16 %v516
        %v1145 = vunpack.c.h.b16 %v516
        %v1146 = vunpack.c.l.b16 %v517
        %v1147 = vunpack.c.h.b16 %v517
        %v1148 = vunpack.c.l.b16 %v518
        %v1149 = vunpack.c.h.b16 %v518
        %v1150 = vunpack.c.l.b16 %v519
        %v1151 = vunpack.c.h.b16 %v519
        %v1152 = vunpack.c.l.b16 %v520
        %v1153 = vunpack.c.h.b16 %v520
        %v1154 = vunpack.c.l.b16 %v521
        %v1155 = vunpack.c.h.b16 %v521
        %v1156 = vunpack.c.l.b16 %v522
        %v1157 = vunpack.c.h.b16 %v522
        %v1158 = vunpack.c.l.b16 %v523
        %v1159 = vunpack.c.h.b16 %v523
        %v1160 = vunpack.c.l.b16 %v524
        %v1161 = vunpack.c.h.b16 %v524
        %v1162 = vunpack.c.l.b16 %v525
        %v1163 = vunpack.c.h.b16 %v525
        %v1164 = vunpack.c.l.b16 %v526
        %v1165 = vunpack.c.h.b16 %v526
        %v1166 = vunpack.c.l.b16 %v527
        %v1167 = vunpack.c.h.b16 %v527
        %v1168 = vunpack.c.l.b16 %v528
        %v1169 = vunpack.c.h.b16 %v528
        %v1170 = vunpack.c.l.b16 %v529
        %v1171 = vunpack.c.h.b16 %v529
        %v1172 = vunpack.c.l.b16 %v530
        %v1173 = vunpack.c.h.b16 %v530
        %v1174 = vunpack.c.l.b16 %v531
        %v1175 = vunpack.c.h.b16 %v531
        %v1176 = vunpack.c.l.b16 %v532
        %v1177 = vunpack.c.h.b16 %v532
        %v1178 = vunpack.c.l.b16 %v533
        %v1179 = vunpack.c.h.b16 %v533
        %v1180 = vunpack.c.l.b16 %v534
        %v1181 = vunpack.c.h.b16 %v534
        %v1182 = vunpack.c.l.b16 %v535
        %v1183 = vunpack.c.h.b16 %v535
        %v1184 = vunpack.c.l.b16 %v536
        %v1185 = vunpack.c.h.b16 %v536
        %v1186 = vunpack.c.l.b16 %v537
        %v1187 = vunpack.c.h.b16 %v537
        %v1188 = vunpack.c.l.b16 %v538
        %v1189 = vunpack.c.h.b16 %v538
        %v1190 = vunpack.c.l.b16 %v539
        %v1191 = vunpack.c.h.b16 %v539
        %v1192 = vunpack.c.l.b16 %v540
        %v1193 = vunpack.c.h.b16 %v540
        %v1194 = vunpack.c.l.b16 %v541
        %v1195 = vunpack.c.h.b16 %v541
        %v1196 = vunpack.c.l.b16 %v542
        %v1197 = vunpack.c.h.b16 %v542
        %v1198 = vunpack.c.l.b16 %v543
        %v1199 = vunpack.c.h.b16 %v543
        %v1200 = vunpack.c.l.b16 %v544
        %v1201 = vunpack.c.h.b16 %v544
        %v1202 = vunpack.c.l.b16 %v545
        %v1203 = vunpack.c.h.b16 %v545
        %v1204 = vunpack.c.l.b16 %v546
        %v1205 = vunpack.c.h.b16 %v546
        %v1206 = vunpack.c.l.b16 %v547
        %v1207 = vunpack.c.h.b16 %v547
        %v1208 = vunpack.c.l.b16 %v548
        %v1209 = vunpack.c.h.b16 %v548
        %v1210 = vunpack.c.l.b16 %v549
        %v1211 = vunpack.c.h.b16 %v549
        %v1212 = vunpack.c.l.b16 %v550
        %v1213 = vunpack.c.h.b16 %v550
        %v1214 = vunpack.c.l.b16 %v551
        %v1215 = vunpack.c.h.b16 %v551
        %v1216 = vunpack.c.l.b16 %v552
        %v1217 = vunpack.c.h.b16 %v552
        %v1218 = vunpack.c.l.b16 %v553
        %v1219 = vunpack.c.h.b16 %v553
        %v1220 = vunpack.c.l.b16 %v554
        %v1221 = vunpack.c.h.b16 %v554
        %v1222 = vunpack.c.l.b16 %v555
        %v1223 = vunpack.c.h.b16 %v555
        %v1224 = vunpack.c.l.b16 %v556
        %v1225 = vunpack.c.h.b16 %v556
        %v1226 = vunpack.c.l.b16 %v557
        %v1227 = vunpack.c.h.b16 %v557
        %v1228 = vunpack.c.l.b16 %v558
        %v1229 = vunpack.c.h.b16 %v558
        %v1230 = vunpack.c.l.b16 %v559
        %v1231 = vunpack.c.h.b16 %v559
        %v1232 = vunpack.c.l.b16 %v560
        %v1233 = vunpack.c.h.b16 %v560
        %v1234 = vunpack.c.l.b16 %v561
        %v1235 = vunpack.c.h.b16 %v561
        %v1236 = vunpack.c.l.b16 %v562
        %v1237 = vunpack.c.h.b16 %v562
        %v1238 = vunpack.c.l.b16 %v563
        %v1239 = vunpack.c.h.b16 %v563
        %v1240 = vunpack.c.l.b16 %v564
        %v1241 = vunpack.c.h.b16 %v564
        %v1242 = vunpack.c.l.b16 %v565
        %v1243 = vunpack.c.h.b16 %v565
        %v1244 = vunpack.c.l.b16 %v566
        %v1245 = vunpack.c.h.b16 %v566
        %v1246 = vunpack.c.l.b16 %v567
        %v1247 = vunpack.c.h.b16 %v567
        %v1248 = vunpack.c.l.b16 %v568
        %v1249 = vunpack.c.h.b16 %v568
        %v1250 = vunpack.c.l.b16 %v569
        %v1251 = vunpack.c.h.b16 %v569
        %v1252 = vunpack.c.l.b16 %v570
        %v1253 = vunpack.c.h.b16 %v570
        %v1254 = vunpack.c.l.b16 %v571
        %v1255 = vunpack.c.h.b16 %v571
        %v1256 = vunpack.c.l.b16 %v572
        %v1257 = vunpack.c.h.b16 %v572
        %v1258 = vunpack.c.l.b16 %v573
        %v1259 = vunpack.c.h.b16 %v573
        %v1260 = vunpack.c.l.b16 %v574
        %v1261 = vunpack.c.h.b16 %v574
        %v1262 = vunpack.c.l.b16 %v575
        %v1263 = vunpack.c.h.b16 %v575
        %v1264 = vunpack.c.l.b16 %v576
        %v1265 = vunpack.c.h.b16 %v576
        %v1266 = vunpack.c.l.b16 %v577
        %v1267 = vunpack.c.h.b16 %v577
        %v1268 = vunpack.c.l.b16 %v578
        %v1269 = vunpack.c.h.b16 %v578
        %v1270 = vunpack.c.l.b16 %v579
        %v1271 = vunpack.c.h.b16 %v579
        %v1272 = vunpack.c.l.b16 %v580
        %v1273 = vunpack.c.h.b16 %v580
        %v1274 = vunpack.c.l.b16 %v581
        %v1275 = vunpack.c.h.b16 %v581
        %v1276 = vunpack.c.l.b16 %v582
        %v1277 = vunpack.c.h.b16 %v582
        %v1278 = vunpack.c.l.b16 %v583
        %v1279 = vunpack.c.h.b16 %v583
        %v1280 = vunpack.c.l.b16 %v584
        %v1281 = vunpack.c.h.b16 %v584
        %v1282 = vunpack.c.l.b16 %v585
        %v1283 = vunpack.c.h.b16 %v585
        %v1284 = vunpack.c.l.b16 %v586
        %v1285 = vunpack.c.h.b16 %v586
        %v1286 = vunpack.c.l.b16 %v587
        %v1287 = vunpack.c.h.b16 %v587
        %v1288 = vunpack.c.l.b16 %v588
        %v1289 = vunpack.c.h.b16 %v588
        %v1290 = vunpack.c.l.b16 %v589
        %v1291 = vunpack.c.h.b16 %v589
        %v1292 = vunpack.c.l.b16 %v590
        %v1293 = vunpack.c.h.b16 %v590
        %v1294 = vunpack.c.l.b16 %v591
        %v1295 = vunpack.c.h.b16 %v591
        %v1296 = vunpack.c.l.b16 %v592
        %v1297 = vunpack.c.h.b16 %v592
        %v1298 = vunpack.c.l.b16 %v593
        %v1299 = vunpack.c.h.b16 %v593
        %v1300 = vunpack.c.l.b16 %v594
        %v1301 = vunpack.c.h.b16 %v594
        %v1302 = vunpack.c.l.b16 %v595
        %v1303 = vunpack.c.h.b16 %v595
        %v1304 = vunpack.c.l.b16 %v596
        %v1305 = vunpack.c.h.b16 %v596
        %v1306 = vunpack.c.l.b16 %v597
        %v1307 = vunpack.c.h.b16 %v597
        %v1308 = vunpack.c.l.b16 %v598
        %v1309 = vunpack.c.h.b16 %v598
        %v1310 = vunpack.c.l.b16 %v599
        %v1311 = vunpack.c.h.b16 %v599
        %v1312 = vunpack.c.l.b16 %v600
        %v1313 = vunpack.c.h.b16 %v600
        %v1314 = vunpack.c.l.b16 %v601
        %v1315 = vunpack.c.h.b16 %v601
        %v1316 = vunpack.c.l.b16 %v602
        %v1317 = vunpack.c.h.b16 %v602
        %v1318 = vunpack.c.l.b16 %v603
        %v1319 = vunpack.c.h.b16 %v603
        %v1320 = vunpack.c.l.b16 %v604
        %v1321 = vunpack.c.h.b16 %v604
        %v1322 = vunpack.c.l.b16 %v605
        %v1323 = vunpack.c.h.b16 %v605
        %v1324 = vunpack.c.l.b16 %v606
        %v1325 = vunpack.c.h.b16 %v606
        %v1326 = vunpack.c.l.b16 %v607
        %v1327 = vunpack.c.h.b16 %v607
        %v1328 = vunpack.c.l.b16 %v608
        %v1329 = vunpack.c.h.b16 %v608
        %v1330 = vunpack.c.l.b16 %v609
        %v1331 = vunpack.c.h.b16 %v609
        %v1332 = vunpack.c.l.b16 %v610
        %v1333 = vunpack.c.h.b16 %v610
        %v1334 = vunpack.c.l.b16 %v611
        %v1335 = vunpack.c.h.b16 %v611
        %v1336 = vunpack.c.l.b16 %v612
        %v1337 = vunpack.c.h.b16 %v612
        %v1338 = vunpack.c.l.b16 %v613
        %v1339 = vunpack.c.h.b16 %v613
        %v1340 = vunpack.c.l.b16 %v614
        %v1341 = vunpack.c.h.b16 %v614
        %v1342 = vunpack.c.l.b16 %v615
        %v1343 = vunpack.c.h.b16 %v615
        %v1344 = vunpack.c.l.b16 %v616
        %v1345 = vunpack.c.h.b16 %v616
        %v1346 = vunpack.c.l.b16 %v617
        %v1347 = vunpack.c.h.b16 %v617
        %v1348 = vunpack.c.l.b16 %v618
        %v1349 = vunpack.c.h.b16 %v618
        %v1350 = vunpack.c.l.b16 %v619
        %v1351 = vunpack.c.h.b16 %v619
        %v1352 = vunpack.c.l.b16 %v620
        %v1353 = vunpack.c.h.b16 %v620
        %v1354 = vunpack.c.l.b16 %v621
        %v1355 = vunpack.c.h.b16 %v621
        %v1356 = vunpack.c.l.b16 %v622
        %v1357 = vunpack.c.h.b16 %v622
        %v1358 = vunpack.c.l.b16 %v623
        %v1359 = vunpack.c.h.b16 %v623
        %v1360 = vunpack.c.l.b16 %v624
        %v1361 = vunpack.c.h.b16 %v624
        %v1362 = vunpack.c.l.b16 %v625
        %v1363 = vunpack.c.h.b16 %v625
        %v1364 = vunpack.c.l.b16 %v626
        %v1365 = vunpack.c.h.b16 %v626
        %v1366 = vunpack.c.l.b16 %v627
        %v1367 = vunpack.c.h.b16 %v627
        %v1368 = vunpack.c.l.b16 %v628
        %v1369 = vunpack.c.h.b16 %v628
        %v1370 = vunpack.c.l.b16 %v629
        %v1371 = vunpack.c.h.b16 %v629
        %v1372 = vunpack.c.l.b16 %v630
        %v1373 = vunpack.c.h.b16 %v630
        %v1374 = vunpack.c.l.b16 %v631
        %v1375 = vunpack.c.h.b16 %v631
        %v1376 = vunpack.c.l.b16 %v632
        %v1377 = vunpack.c.h.b16 %v632
        %v1378 = vunpack.c.l.b16 %v633
        %v1379 = vunpack.c.h.b16 %v633
        %v1380 = vunpack.c.l.b16 %v634
        %v1381 = vunpack.c.h.b16 %v634
        %v1382 = vunpack.c.l.b16 %v635
        %v1383 = vunpack.c.h.b16 %v635
        %v1384 = vunpack.c.l.b16 %v636
        %v1385 = vunpack.c.h.b16 %v636
        %v1386 = vunpack.c.l.b16 %v637
        %v1387 = vunpack.c.h.b16 %v637
        %v1388 = vunpack.c.l.b16 %v638
        %v1389 = vunpack.c.h.b16 %v638
        %v1390 = vunpack.c.l.b16 %v639
        %v1391 = vunpack.c.h.b16 %v639
        %v1392 = vunpack.c.l.b16 %v640
        %v1393 = vunpack.c.h.b16 %v640
        %v1394 = vunpack.c.l.b16 %v641
        %v1395 = vunpack.c.h.b16 %v641
        %v1396 = vunpack.c.l.b16 %v642
        %v1397 = vunpack.c.h.b16 %v642
        %v1398 = vunpack.c.l.b16 %v643
        %v1399 = vunpack.c.h.b16 %v643
        %v1400 = vunpack.c.l.b16 %v644
        %v1401 = vunpack.c.h.b16 %v644
        %v1402 = vunpack.c.l.b16 %v645
        %v1403 = vunpack.c.h.b16 %v645
        %v1404 = vunpack.c.l.b16 %v646
        %v1405 = vunpack.c.h.b16 %v646
        %v1406 = vunpack.c.l.b16 %v647
        %v1407 = vunpack.c.h.b16 %v647
        %v1408 = vunpack.c.l.b16 %v648
        %v1409 = vunpack.c.h.b16 %v648
        %v1410 = vunpack.c.l.b16 %v649
        %v1411 = vunpack.c.h.b16 %v649
        %v1412 = vunpack.c.l.b16 %v650
        %v1413 = vunpack.c.h.b16 %v650
        %v1414 = vunpack.c.l.b16 %v651
        %v1415 = vunpack.c.h.b16 %v651
        %v1416 = vunpack.c.l.b16 %v652
        %v1417 = vunpack.c.h.b16 %v652
        %v1418 = vunpack.c.l.b16 %v653
        %v1419 = vunpack.c.h.b16 %v653
        %v1420 = vunpack.c.l.b16 %v654
        %v1421 = vunpack.c.h.b16 %v654
        %v1422 = vunpack.c.l.b16 %v655
        %v1423 = vunpack.c.h.b16 %v655
        %v1424 = vunpack.c.l.b16 %v656
        %v1425 = vunpack.c.h.b16 %v656
        %v1426 = vunpack.c.l.b16 %v657
        %v1427 = vunpack.c.h.b16 %v657
        %v1428 = vunpack.c.l.b16 %v658
        %v1429 = vunpack.c.h.b16 %v658
        %v1430 = vunpack.c.l.b16 %v659
        %v1431 = vunpack.c.h.b16 %v659
        %v1432 = vunpack.c.l.b16 %v660
        %v1433 = vunpack.c.h.b16 %v660
        %v1434 = vunpack.c.l.b16 %v661
        %v1435 = vunpack.c.h.b16 %v661
        %v1436 = vunpack.c.l.b16 %v662
        %v1437 = vunpack.c.h.b16 %v662
        %v1438 = vunpack.c.l.b16 %v663
        %v1439 = vunpack.c.h.b16 %v663
        %v1440 = vunpack.c.l.b16 %v664
        %v1441 = vunpack.c.h.b16 %v664
        %v1442 = vunpack.c.l.b16 %v665
        %v1443 = vunpack.c.h.b16 %v665
        %v1444 = vunpack.c.l.b16 %v666
        %v1445 = vunpack.c.h.b16 %v666
        %v1446 = vunpack.c.l.b16 %v667
        %v1447 = vunpack.c.h.b16 %v667
        %v1448 = vunpack.c.l.b16 %v668
        %v1449 = vunpack.c.h.b16 %v668
        %v1450 = vunpack.c.l.b16 %v669
        %v1451 = vunpack.c.h.b16 %v669
        %v1452 = vunpack.c.l.b16 %v670
        %v1453 = vunpack.c.h.b16 %v670
        %v1454 = vunpack.c.l.b16 %v671
        %v1455 = vunpack.c.h.b16 %v671
        %v1456 = vunpack.c.l.b16 %v672
        %v1457 = vunpack.c.h.b16 %v672
        %v1458 = vunpack.c.l.b16 %v673
        %v1459 = vunpack.c.h.b16 %v673
        %v1460 = vunpack.c.l.b16 %v674
        %v1461 = vunpack.c.h.b16 %v674
        %v1462 = vunpack.c.l.b16 %v675
        %v1463 = vunpack.c.h.b16 %v675
        %v1464 = vunpack.c.l.b16 %v676
        %v1465 = vunpack.c.h.b16 %v676
        %v1466 = vunpack.c.l.b16 %v677
        %v1467 = vunpack.c.h.b16 %v677
        %v1468 = vunpack.c.l.b16 %v678
        %v1469 = vunpack.c.h.b16 %v678
        %v1470 = vunpack.c.l.b16 %v679
        %v1471 = vunpack.c.h.b16 %v679
        %v1472 = vunpack.c.l.b16 %v680
        %v1473 = vunpack.c.h.b16 %v680
        %v1474 = vunpack.c.l.b16 %v681
        %v1475 = vunpack.c.h.b16 %v681
        %v1476 = vunpack.c.l.b16 %v682
        %v1477 = vunpack.c.h.b16 %v682
        %v1478 = vunpack.c.l.b16 %v683
        %v1479 = vunpack.c.h.b16 %v683
        %v1480 = vunpack.c.l.b16 %v684
        %v1481 = vunpack.c.h.b16 %v684
        %v1482 = vunpack.c.l.b16 %v685
        %v1483 = vunpack.c.h.b16 %v685
        %v1484 = vunpack.c.l.b16 %v686
        %v1485 = vunpack.c.h.b16 %v686
        %v1486 = vunpack.c.l.b16 %v687
        %v1487 = vunpack.c.h.b16 %v687
        %v1488 = vunpack.c.l.b16 %v688
        %v1489 = vunpack.c.h.b16 %v688
        %v1490 = vunpack.c.l.b16 %v689
        %v1491 = vunpack.c.h.b16 %v689
        %v1492 = vunpack.c.l.b16 %v690
        %v1493 = vunpack.c.h.b16 %v690
        %v1494 = vunpack.c.l.b16 %v691
        %v1495 = vunpack.c.h.b16 %v691
        %v1496 = vunpack.c.l.b16 %v692
        %v1497 = vunpack.c.h.b16 %v692
        %v1498 = vunpack.c.l.b16 %v693
        %v1499 = vunpack.c.h.b16 %v693
        %v1500 = vunpack.c.l.b16 %v694
        %v1501 = vunpack.c.h.b16 %v694
        %v1502 = vunpack.c.l.b16 %v695
        %v1503 = vunpack.c.h.b16 %v695
        %v1504 = vunpack.c.l.b16 %v696
        %v1505 = vunpack.c.h.b16 %v696
        %v1506 = vunpack.c.l.b16 %v697
        %v1507 = vunpack.c.h.b16 %v697
        %v1508 = vunpack.c.l.b16 %v698
        %v1509 = vunpack.c.h.b16 %v698
        %v1510 = vunpack.c.l.b16 %v699
        %v1511 = vunpack.c.h.b16 %v699
        %v1512 = vunpack.c.l.b16 %v700
        %v1513 = vunpack.c.h.b16 %v700
        %v1514 = vunpack.c.l.b16 %v701
        %v1515 = vunpack.c.h.b16 %v701
        %v1516 = vunpack.c.l.b16 %v702
        %v1517 = vunpack.c.h.b16 %v702
        %v1518 = vunpack.c.l.b16 %v703
        %v1519 = vunpack.c.h.b16 %v703
        %v1520 = vunpack.c.l.b16 %v704
        %v1521 = vunpack.c.h.b16 %v704
        %v1522 = vunpack.c.l.b16 %v705
        %v1523 = vunpack.c.h.b16 %v705
        %v1524 = vunpack.c.l.b16 %v706
        %v1525 = vunpack.c.h.b16 %v706
        %v1526 = vunpack.c.l.b16 %v707
        %v1527 = vunpack.c.h.b16 %v707
        %v1528 = vunpack.c.l.b16 %v708
        %v1529 = vunpack.c.h.b16 %v708
        %v1530 = vunpack.c.l.b16 %v709
        %v1531 = vunpack.c.h.b16 %v709
        %v1532 = vunpack.c.l.b16 %v710
        %v1533 = vunpack.c.h.b16 %v710
        %v1534 = vunpack.c.l.b16 %v711
        %v1535 = vunpack.c.h.b16 %v711
        %v1536 = vunpack.c.l.b16 %v712
        %v1537 = vunpack.c.h.b16 %v712
        %v1538 = vunpack.c.l.b16 %v713
        %v1539 = vunpack.c.h.b16 %v713
        %v1540 = vunpack.c.l.b16 %v714
        %v1541 = vunpack.c.h.b16 %v714
        %v1542 = vunpack.c.l.b16 %v715
        %v1543 = vunpack.c.h.b16 %v715
        %v1544 = vunpack.c.l.b16 %v716
        %v1545 = vunpack.c.h.b16 %v716
        %v1546 = vunpack.c.l.b16 %v717
        %v1547 = vunpack.c.h.b16 %v717
        %v1548 = vunpack.c.l.b16 %v718
        %v1549 = vunpack.c.h.b16 %v718
        %v1550 = vunpack.c.l.b16 %v719
        %v1551 = vunpack.c.h.b16 %v719
        %v1552 = vunpack.c.l.b16 %v720
        %v1553 = vunpack.c.h.b16 %v720
        %v1554 = vunpack.c.l.b16 %v721
        %v1555 = vunpack.c.h.b16 %v721
        %v1556 = vunpack.c.l.b16 %v722
        %v1557 = vunpack.c.h.b16 %v722
        %v1558 = vunpack.c.l.b16 %v723
        %v1559 = vunpack.c.h.b16 %v723
        %v1560 = vunpack.c.l.b16 %v724
        %v1561 = vunpack.c.h.b16 %v724
        %v1562 = vunpack.c.l.b16 %v725
        %v1563 = vunpack.c.h.b16 %v725
        %v1564 = vunpack.c.l.b16 %v726
        %v1565 = vunpack.c.h.b16 %v726
        %v1566 = vunpack.c.l.b16 %v727
        %v1567 = vunpack.c.h.b16 %v727
        %v1568 = vunpack.c.l.b16 %v728
        %v1569 = vunpack.c.h.b16 %v728
        %v1570 = vunpack.c.l.b16 %v729
        %v1571 = vunpack.c.h.b16 %v729
        %v1572 = vunpack.c.l.b16 %v730
        %v1573 = vunpack.c.h.b16 %v730
        %v1574 = vunpack.c.l.b16 %v731
        %v1575 = vunpack.c.h.b16 %v731
        %v1576 = vpack.c.b16 %v1066, %v1064
        %v1577 = vpack.c.b16 %v1067, %v1065
        %v1578 = vpack.c.b16 %v1070, %v1068
        %v1579 = vpack.c.b16 %v1071, %v1069
        %v1580 = vpack.c.b16 %v1074, %v1072
        %v1581 = vpack.c.b16 %v1075, %v1073
        %v1582 = vpack.c.b16 %v1078, %v1076
        %v1583 = vpack.c.b16 %v1079, %v1077
        %v1584 = vpack.c.b16 %v1082, %v1080
        %v1585 = vpack.c.b16 %v1083, %v1081
        %v1586 = vpack.c.b16 %v1086, %v1084
        %v1587 = vpack.c.b16 %v1087, %v1085
        %v1588 = vpack.c.b16 %v1090, %v1088
        %v1589 = vpack.c.b16 %v1091, %v1089
        %v1590 = vpack.c.b16 %v1094, %v1092
        %v1591 = vpack.c.b16 %v1095, %v1093
        %v1592 = vpack.c.b16 %v1098, %v1096
        %v1593 = vpack.c.b16 %v1099, %v1097
        %v1594 = vpack.c.b16 %v1102, %v1100
        %v1595 = vpack.c.b16 %v1103, %v1101
        %v1596 = vpack.c.b16 %v1106, %v1104
        %v1597 = vpack.c.b16 %v1107, %v1105
        %v1598 = vpack.c.b16 %v1110, %v1108
        %v1599 = vpack.c.b16 %v1111, %v1109
        %v1600 = vpack.c.b16 %v1114, %v1112
        %v1601 = vpack.c.b16 %v1115, %v1113
        %v1602 = vpack.c.b16 %v1118, %v1116
        %v1603 = vpack.c.b16 %v1119, %v1117
        %v1604 = vpack.c.b16 %v1122, %v1120
        %v1605 = vpack.c.b16 %v1123, %v1121
        %v1606 = vpack.c.b16 %v1126, %v1124
        %v1607 = vpack.c.b16 %v1127, %v1125
        %v1608 = vpack.c.b16 %v1130, %v1128
        %v1609 = vpack.c.b16 %v1131, %v1129
        %v1610 = vpack.c.b16 %v1134, %v1132
        %v1611 = vpack.c.b16 %v1135, %v1133
        %v1612 = vpack.c.b16 %v1138, %v1136
        %v1613 = vpack.c.b16 %v1139, %v1137
        %v1614 = vpack.c.b16 %v1142, %v1140
        %v1615 = vpack.c.b16 %v1143, %v1141
        %v1616 = vpack.c.b16 %v1146, %v1144
        %v1617 = vpack.c.b16 %v1147, %v1145
        %v1618 = vpack.c.b16 %v1150, %v1148
        %v1619 = vpack.c.b16 %v1151, %v1149
        %v1620 = vpack.c.b16 %v1154, %v1152
        %v1621 = vpack.c.b16 %v1155, %v1153
        %v1622 = vpack.c.b16 %v1158, %v1156
        %v1623 = vpack.c.b16 %v1159, %v1157
        %v1624 = vpack.c.b16 %v1162, %v1160
        %v1625 = vpack.c.b16 %v1163, %v1161
        %v1626 = vpack.c.b16 %v1166, %v1164
        %v1627 = vpack.c.b16 %v1167, %v1165
        %v1628 = vpack.c.b16 %v1170, %v1168
        %v1629 = vpack.c.b16 %v1171, %v1169
        %v1630 = vpack.c.b16 %v1174, %v1172
        %v1631 = vpack.c.b16 %v1175, %v1173
        %v1632 = vpack.c.b16 %v1178, %v1176
        %v1633 = vpack.c.b16 %v1179, %v1177
        %v1634 = vpack.c.b16 %v1182, %v1180
        %v1635 = vpack.c.b16 %v1183, %v1181
        %v1636 = vpack.c.b16 %v1186, %v1184
        %v1637 = vpack.c.b16 %v1187, %v1185
        %v1638 = vpack.c.b16 %v1190, %v1188
        %v1639 = vpack.c.b16 %v1191, %v1189
        %v1640 = vpack.c.b16 %v1194, %v1192
        %v1641 = vpack.c.b16 %v1195, %v1193
        %v1642 = vpack.c.b16 %v1198, %v1196
        %v1643 = vpack.c.b16 %v1199, %v1197
        %v1644 = vpack.c.b16 %v1202, %v1200
        %v1645 = vpack.c.b16 %v1203, %v1201
        %v1646 = vpack.c.b16 %v1206, %v1204
        %v1647 = vpack.c.b16 %v1207, %v1205
        %v1648 = vpack.c.b16 %v1210, %v1208
        %v1649 = vpack.c.b16 %v1211, %v1209
        %v1650 = vpack.c.b16 %v1214, %v1212
        %v1651 = vpack.c.b16 %v1215, %v1213
        %v1652 = vpack.c.b16 %v1218, %v1216
        %v1653 = vpack.c.b16 %v1219, %v1217
        %v1654 = vpack.c.b16 %v1222, %v1220
        %v1655 = vpack.c.b16 %v1223, %v1221
        %v1656 = vpack.c.b16 %v1226, %v1224
        %v1657 = vpack.c.b16 %v1227, %v1225
        %v1658 = vpack.c.b16 %v1230, %v1228
        %v1659 = vpack.c.b16 %v1231, %v1229
        %v1660 = vpack.c.b16 %v1234, %v1232
        %v1661 = vpack.c.b16 %v1235, %v1233
        %v1662 = vpack.c.b16 %v1238, %v1236
        %v1663 = vpack.c.b16 %v1239, %v1237
        %v1664 = vpack.c.b16 %v1242, %v1240
        %v1665 = vpack.c.b16 %v1243, %v1241
        %v1666 = vpack.c.b16 %v1246, %v1244
        %v1667 = vpack.c.b16 %v1247, %v1245
        %v1668 = vpack.c.b16 %v1250, %v1248
        %v1669 = vpack.c.b16 %v1251, %v1249
        %v1670 = vpack.c.b16 %v1254, %v1252
        %v1671 = vpack.c.b16 %v1255, %v1253
        %v1672 = vpack.c.b16 %v1258, %v1256
        %v1673 = vpack.c.b16 %v1259, %v1257
        %v1674 = vpack.c.b16 %v1262, %v1260
        %v1675 = vpack.c.b16 %v1263, %v1261
        %v1676 = vpack.c.b16 %v1266, %v1264
        %v1677 = vpack.c.b16 %v1267, %v1265
        %v1678 = vpack.c.b16 %v1270, %v1268
        %v1679 = vpack.c.b16 %v1271, %v1269
        %v1680 = vpack.c.b16 %v1274, %v1272
        %v1681 = vpack.c.b16 %v1275, %v1273
        %v1682 = vpack.c.b16 %v1278, %v1276
        %v1683 = vpack.c.b16 %v1279, %v1277
        %v1684 = vpack.c.b16 %v1282, %v1280
        %v1685 = vpack.c.b16 %v1283, %v1281
        %v1686 = vpack.c.b16 %v1286, %v1284
        %v1687 = vpack.c.b16 %v1287, %v1285
        %v1688 = vpack.c.b16 %v1290, %v1288
        %v1689 = vpack.c.b16 %v1291, %v1289
        %v1690 = vpack.c.b16 %v1294, %v1292
        %v1691 = vpack.c.b16 %v1295, %v1293
        %v1692 = vpack.c.b16 %v1298, %v1296
        %v1693 = vpack.c.b16 %v1299, %v1297
        %v1694 = vpack.c.b16 %v1302, %v1300
        %v1695 = vpack.c.b16 %v1303, %v1301
        %v1696 = vpack.c.b16 %v1306, %v1304
        %v1697 = vpack.c.b16 %v1307, %v1305
        %v1698 = vpack.c.b16 %v1310, %v1308
        %v1699 = vpack.c.b16 %v1311, %v1309
        %v1700 = vpack.c.b16 %v1314, %v1312
        %v1701 = vpack.c.b16 %v1315, %v1313
        %v1702 = vpack.c.b16 %v1318, %v1316
        %v1703 = vpack.c.b16 %v1319, %v1317
        %v1704 = vpack.c.b16 %v1322, %v1320
        %v1705 = vpack.c.b16 %v1323, %v1321
        %v1706 = vpack.c.b16 %v1326, %v1324
        %v1707 = vpack.c.b16 %v1327, %v1325
        %v1708 = vpack.c.b16 %v1330, %v1328
        %v1709 = vpack.c.b16 %v1331, %v1329
        %v1710 = vpack.c.b16 %v1334, %v1332
        %v1711 = vpack.c.b16 %v1335, %v1333
        %v1712 = vpack.c.b16 %v1338, %v1336
        %v1713 = vpack.c.b16 %v1339, %v1337
        %v1714 = vpack.c.b16 %v1342, %v1340
        %v1715 = vpack.c.b16 %v1343, %v1341
        %v1716 = vpack.c.b16 %v1346, %v1344
        %v1717 = vpack.c.b16 %v1347, %v1345
        %v1718 = vpack.c.b16 %v1350, %v1348
        %v1719 = vpack.c.b16 %v1351, %v1349
        %v1720 = vpack.c.b16 %v1354, %v1352
        %v1721 = vpack.c.b16 %v1355, %v1353
        %v1722 = vpack.c.b16 %v1358, %v1356
        %v1723 = vpack.c.b16 %v1359, %v1357
        %v1724 = vpack.c.b16 %v1362, %v1360
        %v1725 = vpack.c.b16 %v1363, %v1361
        %v1726 = vpack.c.b16 %v1366, %v1364
        %v1727 = vpack.c.b16 %v1367, %v1365
        %v1728 = vpack.c.b16 %v1370, %v1368
        %v1729 = vpack.c.b16 %v1371, %v1369
        %v1730 = vpack.c.b16 %v1374, %v1372
        %v1731 = vpack.c.b16 %v1375, %v1373
        %v1732 = vpack.c.b16 %v1378, %v1376
        %v1733 = vpack.c.b16 %v1379, %v1377
        %v1734 = vpack.c.b16 %v1382, %v1380
        %v1735 = vpack.c.b16 %v1383, %v1381
        %v1736 = vpack.c.b16 %v1386, %v1384
        %v1737 = vpack.c.b16 %v1387, %v1385
        %v1738 = vpack.c.b16 %v1390, %v1388
        %v1739 = vpack.c.b16 %v1391, %v1389
        %v1740 = vpack.c.b16 %v1394, %v1392
        %v1741 = vpack.c.b16 %v1395, %v1393
        %v1742 = vpack.c.b16 %v1398, %v1396
        %v1743 = vpack.c.b16 %v1399, %v1397
        %v1744 = vpack.c.b16 %v1402, %v1400
        %v1745 = vpack.c.b16 %v1403, %v1401
        %v1746 = vpack.c.b16 %v1406, %v1404
        %v1747 = vpack.c.b16 %v1407, %v1405
        %v1748 = vpack.c.b16 %v1410, %v1408
        %v1749 = vpack.c.b16 %v1411, %v1409
        %v1750 = vpack.c.b16 %v1414, %v1412
        %v1751 = vpack.c.b16 %v1415, %v1413
        %v1752 = vpack.c.b16 %v1418, %v1416
        %v1753 = vpack.c.b16 %v1419, %v1417
        %v1754 = vpack.c.b16 %v1422, %v1420
        %v1755 = vpack.c.b16 %v1423, %v1421
        %v1756 = vpack.c.b16 %v1426, %v1424
        %v1757 = vpack.c.b16 %v1427, %v1425
        %v1758 = vpack.c.b16 %v1430, %v1428
        %v1759 = vpack.c.b16 %v1431, %v1429
        %v1760 = vpack.c.b16 %v1434, %v1432
        %v1761 = vpack.c.b16 %v1435, %v1433
        %v1762 = vpack.c.b16 %v1438, %v1436
        %v1763 = vpack.c.b16 %v1439, %v1437
        %v1764 = vpack.c.b16 %v1442, %v1440
        %v1765 = vpack.c.b16 %v1443, %v1441
        %v1766 = vpack.c.b16 %v1446, %v1444
        %v1767 = vpack.c.b16 %v1447, %v1445
        %v1768 = vpack.c.b16 %v1450, %v1448
        %v1769 = vpack.c.b16 %v1451, %v1449
        %v1770 = vpack.c.b16 %v1454, %v1452
        %v1771 = vpack.c.b16 %v1455, %v1453
        %v1772 = vpack.c.b16 %v1458, %v1456
        %v1773 = vpack.c.b16 %v1459, %v1457
        %v1774 = vpack.c.b16 %v1462, %v1460
        %v1775 = vpack.c.b16 %v1463, %v1461
        %v1776 = vpack.c.b16 %v1466, %v1464
        %v1777 = vpack.c.b16 %v1467, %v1465
        %v1778 = vpack.c.b16 %v1470, %v1468
        %v1779 = vpack.c.b16 %v1471, %v1469
        %v1780 = vpack.c.b16 %v1474, %v1472
        %v1781 = vpack.c.b16 %v1475, %v1473
        %v1782 = vpack.c.b16 %v1478, %v1476
        %v1783 = vpack.c.b16 %v1479, %v1477
        %v1784 = vpack.c.b16 %v1482, %v1480
        %v1785 = vpack.c.b16 %v1483, %v1481
        %v1786 = vpack.c.b16 %v1486, %v1484
        %v1787 = vpack.c.b16 %v1487, %v1485
        %v1788 = vpack.c.b16 %v1490, %v1488
        %v1789 = vpack.c.b16 %v1491, %v1489
        %v1790 = vpack.c.b16 %v1494, %v1492
        %v1791 = vpack.c.b16 %v1495, %v1493
        %v1792 = vpack.c.b16 %v1498, %v1496
        %v1793 = vpack.c.b16 %v1499, %v1497
        %v1794 = vpack.c.b16 %v1502, %v1500
        %v1795 = vpack.c.b16 %v1503, %v1501
        %v1796 = vpack.c.b16 %v1506, %v1504
        %v1797 = vpack.c.b16 %v1507, %v1505
        %v1798 = vpack.c.b16 %v1510, %v1508
        %v1799 = vpack.c.b16 %v1511, %v1509
        %v1800 = vpack.c.b16 %v1514, %v1512
        %v1801 = vpack.c.b16 %v1515, %v1513
        %v1802 = vpack.c.b16 %v1518, %v1516
        %v1803 = vpack.c.b16 %v1519, %v1517
        %v1804 = vpack.c.b16 %v1522, %v1520
        %v1805 = vpack.c.b16 %v1523, %v1521
        %v1806 = vpack.c.b16 %v1526, %v1524
        %v1807 = vpack.c.b16 %v1527, %v1525
        %v1808 = vpack.c.b16 %v1530, %v1528
        %v1809 = vpack.c.b16 %v1531, %v1529
        %v1810 = vpack.c.b16 %v1534, %v1532
        %v1811 = vpack.c.b16 %v1535, %v1533
        %v1812 = vpack.c.b16 %v1538, %v1536
        %v1813 = vpack.c.b16 %v1539, %v1537
        %v1814 = vpack.c.b16 %v1542, %v1540
        %v1815 = vpack.c.b16 %v1543, %v1541
        %v1816 = vpack.c.b16 %v1546, %v1544
        %v1817 = vpack.c.b16 %v1547, %v1545
        %v1818 = vpack.c.b16 %v1550, %v1548
        %v1819 = vpack.c.b16 %v1551, %v1549
        %v1820 = vpack.c.b16 %v1554, %v1552
        %v1821 = vpack.c.b16 %v1555, %v1553
        %v1822 = vpack.c.b16 %v1558, %v1556
        %v1823 = vpack.c.b16 %v1559, %v1557
        %v1824 = vpack.c.b16 %v1562, %v1560
        %v1825 = vpack.c.b16 %v1563, %v1561
        %v1826 = vpack.c.b16 %v1566, %v1564
        %v1827 = vpack.c.b16 %v1567, %v1565
        %v1828 = vpack.c.b16 %v1570, %v1568
        %v1829 = vpack.c.b16 %v1571, %v1569
        %v1830 = vpack.c.b16 %v1574, %v1572
        %v1831 = vpack.c.b16 %v1575, %v1573
        %2088 = vmatprep.subr.bf16.mxu0 %v1591
        %2089 = vmatpush1.bf16.msra.mxu0 %v1590
        %2090 = vmatprep.subr.bf16.mxu0 %v1589
        %2091 = vmatpush1.bf16.msra.mxu0 %v1588
        %2092 = vmatprep.subr.bf16.mxu0 %v1587
        %2093 = vmatpush1.bf16.msra.mxu0 %v1586
        %2094 = vmatprep.subr.bf16.mxu0 %v1585
        %2095 = vmatpush1.bf16.msra.mxu0 %v1584
        %2096 = vmatprep.subr.bf16.mxu0 %v1583
        %2097 = vmatpush1.bf16.msra.mxu0 %v1582
        %2098 = vmatprep.subr.bf16.mxu0 %v1581
        %2099 = vmatpush1.bf16.msra.mxu0 %v1580
        %2100 = vmatprep.subr.bf16.mxu0 %v1579
        %2101 = vmatpush1.bf16.msra.mxu0 %v1578
        %2102 = vmatprep.subr.bf16.mxu0 %v1577
        %2103 = vmatpush1.bf16.msra.mxu0 %v1576
        %2104 = vmatprep.subr.bf16.mxu0 %v1607
        %2105 = vmatpush2.bf16.msra.mxu0 %v1606
        %2106 = vmatprep.subr.bf16.mxu0 %v1605
        %2107 = vmatpush2.bf16.msra.mxu0 %v1604
        %2108 = vmatprep.subr.bf16.mxu0 %v1603
        %2109 = vmatpush2.bf16.msra.mxu0 %v1602
        %2110 = vmatprep.subr.bf16.mxu0 %v1601
        %2111 = vmatpush2.bf16.msra.mxu0 %v1600
        %2112 = vmatprep.subr.bf16.mxu0 %v1599
        %2113 = vmatpush2.bf16.msra.mxu0 %v1598
        %2114 = vmatprep.subr.bf16.mxu0 %v1597
        %2115 = vmatpush2.bf16.msra.mxu0 %v1596
        %2116 = vmatprep.subr.bf16.mxu0 %v1595
        %2117 = vmatpush2.bf16.msra.mxu0 %v1594
        %2118 = vmatprep.subr.bf16.mxu0 %v1593
        %2119 = vmatpush2.bf16.msra.mxu0 %v1592
        %2120 = vmatprep.mubr.bf16.mxu0 %v777
        %2121 = vmatmul.mubr.bf16.gmra.mxu0 %v776
        %v2122 = vpop.f32.mrf.mxu0
        %v2123 = vadd.f32 %v745, %v2122
        %v2124 = vpop.f32.mrf.mxu0
        %v2125 = vadd.f32 %v749, %v2124
        %v2126 = vpop.f32.mrf.mxu0
        %v2127 = vpop.f32.mrf.mxu0
        %2128 = vdwg.mxu0
        %2129 = vmatprep.subr.bf16.mxu0 %v1623
        %2130 = vmatpush1.bf16.msra.mxu0 %v1622
        %2131 = vmatprep.subr.bf16.mxu0 %v1621
        %2132 = vmatpush1.bf16.msra.mxu0 %v1620
        %2133 = vmatprep.subr.bf16.mxu0 %v1619
        %2134 = vmatpush1.bf16.msra.mxu0 %v1618
        %2135 = vmatprep.subr.bf16.mxu0 %v1617
        %2136 = vmatpush1.bf16.msra.mxu0 %v1616
        %2137 = vmatprep.subr.bf16.mxu0 %v1615
        %2138 = vmatpush1.bf16.msra.mxu0 %v1614
        %2139 = vmatprep.subr.bf16.mxu0 %v1613
        %2140 = vmatpush1.bf16.msra.mxu0 %v1612
        %2141 = vmatprep.subr.bf16.mxu0 %v1611
        %2142 = vmatpush1.bf16.msra.mxu0 %v1610
        %2143 = vmatprep.subr.bf16.mxu0 %v1609
        %2144 = vmatpush1.bf16.msra.mxu0 %v1608
        %2145 = vmatprep.subr.bf16.mxu0 %v1639
        %2146 = vmatpush2.bf16.msra.mxu0 %v1638
        %2147 = vmatprep.subr.bf16.mxu0 %v1637
        %2148 = vmatpush2.bf16.msra.mxu0 %v1636
        %2149 = vmatprep.subr.bf16.mxu0 %v1635
        %2150 = vmatpush2.bf16.msra.mxu0 %v1634
        %2151 = vmatprep.subr.bf16.mxu0 %v1633
        %2152 = vmatpush2.bf16.msra.mxu0 %v1632
        %2153 = vmatprep.subr.bf16.mxu0 %v1631
        %2154 = vmatpush2.bf16.msra.mxu0 %v1630
        %2155 = vmatprep.subr.bf16.mxu0 %v1629
        %2156 = vmatpush2.bf16.msra.mxu0 %v1628
        %2157 = vmatprep.subr.bf16.mxu0 %v1627
        %2158 = vmatpush2.bf16.msra.mxu0 %v1626
        %2159 = vmatprep.subr.bf16.mxu0 %v1625
        %2160 = vmatpush2.bf16.msra.mxu0 %v1624
        %2161 = vmatprep.mubr.bf16.mxu0 %v779
        %2162 = vmatmul.mubr.bf16.gmra.mxu0 %v778
        %v2163 = vpop.f32.mrf.mxu0
        %v2164 = vadd.f32 %v2123, %v2163
        %v2165 = vpop.f32.mrf.mxu0
        %v2166 = vadd.f32 %v2125, %v2165
        %v2167 = vpop.f32.mrf.mxu0
        %v2168 = vpop.f32.mrf.mxu0
        %2169 = vdwg.mxu0
        %2170 = vmatprep.subr.bf16.mxu0 %v1655
        %2171 = vmatpush1.bf16.msra.mxu0 %v1654
        %2172 = vmatprep.subr.bf16.mxu0 %v1653
        %2173 = vmatpush1.bf16.msra.mxu0 %v1652
        %2174 = vmatprep.subr.bf16.mxu0 %v1651
        %2175 = vmatpush1.bf16.msra.mxu0 %v1650
        %2176 = vmatprep.subr.bf16.mxu0 %v1649
        %2177 = vmatpush1.bf16.msra.mxu0 %v1648
        %2178 = vmatprep.subr.bf16.mxu0 %v1647
        %2179 = vmatpush1.bf16.msra.mxu0 %v1646
        %2180 = vmatprep.subr.bf16.mxu0 %v1645
        %2181 = vmatpush1.bf16.msra.mxu0 %v1644
        %2182 = vmatprep.subr.bf16.mxu0 %v1643
        %2183 = vmatpush1.bf16.msra.mxu0 %v1642
        %2184 = vmatprep.subr.bf16.mxu0 %v1641
        %2185 = vmatpush1.bf16.msra.mxu0 %v1640
        %2186 = vmatprep.subr.bf16.mxu0 %v1671
        %2187 = vmatpush2.bf16.msra.mxu0 %v1670
        %2188 = vmatprep.subr.bf16.mxu0 %v1669
        %2189 = vmatpush2.bf16.msra.mxu0 %v1668
        %2190 = vmatprep.subr.bf16.mxu0 %v1667
        %2191 = vmatpush2.bf16.msra.mxu0 %v1666
        %2192 = vmatprep.subr.bf16.mxu0 %v1665
        %2193 = vmatpush2.bf16.msra.mxu0 %v1664
        %2194 = vmatprep.subr.bf16.mxu0 %v1663
        %2195 = vmatpush2.bf16.msra.mxu0 %v1662
        %2196 = vmatprep.subr.bf16.mxu0 %v1661
        %2197 = vmatpush2.bf16.msra.mxu0 %v1660
        %2198 = vmatprep.subr.bf16.mxu0 %v1659
        %2199 = vmatpush2.bf16.msra.mxu0 %v1658
        %2200 = vmatprep.subr.bf16.mxu0 %v1657
        %2201 = vmatpush2.bf16.msra.mxu0 %v1656
        %2202 = vmatprep.mubr.bf16.mxu0 %v781
        %2203 = vmatmul.mubr.bf16.gmra.mxu0 %v780
        %v2204 = vpop.f32.mrf.mxu0
        %v2205 = vadd.f32 %v2164, %v2204
        %v2206 = vpop.f32.mrf.mxu0
        %v2207 = vadd.f32 %v2166, %v2206
        %v2208 = vpop.f32.mrf.mxu0
        %v2209 = vpop.f32.mrf.mxu0
        %2210 = vdwg.mxu0
        %2211 = vmatprep.subr.bf16.mxu0 %v1687
        %2212 = vmatpush1.bf16.msra.mxu0 %v1686
        %2213 = vmatprep.subr.bf16.mxu0 %v1685
        %2214 = vmatpush1.bf16.msra.mxu0 %v1684
        %2215 = vmatprep.subr.bf16.mxu0 %v1683
        %2216 = vmatpush1.bf16.msra.mxu0 %v1682
        %2217 = vmatprep.subr.bf16.mxu0 %v1681
        %2218 = vmatpush1.bf16.msra.mxu0 %v1680
        %2219 = vmatprep.subr.bf16.mxu0 %v1679
        %2220 = vmatpush1.bf16.msra.mxu0 %v1678
        %2221 = vmatprep.subr.bf16.mxu0 %v1677
        %2222 = vmatpush1.bf16.msra.mxu0 %v1676
        %2223 = vmatprep.subr.bf16.mxu0 %v1675
        %2224 = vmatpush1.bf16.msra.mxu0 %v1674
        %2225 = vmatprep.subr.bf16.mxu0 %v1673
        %2226 = vmatpush1.bf16.msra.mxu0 %v1672
        %2227 = vmatprep.subr.bf16.mxu0 %v1703
        %2228 = vmatpush2.bf16.msra.mxu0 %v1702
        %2229 = vmatprep.subr.bf16.mxu0 %v1701
        %2230 = vmatpush2.bf16.msra.mxu0 %v1700
        %2231 = vmatprep.subr.bf16.mxu0 %v1699
        %2232 = vmatpush2.bf16.msra.mxu0 %v1698
        %2233 = vmatprep.subr.bf16.mxu0 %v1697
        %2234 = vmatpush2.bf16.msra.mxu0 %v1696
        %2235 = vmatprep.subr.bf16.mxu0 %v1695
        %2236 = vmatpush2.bf16.msra.mxu0 %v1694
        %2237 = vmatprep.subr.bf16.mxu0 %v1693
        %2238 = vmatpush2.bf16.msra.mxu0 %v1692
        %2239 = vmatprep.subr.bf16.mxu0 %v1691
        %2240 = vmatpush2.bf16.msra.mxu0 %v1690
        %2241 = vmatprep.subr.bf16.mxu0 %v1689
        %2242 = vmatpush2.bf16.msra.mxu0 %v1688
        %2243 = vmatprep.mubr.bf16.mxu0 %v783
        %2244 = vmatmul.mubr.bf16.gmra.mxu0 %v782
        %v2245 = vpop.f32.mrf.mxu0
        %v2246 = vadd.f32 %v2205, %v2245
        %v2247 = vpop.f32.mrf.mxu0
        %v2248 = vadd.f32 %v2207, %v2247
        %v2249 = vpop.f32.mrf.mxu0
        %v2250 = vpop.f32.mrf.mxu0
        %2251 = vdwg.mxu0
        %2252 = vmatprep.subr.bf16.mxu0 %v1719
        %2253 = vmatpush1.bf16.msra.mxu0 %v1718
        %2254 = vmatprep.subr.bf16.mxu0 %v1717
        %2255 = vmatpush1.bf16.msra.mxu0 %v1716
        %2256 = vmatprep.subr.bf16.mxu0 %v1715
        %2257 = vmatpush1.bf16.msra.mxu0 %v1714
        %2258 = vmatprep.subr.bf16.mxu0 %v1713
        %2259 = vmatpush1.bf16.msra.mxu0 %v1712
        %2260 = vmatprep.subr.bf16.mxu0 %v1711
        %2261 = vmatpush1.bf16.msra.mxu0 %v1710
        %2262 = vmatprep.subr.bf16.mxu0 %v1709
        %2263 = vmatpush1.bf16.msra.mxu0 %v1708
        %2264 = vmatprep.subr.bf16.mxu0 %v1707
        %2265 = vmatpush1.bf16.msra.mxu0 %v1706
        %2266 = vmatprep.subr.bf16.mxu0 %v1705
        %2267 = vmatpush1.bf16.msra.mxu0 %v1704
        %2268 = vmatprep.subr.bf16.mxu0 %v1735
        %2269 = vmatpush2.bf16.msra.mxu0 %v1734
        %2270 = vmatprep.subr.bf16.mxu0 %v1733
        %2271 = vmatpush2.bf16.msra.mxu0 %v1732
        %2272 = vmatprep.subr.bf16.mxu0 %v1731
        %2273 = vmatpush2.bf16.msra.mxu0 %v1730
        %2274 = vmatprep.subr.bf16.mxu0 %v1729
        %2275 = vmatpush2.bf16.msra.mxu0 %v1728
        %2276 = vmatprep.subr.bf16.mxu0 %v1727
        %2277 = vmatpush2.bf16.msra.mxu0 %v1726
        %2278 = vmatprep.subr.bf16.mxu0 %v1725
        %2279 = vmatpush2.bf16.msra.mxu0 %v1724
        %2280 = vmatprep.subr.bf16.mxu0 %v1723
        %2281 = vmatpush2.bf16.msra.mxu0 %v1722
        %2282 = vmatprep.subr.bf16.mxu0 %v1721
        %2283 = vmatpush2.bf16.msra.mxu0 %v1720
        %2284 = vmatprep.mubr.bf16.mxu0 %v785
        %2285 = vmatmul.mubr.bf16.gmra.mxu0 %v784
        %v2286 = vpop.f32.mrf.mxu0
        %v2287 = vadd.f32 %v2246, %v2286
        %v2288 = vpop.f32.mrf.mxu0
        %v2289 = vadd.f32 %v2248, %v2288
        %v2290 = vpop.f32.mrf.mxu0
        %v2291 = vpop.f32.mrf.mxu0
        %2292 = vdwg.mxu0
        %2293 = vmatprep.subr.bf16.mxu0 %v1751
        %2294 = vmatpush1.bf16.msra.mxu0 %v1750
        %2295 = vmatprep.subr.bf16.mxu0 %v1749
        %2296 = vmatpush1.bf16.msra.mxu0 %v1748
        %2297 = vmatprep.subr.bf16.mxu0 %v1747
        %2298 = vmatpush1.bf16.msra.mxu0 %v1746
        %2299 = vmatprep.subr.bf16.mxu0 %v1745
        %2300 = vmatpush1.bf16.msra.mxu0 %v1744
        %2301 = vmatprep.subr.bf16.mxu0 %v1743
        %2302 = vmatpush1.bf16.msra.mxu0 %v1742
        %2303 = vmatprep.subr.bf16.mxu0 %v1741
        %2304 = vmatpush1.bf16.msra.mxu0 %v1740
        %2305 = vmatprep.subr.bf16.mxu0 %v1739
        %2306 = vmatpush1.bf16.msra.mxu0 %v1738
        %2307 = vmatprep.subr.bf16.mxu0 %v1737
        %2308 = vmatpush1.bf16.msra.mxu0 %v1736
        %2309 = vmatprep.subr.bf16.mxu0 %v1767
        %2310 = vmatpush2.bf16.msra.mxu0 %v1766
        %2311 = vmatprep.subr.bf16.mxu0 %v1765
        %2312 = vmatpush2.bf16.msra.mxu0 %v1764
        %2313 = vmatprep.subr.bf16.mxu0 %v1763
        %2314 = vmatpush2.bf16.msra.mxu0 %v1762
        %2315 = vmatprep.subr.bf16.mxu0 %v1761
        %2316 = vmatpush2.bf16.msra.mxu0 %v1760
        %2317 = vmatprep.subr.bf16.mxu0 %v1759
        %2318 = vmatpush2.bf16.msra.mxu0 %v1758
        %2319 = vmatprep.subr.bf16.mxu0 %v1757
        %2320 = vmatpush2.bf16.msra.mxu0 %v1756
        %2321 = vmatprep.subr.bf16.mxu0 %v1755
        %2322 = vmatpush2.bf16.msra.mxu0 %v1754
        %2323 = vmatprep.subr.bf16.mxu0 %v1753
        %2324 = vmatpush2.bf16.msra.mxu0 %v1752
        %2325 = vmatprep.mubr.bf16.mxu0 %v787
        %2326 = vmatmul.mubr.bf16.gmra.mxu0 %v786
        %v2327 = vpop.f32.mrf.mxu0
        %v2328 = vadd.f32 %v2287, %v2327
        %v2329 = vpop.f32.mrf.mxu0
        %v2330 = vadd.f32 %v2289, %v2329
        %v2331 = vpop.f32.mrf.mxu0
        %v2332 = vpop.f32.mrf.mxu0
        %2333 = vdwg.mxu0
        %2334 = vmatprep.subr.bf16.mxu0 %v1783
        %2335 = vmatpush1.bf16.msra.mxu0 %v1782
        %2336 = vmatprep.subr.bf16.mxu0 %v1781
        %2337 = vmatpush1.bf16.msra.mxu0 %v1780
        %2338 = vmatprep.subr.bf16.mxu0 %v1779
        %2339 = vmatpush1.bf16.msra.mxu0 %v1778
        %2340 = vmatprep.subr.bf16.mxu0 %v1777
        %2341 = vmatpush1.bf16.msra.mxu0 %v1776
        %2342 = vmatprep.subr.bf16.mxu0 %v1775
        %2343 = vmatpush1.bf16.msra.mxu0 %v1774
        %2344 = vmatprep.subr.bf16.mxu0 %v1773
        %2345 = vmatpush1.bf16.msra.mxu0 %v1772
        %2346 = vmatprep.subr.bf16.mxu0 %v1771
        %2347 = vmatpush1.bf16.msra.mxu0 %v1770
        %2348 = vmatprep.subr.bf16.mxu0 %v1769
        %2349 = vmatpush1.bf16.msra.mxu0 %v1768
        %2350 = vmatprep.subr.bf16.mxu0 %v1799
        %2351 = vmatpush2.bf16.msra.mxu0 %v1798
        %2352 = vmatprep.subr.bf16.mxu0 %v1797
        %2353 = vmatpush2.bf16.msra.mxu0 %v1796
        %2354 = vmatprep.subr.bf16.mxu0 %v1795
        %2355 = vmatpush2.bf16.msra.mxu0 %v1794
        %2356 = vmatprep.subr.bf16.mxu0 %v1793
        %2357 = vmatpush2.bf16.msra.mxu0 %v1792
        %2358 = vmatprep.subr.bf16.mxu0 %v1791
        %2359 = vmatpush2.bf16.msra.mxu0 %v1790
        %2360 = vmatprep.subr.bf16.mxu0 %v1789
        %2361 = vmatpush2.bf16.msra.mxu0 %v1788
        %2362 = vmatprep.subr.bf16.mxu0 %v1787
        %2363 = vmatpush2.bf16.msra.mxu0 %v1786
        %2364 = vmatprep.subr.bf16.mxu0 %v1785
        %2365 = vmatpush2.bf16.msra.mxu0 %v1784
        %2366 = vmatprep.mubr.bf16.mxu0 %v789
        %2367 = vmatmul.mubr.bf16.gmra.mxu0 %v788
        %v2368 = vpop.f32.mrf.mxu0
        %v2369 = vadd.f32 %v2328, %v2368
        %v2370 = vpop.f32.mrf.mxu0
        %v2371 = vadd.f32 %v2330, %v2370
        %v2372 = vpop.f32.mrf.mxu0
        %v2373 = vpop.f32.mrf.mxu0
        %2374 = vdwg.mxu0
        %2375 = vmatprep.subr.bf16.mxu0 %v1815
        %2376 = vmatpush1.bf16.msra.mxu0 %v1814
        %2377 = vmatprep.subr.bf16.mxu0 %v1813
        %2378 = vmatpush1.bf16.msra.mxu0 %v1812
        %2379 = vmatprep.subr.bf16.mxu0 %v1811
        %2380 = vmatpush1.bf16.msra.mxu0 %v1810
        %2381 = vmatprep.subr.bf16.mxu0 %v1809
        %2382 = vmatpush1.bf16.msra.mxu0 %v1808
        %2383 = vmatprep.subr.bf16.mxu0 %v1807
        %2384 = vmatpush1.bf16.msra.mxu0 %v1806
        %2385 = vmatprep.subr.bf16.mxu0 %v1805
        %2386 = vmatpush1.bf16.msra.mxu0 %v1804
        %2387 = vmatprep.subr.bf16.mxu0 %v1803
        %2388 = vmatpush1.bf16.msra.mxu0 %v1802
        %2389 = vmatprep.subr.bf16.mxu0 %v1801
        %2390 = vmatpush1.bf16.msra.mxu0 %v1800
        %2391 = vmatprep.subr.bf16.mxu0 %v1831
        %2392 = vmatpush2.bf16.msra.mxu0 %v1830
        %2393 = vmatprep.subr.bf16.mxu0 %v1829
        %2394 = vmatpush2.bf16.msra.mxu0 %v1828
        %2395 = vmatprep.subr.bf16.mxu0 %v1827
        %2396 = vmatpush2.bf16.msra.mxu0 %v1826
        %2397 = vmatprep.subr.bf16.mxu0 %v1825
        %2398 = vmatpush2.bf16.msra.mxu0 %v1824
        %2399 = vmatprep.subr.bf16.mxu0 %v1823
        %2400 = vmatpush2.bf16.msra.mxu0 %v1822
        %2401 = vmatprep.subr.bf16.mxu0 %v1821
        %2402 = vmatpush2.bf16.msra.mxu0 %v1820
        %2403 = vmatprep.subr.bf16.mxu0 %v1819
        %2404 = vmatpush2.bf16.msra.mxu0 %v1818
        %2405 = vmatprep.subr.bf16.mxu0 %v1817
        %2406 = vmatpush2.bf16.msra.mxu0 %v1816
        %2407 = vmatprep.mubr.bf16.mxu0 %v791
        %2408 = vmatmul.mubr.bf16.gmra.mxu0 %v790
        %v2409 = vpop.f32.mrf.mxu0
        %v2410 = vadd.f32 %v2369, %v2409
        %v2411 = vpop.f32.mrf.mxu0
        %v2412 = vadd.f32 %v2371, %v2411
        %v2413 = vpop.f32.mrf.mxu0
        %v2414 = vpop.f32.mrf.mxu0
        %2415 = vdwg.mxu0
        %v2416 = vmax.f32 %v2410, 0.0
        %v2417 = vmax.f32 %v2412, 0.0
        %v2418 = vld [vmem:[%s413] sm:$0xff]
        %v2419 = vld [vmem:[%s413 + $0x8] sm:$0xff]
        %v2420 = vld [vmem:[%s413 + $0x10] sm:$0xff]
        %v2421 = vld [vmem:[%s413 + $0x18] sm:$0xff]
        %v2422 = vld [vmem:[%s413 + $0x20] sm:$0xff]
        %v2423 = vld [vmem:[%s413 + $0x28] sm:$0xff]
        %v2424 = vld [vmem:[%s413 + $0x30] sm:$0xff]
        %v2425 = vld [vmem:[%s413 + $0x38] sm:$0xff]
        %v2434 = vunpack.c.l.b16 %v2418
        %v2435 = vunpack.c.h.b16 %v2418
        %v2436 = vunpack.c.l.b16 %v2419
        %v2437 = vunpack.c.h.b16 %v2419
        %v2438 = vunpack.c.l.b16 %v2420
        %v2439 = vunpack.c.h.b16 %v2420
        %v2440 = vunpack.c.l.b16 %v2421
        %v2441 = vunpack.c.h.b16 %v2421
        %v2442 = vunpack.c.l.b16 %v2422
        %v2443 = vunpack.c.h.b16 %v2422
        %v2444 = vunpack.c.l.b16 %v2423
        %v2445 = vunpack.c.h.b16 %v2423
        %v2446 = vunpack.c.l.b16 %v2424
        %v2447 = vunpack.c.h.b16 %v2424
        %v2448 = vunpack.c.l.b16 %v2425
        %v2449 = vunpack.c.h.b16 %v2425
        %v2450 = vpack.c.b16 %v2434, %v2434
        %v2451 = vpack.c.b16 %v2435, %v2435
        %v2452 = vpack.c.b16 %v2436, %v2436
        %v2453 = vpack.c.b16 %v2437, %v2437
        %v2454 = vpack.c.b16 %v2438, %v2438
        %v2455 = vpack.c.b16 %v2439, %v2439
        %v2456 = vpack.c.b16 %v2440, %v2440
        %v2457 = vpack.c.b16 %v2441, %v2441
        %v2458 = vpack.c.b16 %v2442, %v2442
        %v2459 = vpack.c.b16 %v2443, %v2443
        %v2460 = vpack.c.b16 %v2444, %v2444
        %v2461 = vpack.c.b16 %v2445, %v2445
        %v2462 = vpack.c.b16 %v2446, %v2446
        %v2463 = vpack.c.b16 %v2447, %v2447
        %v2464 = vpack.c.b16 %v2448, %v2448
        %v2465 = vpack.c.b16 %v2449, %v2449
        %2482 = vmatprep.subr.bf16.mxu0 %v1591
        %2483 = vmatpush1.bf16.msra.mxu0 %v1590
        %2484 = vmatprep.subr.bf16.mxu0 %v1589
        %2485 = vmatpush1.bf16.msra.mxu0 %v1588
        %2486 = vmatprep.subr.bf16.mxu0 %v1587
        %2487 = vmatpush1.bf16.msra.mxu0 %v1586
        %2488 = vmatprep.subr.bf16.mxu0 %v1585
        %2489 = vmatpush1.bf16.msra.mxu0 %v1584
        %2490 = vmatprep.subr.bf16.mxu0 %v1583
        %2491 = vmatpush1.bf16.msra.mxu0 %v1582
        %2492 = vmatprep.subr.bf16.mxu0 %v1581
        %2493 = vmatpush1.bf16.msra.mxu0 %v1580
        %2494 = vmatprep.subr.bf16.mxu0 %v1579
        %2495 = vmatpush1.bf16.msra.mxu0 %v1578
        %2496 = vmatprep.subr.bf16.mxu0 %v1577
        %2497 = vmatpush1.bf16.msra.mxu0 %v1576
        %2498 = vmatprep.subr.bf16.mxu0 %v1607
        %2499 = vmatpush2.bf16.msra.mxu0 %v1606
        %2500 = vmatprep.subr.bf16.mxu0 %v1605
        %2501 = vmatpush2.bf16.msra.mxu0 %v1604
        %2502 = vmatprep.subr.bf16.mxu0 %v1603
        %2503 = vmatpush2.bf16.msra.mxu0 %v1602
        %2504 = vmatprep.subr.bf16.mxu0 %v1601
        %2505 = vmatpush2.bf16.msra.mxu0 %v1600
        %2506 = vmatprep.subr.bf16.mxu0 %v1599
        %2507 = vmatpush2.bf16.msra.mxu0 %v1598
        %2508 = vmatprep.subr.bf16.mxu0 %v1597
        %2509 = vmatpush2.bf16.msra.mxu0 %v1596
        %2510 = vmatprep.subr.bf16.mxu0 %v1595
        %2511 = vmatpush2.bf16.msra.mxu0 %v1594
        %2512 = vmatprep.subr.bf16.mxu0 %v1593
        %2513 = vmatpush2.bf16.msra.mxu0 %v1592
        %2514 = vmatprep.mubr.bf16.mxu0 %v2451
        %2515 = vmatmul.mubr.bf16.gmra.mxu0 %v2450
        %v2516 = vpop.f32.mrf.mxu0
        %v2517 = vadd.f32 %v745, %v2516
        %v2518 = vpop.f32.mrf.mxu0
        %v2519 = vadd.f32 %v749, %v2518
        %v2520 = vpop.f32.mrf.mxu0
        %v2521 = vpop.f32.mrf.mxu0
        %2522 = vdwg.mxu0
        %2523 = vmatprep.subr.bf16.mxu0 %v1623
        %2524 = vmatpush1.bf16.msra.mxu0 %v1622
        %2525 = vmatprep.subr.bf16.mxu0 %v1621
        %2526 = vmatpush1.bf16.msra.mxu0 %v1620
        %2527 = vmatprep.subr.bf16.mxu0 %v1619
        %2528 = vmatpush1.bf16.msra.mxu0 %v1618
        %2529 = vmatprep.subr.bf16.mxu0 %v1617
        %2530 = vmatpush1.bf16.msra.mxu0 %v1616
        %2531 = vmatprep.subr.bf16.mxu0 %v1615
        %2532 = vmatpush1.bf16.msra.mxu0 %v1614
        %2533 = vmatprep.subr.bf16.mxu0 %v1613
        %2534 = vmatpush1.bf16.msra.mxu0 %v1612
        %2535 = vmatprep.subr.bf16.mxu0 %v1611
        %2536 = vmatpush1.bf16.msra.mxu0 %v1610
        %2537 = vmatprep.subr.bf16.mxu0 %v1609
        %2538 = vmatpush1.bf16.msra.mxu0 %v1608
        %2539 = vmatprep.subr.bf16.mxu0 %v1639
        %2540 = vmatpush2.bf16.msra.mxu0 %v1638
        %2541 = vmatprep.subr.bf16.mxu0 %v1637
        %2542 = vmatpush2.bf16.msra.mxu0 %v1636
        %2543 = vmatprep.subr.bf16.mxu0 %v1635
        %2544 = vmatpush2.bf16.msra.mxu0 %v1634
        %2545 = vmatprep.subr.bf16.mxu0 %v1633
        %2546 = vmatpush2.bf16.msra.mxu0 %v1632
        %2547 = vmatprep.subr.bf16.mxu0 %v1631
        %2548 = vmatpush2.bf16.msra.mxu0 %v1630
        %2549 = vmatprep.subr.bf16.mxu0 %v1629
        %2550 = vmatpush2.bf16.msra.mxu0 %v1628
        %2551 = vmatprep.subr.bf16.mxu0 %v1627
        %2552 = vmatpush2.bf16.msra.mxu0 %v1626
        %2553 = vmatprep.subr.bf16.mxu0 %v1625
        %2554 = vmatpush2.bf16.msra.mxu0 %v1624
        %2555 = vmatprep.mubr.bf16.mxu0 %v2453
        %2556 = vmatmul.mubr.bf16.gmra.mxu0 %v2452
        %v2557 = vpop.f32.mrf.mxu0
        %v2558 = vadd.f32 %v2517, %v2557
        %v2559 = vpop.f32.mrf.mxu0
        %v2560 = vadd.f32 %v2519, %v2559
        %v2561 = vpop.f32.mrf.mxu0
        %v2562 = vpop.f32.mrf.mxu0
        %2563 = vdwg.mxu0
        %2564 = vmatprep.subr.bf16.mxu0 %v1655
        %2565 = vmatpush1.bf16.msra.mxu0 %v1654
        %2566 = vmatprep.subr.bf16.mxu0 %v1653
        %2567 = vmatpush1.bf16.msra.mxu0 %v1652
        %2568 = vmatprep.subr.bf16.mxu0 %v1651
        %2569 = vmatpush1.bf16.msra.mxu0 %v1650
        %2570 = vmatprep.subr.bf16.mxu0 %v1649
        %2571 = vmatpush1.bf16.msra.mxu0 %v1648
        %2572 = vmatprep.subr.bf16.mxu0 %v1647
        %2573 = vmatpush1.bf16.msra.mxu0 %v1646
        %2574 = vmatprep.subr.bf16.mxu0 %v1645
        %2575 = vmatpush1.bf16.msra.mxu0 %v1644
        %2576 = vmatprep.subr.bf16.mxu0 %v1643
        %2577 = vmatpush1.bf16.msra.mxu0 %v1642
        %2578 = vmatprep.subr.bf16.mxu0 %v1641
        %2579 = vmatpush1.bf16.msra.mxu0 %v1640
        %2580 = vmatprep.subr.bf16.mxu0 %v1671
        %2581 = vmatpush2.bf16.msra.mxu0 %v1670
        %2582 = vmatprep.subr.bf16.mxu0 %v1669
        %2583 = vmatpush2.bf16.msra.mxu0 %v1668
        %2584 = vmatprep.subr.bf16.mxu0 %v1667
        %2585 = vmatpush2.bf16.msra.mxu0 %v1666
        %2586 = vmatprep.subr.bf16.mxu0 %v1665
        %2587 = vmatpush2.bf16.msra.mxu0 %v1664
        %2588 = vmatprep.subr.bf16.mxu0 %v1663
        %2589 = vmatpush2.bf16.msra.mxu0 %v1662
        %2590 = vmatprep.subr.bf16.mxu0 %v1661
        %2591 = vmatpush2.bf16.msra.mxu0 %v1660
        %2592 = vmatprep.subr.bf16.mxu0 %v1659
        %2593 = vmatpush2.bf16.msra.mxu0 %v1658
        %2594 = vmatprep.subr.bf16.mxu0 %v1657
        %2595 = vmatpush2.bf16.msra.mxu0 %v1656
        %2596 = vmatprep.mubr.bf16.mxu0 %v2455
        %2597 = vmatmul.mubr.bf16.gmra.mxu0 %v2454
        %v2598 = vpop.f32.mrf.mxu0
        %v2599 = vadd.f32 %v2558, %v2598
        %v2600 = vpop.f32.mrf.mxu0
        %v2601 = vadd.f32 %v2560, %v2600
        %v2602 = vpop.f32.mrf.mxu0
        %v2603 = vpop.f32.mrf.mxu0
        %2604 = vdwg.mxu0
        %2605 = vmatprep.subr.bf16.mxu0 %v1687
        %2606 = vmatpush1.bf16.msra.mxu0 %v1686
        %2607 = vmatprep.subr.bf16.mxu0 %v1685
        %2608 = vmatpush1.bf16.msra.mxu0 %v1684
        %2609 = vmatprep.subr.bf16.mxu0 %v1683
        %2610 = vmatpush1.bf16.msra.mxu0 %v1682
        %2611 = vmatprep.subr.bf16.mxu0 %v1681
        %2612 = vmatpush1.bf16.msra.mxu0 %v1680
        %2613 = vmatprep.subr.bf16.mxu0 %v1679
        %2614 = vmatpush1.bf16.msra.mxu0 %v1678
        %2615 = vmatprep.subr.bf16.mxu0 %v1677
        %2616 = vmatpush1.bf16.msra.mxu0 %v1676
        %2617 = vmatprep.subr.bf16.mxu0 %v1675
        %2618 = vmatpush1.bf16.msra.mxu0 %v1674
        %2619 = vmatprep.subr.bf16.mxu0 %v1673
        %2620 = vmatpush1.bf16.msra.mxu0 %v1672
        %2621 = vmatprep.subr.bf16.mxu0 %v1703
        %2622 = vmatpush2.bf16.msra.mxu0 %v1702
        %2623 = vmatprep.subr.bf16.mxu0 %v1701
        %2624 = vmatpush2.bf16.msra.mxu0 %v1700
        %2625 = vmatprep.subr.bf16.mxu0 %v1699
        %2626 = vmatpush2.bf16.msra.mxu0 %v1698
        %2627 = vmatprep.subr.bf16.mxu0 %v1697
        %2628 = vmatpush2.bf16.msra.mxu0 %v1696
        %2629 = vmatprep.subr.bf16.mxu0 %v1695
        %2630 = vmatpush2.bf16.msra.mxu0 %v1694
        %2631 = vmatprep.subr.bf16.mxu0 %v1693
        %2632 = vmatpush2.bf16.msra.mxu0 %v1692
        %2633 = vmatprep.subr.bf16.mxu0 %v1691
        %2634 = vmatpush2.bf16.msra.mxu0 %v1690
        %2635 = vmatprep.subr.bf16.mxu0 %v1689
        %2636 = vmatpush2.bf16.msra.mxu0 %v1688
        %2637 = vmatprep.mubr.bf16.mxu0 %v2457
        %2638 = vmatmul.mubr.bf16.gmra.mxu0 %v2456
        %v2639 = vpop.f32.mrf.mxu0
        %v2640 = vadd.f32 %v2599, %v2639
        %v2641 = vpop.f32.mrf.mxu0
        %v2642 = vadd.f32 %v2601, %v2641
        %v2643 = vpop.f32.mrf.mxu0
        %v2644 = vpop.f32.mrf.mxu0
        %2645 = vdwg.mxu0
        %2646 = vmatprep.subr.bf16.mxu0 %v1719
        %2647 = vmatpush1.bf16.msra.mxu0 %v1718
        %2648 = vmatprep.subr.bf16.mxu0 %v1717
        %2649 = vmatpush1.bf16.msra.mxu0 %v1716
        %2650 = vmatprep.subr.bf16.mxu0 %v1715
        %2651 = vmatpush1.bf16.msra.mxu0 %v1714
        %2652 = vmatprep.subr.bf16.mxu0 %v1713
        %2653 = vmatpush1.bf16.msra.mxu0 %v1712
        %2654 = vmatprep.subr.bf16.mxu0 %v1711
        %2655 = vmatpush1.bf16.msra.mxu0 %v1710
        %2656 = vmatprep.subr.bf16.mxu0 %v1709
        %2657 = vmatpush1.bf16.msra.mxu0 %v1708
        %2658 = vmatprep.subr.bf16.mxu0 %v1707
        %2659 = vmatpush1.bf16.msra.mxu0 %v1706
        %2660 = vmatprep.subr.bf16.mxu0 %v1705
        %2661 = vmatpush1.bf16.msra.mxu0 %v1704
        %2662 = vmatprep.subr.bf16.mxu0 %v1735
        %2663 = vmatpush2.bf16.msra.mxu0 %v1734
        %2664 = vmatprep.subr.bf16.mxu0 %v1733
        %2665 = vmatpush2.bf16.msra.mxu0 %v1732
        %2666 = vmatprep.subr.bf16.mxu0 %v1731
        %2667 = vmatpush2.bf16.msra.mxu0 %v1730
        %2668 = vmatprep.subr.bf16.mxu0 %v1729
        %2669 = vmatpush2.bf16.msra.mxu0 %v1728
        %2670 = vmatprep.subr.bf16.mxu0 %v1727
        %2671 = vmatpush2.bf16.msra.mxu0 %v1726
        %2672 = vmatprep.subr.bf16.mxu0 %v1725
        %2673 = vmatpush2.bf16.msra.mxu0 %v1724
        %2674 = vmatprep.subr.bf16.mxu0 %v1723
        %2675 = vmatpush2.bf16.msra.mxu0 %v1722
        %2676 = vmatprep.subr.bf16.mxu0 %v1721
        %2677 = vmatpush2.bf16.msra.mxu0 %v1720
        %2678 = vmatprep.mubr.bf16.mxu0 %v2459
        %2679 = vmatmul.mubr.bf16.gmra.mxu0 %v2458
        %v2680 = vpop.f32.mrf.mxu0
        %v2681 = vadd.f32 %v2640, %v2680
        %v2682 = vpop.f32.mrf.mxu0
        %v2683 = vadd.f32 %v2642, %v2682
        %v2684 = vpop.f32.mrf.mxu0
        %v2685 = vpop.f32.mrf.mxu0
        %2686 = vdwg.mxu0
        %2687 = vmatprep.subr.bf16.mxu0 %v1751
        %2688 = vmatpush1.bf16.msra.mxu0 %v1750
        %2689 = vmatprep.subr.bf16.mxu0 %v1749
        %2690 = vmatpush1.bf16.msra.mxu0 %v1748
        %2691 = vmatprep.subr.bf16.mxu0 %v1747
        %2692 = vmatpush1.bf16.msra.mxu0 %v1746
        %2693 = vmatprep.subr.bf16.mxu0 %v1745
        %2694 = vmatpush1.bf16.msra.mxu0 %v1744
        %2695 = vmatprep.subr.bf16.mxu0 %v1743
        %2696 = vmatpush1.bf16.msra.mxu0 %v1742
        %2697 = vmatprep.subr.bf16.mxu0 %v1741
        %2698 = vmatpush1.bf16.msra.mxu0 %v1740
        %2699 = vmatprep.subr.bf16.mxu0 %v1739
        %2700 = vmatpush1.bf16.msra.mxu0 %v1738
        %2701 = vmatprep.subr.bf16.mxu0 %v1737
        %2702 = vmatpush1.bf16.msra.mxu0 %v1736
        %2703 = vmatprep.subr.bf16.mxu0 %v1767
        %2704 = vmatpush2.bf16.msra.mxu0 %v1766
        %2705 = vmatprep.subr.bf16.mxu0 %v1765
        %2706 = vmatpush2.bf16.msra.mxu0 %v1764
        %2707 = vmatprep.subr.bf16.mxu0 %v1763
        %2708 = vmatpush2.bf16.msra.mxu0 %v1762
        %2709 = vmatprep.subr.bf16.mxu0 %v1761
        %2710 = vmatpush2.bf16.msra.mxu0 %v1760
        %2711 = vmatprep.subr.bf16.mxu0 %v1759
        %2712 = vmatpush2.bf16.msra.mxu0 %v1758
        %2713 = vmatprep.subr.bf16.mxu0 %v1757
        %2714 = vmatpush2.bf16.msra.mxu0 %v1756
        %2715 = vmatprep.subr.bf16.mxu0 %v1755
        %2716 = vmatpush2.bf16.msra.mxu0 %v1754
        %2717 = vmatprep.subr.bf16.mxu0 %v1753
        %2718 = vmatpush2.bf16.msra.mxu0 %v1752
        %2719 = vmatprep.mubr.bf16.mxu0 %v2461
        %2720 = vmatmul.mubr.bf16.gmra.mxu0 %v2460
        %v2721 = vpop.f32.mrf.mxu0
        %v2722 = vadd.f32 %v2681, %v2721
        %v2723 = vpop.f32.mrf.mxu0
        %v2724 = vadd.f32 %v2683, %v2723
        %v2725 = vpop.f32.mrf.mxu0
        %v2726 = vpop.f32.mrf.mxu0
        %2727 = vdwg.mxu0
        %2728 = vmatprep.subr.bf16.mxu0 %v1783
        %2729 = vmatpush1.bf16.msra.mxu0 %v1782
        %2730 = vmatprep.subr.bf16.mxu0 %v1781
        %2731 = vmatpush1.bf16.msra.mxu0 %v1780
        %2732 = vmatprep.subr.bf16.mxu0 %v1779
        %2733 = vmatpush1.bf16.msra.mxu0 %v1778
        %2734 = vmatprep.subr.bf16.mxu0 %v1777
        %2735 = vmatpush1.bf16.msra.mxu0 %v1776
        %2736 = vmatprep.subr.bf16.mxu0 %v1775
        %2737 = vmatpush1.bf16.msra.mxu0 %v1774
        %2738 = vmatprep.subr.bf16.mxu0 %v1773
        %2739 = vmatpush1.bf16.msra.mxu0 %v1772
        %2740 = vmatprep.subr.bf16.mxu0 %v1771
        %2741 = vmatpush1.bf16.msra.mxu0 %v1770
        %2742 = vmatprep.subr.bf16.mxu0 %v1769
        %2743 = vmatpush1.bf16.msra.mxu0 %v1768
        %2744 = vmatprep.subr.bf16.mxu0 %v1799
        %2745 = vmatpush2.bf16.msra.mxu0 %v1798
        %2746 = vmatprep.subr.bf16.mxu0 %v1797
        %2747 = vmatpush2.bf16.msra.mxu0 %v1796
        %2748 = vmatprep.subr.bf16.mxu0 %v1795
        %2749 = vmatpush2.bf16.msra.mxu0 %v1794
        %2750 = vmatprep.subr.bf16.mxu0 %v1793
        %2751 = vmatpush2.bf16.msra.mxu0 %v1792
        %2752 = vmatprep.subr.bf16.mxu0 %v1791
        %2753 = vmatpush2.bf16.msra.mxu0 %v1790
        %2754 = vmatprep.subr.bf16.mxu0 %v1789
        %2755 = vmatpush2.bf16.msra.mxu0 %v1788
        %2756 = vmatprep.subr.bf16.mxu0 %v1787
        %2757 = vmatpush2.bf16.msra.mxu0 %v1786
        %2758 = vmatprep.subr.bf16.mxu0 %v1785
        %2759 = vmatpush2.bf16.msra.mxu0 %v1784
        %2760 = vmatprep.mubr.bf16.mxu0 %v2463
        %2761 = vmatmul.mubr.bf16.gmra.mxu0 %v2462
        %v2762 = vpop.f32.mrf.mxu0
        %v2763 = vadd.f32 %v2722, %v2762
        %v2764 = vpop.f32.mrf.mxu0
        %v2765 = vadd.f32 %v2724, %v2764
        %v2766 = vpop.f32.mrf.mxu0
        %v2767 = vpop.f32.mrf.mxu0
        %2768 = vdwg.mxu0
        %2769 = vmatprep.subr.bf16.mxu0 %v1815
        %2770 = vmatpush1.bf16.msra.mxu0 %v1814
        %2771 = vmatprep.subr.bf16.mxu0 %v1813
        %2772 = vmatpush1.bf16.msra.mxu0 %v1812
        %2773 = vmatprep.subr.bf16.mxu0 %v1811
        %2774 = vmatpush1.bf16.msra.mxu0 %v1810
        %2775 = vmatprep.subr.bf16.mxu0 %v1809
        %2776 = vmatpush1.bf16.msra.mxu0 %v1808
        %2777 = vmatprep.subr.bf16.mxu0 %v1807
        %2778 = vmatpush1.bf16.msra.mxu0 %v1806
        %2779 = vmatprep.subr.bf16.mxu0 %v1805
        %2780 = vmatpush1.bf16.msra.mxu0 %v1804
        %2781 = vmatprep.subr.bf16.mxu0 %v1803
        %2782 = vmatpush1.bf16.msra.mxu0 %v1802
        %2783 = vmatprep.subr.bf16.mxu0 %v1801
        %2784 = vmatpush1.bf16.msra.mxu0 %v1800
        %2785 = vmatprep.subr.bf16.mxu0 %v1831
        %2786 = vmatpush2.bf16.msra.mxu0 %v1830
        %2787 = vmatprep.subr.bf16.mxu0 %v1829
        %2788 = vmatpush2.bf16.msra.mxu0 %v1828
        %2789 = vmatprep.subr.bf16.mxu0 %v1827
        %2790 = vmatpush2.bf16.msra.mxu0 %v1826
        %2791 = vmatprep.subr.bf16.mxu0 %v1825
        %2792 = vmatpush2.bf16.msra.mxu0 %v1824
        %2793 = vmatprep.subr.bf16.mxu0 %v1823
        %2794 = vmatpush2.bf16.msra.mxu0 %v1822
        %2795 = vmatprep.subr.bf16.mxu0 %v1821
        %2796 = vmatpush2.bf16.msra.mxu0 %v1820
        %2797 = vmatprep.subr.bf16.mxu0 %v1819
        %2798 = vmatpush2.bf16.msra.mxu0 %v1818
        %2799 = vmatprep.subr.bf16.mxu0 %v1817
        %2800 = vmatpush2.bf16.msra.mxu0 %v1816
        %2801 = vmatprep.mubr.bf16.mxu0 %v2465
        %2802 = vmatmul.mubr.bf16.gmra.mxu0 %v2464
        %v2803 = vpop.f32.mrf.mxu0
        %v2804 = vadd.f32 %v2763, %v2803
        %v2805 = vpop.f32.mrf.mxu0
        %v2806 = vadd.f32 %v2765, %v2805
        %v2807 = vpop.f32.mrf.mxu0
        %v2808 = vpop.f32.mrf.mxu0
        %2809 = vdwg.mxu0
        %v2810 = vmax.f32 %v2804, 0.0
        %v2811 = vmax.f32 %v2806, 0.0
        %2812 = vst [vmem:[#allocation2] sm:$0xff] %v2416
        %2813 = vst [vmem:[#allocation2 + $0x8] sm:$0xff] %v2417
        %2814 = vst [vmem:[#allocation2 + $0x10] sm:$0xff] %v2810
        %2815 = vst [vmem:[#allocation2 + $0x18] sm:$0xff] %v2811
        %v2816 = vpack.c.bf16 %v2416, %v2416
        %v2817 = vpack.c.bf16 %v2417, %v2417
        %v2818 = vld [vmem:[#allocation10] sm:$0xff]
        %v2819 = vld [vmem:[#allocation10 + $0x8] sm:$0xff]
        %v2820 = vld [vmem:[#allocation10 + $0x10] sm:$0xff]
        %v2821 = vld [vmem:[#allocation10 + $0x18] sm:$0xff]
        %v2822 = vld [vmem:[#allocation10 + $0x20] sm:$0xff]
        %v2823 = vld [vmem:[#allocation10 + $0x28] sm:$0xff]
        %v2824 = vld [vmem:[#allocation10 + $0x30] sm:$0xff]
        %v2825 = vld [vmem:[#allocation10 + $0x38] sm:$0xff]
        %v2826 = vld [vmem:[#allocation10 + $0x40] sm:$0xff]
        %v2827 = vld [vmem:[#allocation10 + $0x48] sm:$0xff]
        %v2828 = vld [vmem:[#allocation10 + $0x50] sm:$0xff]
        %v2829 = vld [vmem:[#allocation10 + $0x58] sm:$0xff]
        %v2830 = vld [vmem:[#allocation10 + $0x60] sm:$0xff]
        %v2831 = vld [vmem:[#allocation10 + $0x68] sm:$0xff]
        %v2832 = vld [vmem:[#allocation10 + $0x70] sm:$0xff]
        %v2833 = vld [vmem:[#allocation10 + $0x78] sm:$0xff]
        %v2834 = vld [vmem:[#allocation10 + $0x80] sm:$0xff]
        %v2835 = vld [vmem:[#allocation10 + $0x88] sm:$0xff]
        %v2836 = vld [vmem:[#allocation10 + $0x90] sm:$0xff]
        %v2837 = vld [vmem:[#allocation10 + $0x98] sm:$0xff]
        %v2838 = vld [vmem:[#allocation10 + $0xa0] sm:$0xff]
        %v2839 = vld [vmem:[#allocation10 + $0xa8] sm:$0xff]
        %v2840 = vld [vmem:[#allocation10 + $0xb0] sm:$0xff]
        %v2841 = vld [vmem:[#allocation10 + $0xb8] sm:$0xff]
        %v2842 = vld [vmem:[#allocation10 + $0xc0] sm:$0xff]
        %v2843 = vld [vmem:[#allocation10 + $0xc8] sm:$0xff]
        %v2844 = vld [vmem:[#allocation10 + $0xd0] sm:$0xff]
        %v2845 = vld [vmem:[#allocation10 + $0xd8] sm:$0xff]
        %v2846 = vld [vmem:[#allocation10 + $0xe0] sm:$0xff]
        %v2847 = vld [vmem:[#allocation10 + $0xe8] sm:$0xff]
        %v2848 = vld [vmem:[#allocation10 + $0xf0] sm:$0xff]
        %v2849 = vld [vmem:[#allocation10 + $0xf8] sm:$0xff]
        %v2850 = vld [vmem:[#allocation10 + $0x100] sm:$0xff]
        %v2851 = vld [vmem:[#allocation10 + $0x108] sm:$0xff]
        %v2852 = vld [vmem:[#allocation10 + $0x110] sm:$0xff]
        %v2853 = vld [vmem:[#allocation10 + $0x118] sm:$0xff]
        %v2854 = vld [vmem:[#allocation10 + $0x120] sm:$0xff]
        %v2855 = vld [vmem:[#allocation10 + $0x128] sm:$0xff]
        %v2856 = vld [vmem:[#allocation10 + $0x130] sm:$0xff]
        %v2857 = vld [vmem:[#allocation10 + $0x138] sm:$0xff]
        %v2858 = vld [vmem:[#allocation10 + $0x140] sm:$0xff]
        %v2859 = vld [vmem:[#allocation10 + $0x148] sm:$0xff]
        %v2860 = vld [vmem:[#allocation10 + $0x150] sm:$0xff]
        %v2861 = vld [vmem:[#allocation10 + $0x158] sm:$0xff]
        %v2862 = vld [vmem:[#allocation10 + $0x160] sm:$0xff]
        %v2863 = vld [vmem:[#allocation10 + $0x168] sm:$0xff]
        %v2864 = vld [vmem:[#allocation10 + $0x170] sm:$0xff]
        %v2865 = vld [vmem:[#allocation10 + $0x178] sm:$0xff]
        %v2866 = vld [vmem:[#allocation10 + $0x180] sm:$0xff]
        %v2867 = vld [vmem:[#allocation10 + $0x188] sm:$0xff]
        %v2868 = vld [vmem:[#allocation10 + $0x190] sm:$0xff]
        %v2869 = vld [vmem:[#allocation10 + $0x198] sm:$0xff]
        %v2870 = vld [vmem:[#allocation10 + $0x1a0] sm:$0xff]
        %v2871 = vld [vmem:[#allocation10 + $0x1a8] sm:$0xff]
        %v2872 = vld [vmem:[#allocation10 + $0x1b0] sm:$0xff]
        %v2873 = vld [vmem:[#allocation10 + $0x1b8] sm:$0xff]
        %v2874 = vld [vmem:[#allocation10 + $0x1c0] sm:$0xff]
        %v2875 = vld [vmem:[#allocation10 + $0x1c8] sm:$0xff]
        %v2876 = vld [vmem:[#allocation10 + $0x1d0] sm:$0xff]
        %v2877 = vld [vmem:[#allocation10 + $0x1d8] sm:$0xff]
        %v2878 = vld [vmem:[#allocation10 + $0x1e0] sm:$0xff]
        %v2879 = vld [vmem:[#allocation10 + $0x1e8] sm:$0xff]
        %v2880 = vld [vmem:[#allocation10 + $0x1f0] sm:$0xff]
        %v2881 = vld [vmem:[#allocation10 + $0x1f8] sm:$0xff]
        %v2882 = vld [vmem:[#allocation10 + $0x200] sm:$0xff]
        %v2883 = vld [vmem:[#allocation10 + $0x208] sm:$0xff]
        %v2884 = vld [vmem:[#allocation10 + $0x210] sm:$0xff]
        %v2885 = vld [vmem:[#allocation10 + $0x218] sm:$0xff]
        %v2886 = vld [vmem:[#allocation10 + $0x220] sm:$0xff]
        %v2887 = vld [vmem:[#allocation10 + $0x228] sm:$0xff]
        %v2888 = vld [vmem:[#allocation10 + $0x230] sm:$0xff]
        %v2889 = vld [vmem:[#allocation10 + $0x238] sm:$0xff]
        %v2890 = vld [vmem:[#allocation10 + $0x240] sm:$0xff]
        %v2891 = vld [vmem:[#allocation10 + $0x248] sm:$0xff]
        %v2892 = vld [vmem:[#allocation10 + $0x250] sm:$0xff]
        %v2893 = vld [vmem:[#allocation10 + $0x258] sm:$0xff]
        %v2894 = vld [vmem:[#allocation10 + $0x260] sm:$0xff]
        %v2895 = vld [vmem:[#allocation10 + $0x268] sm:$0xff]
        %v2896 = vld [vmem:[#allocation10 + $0x270] sm:$0xff]
        %v2897 = vld [vmem:[#allocation10 + $0x278] sm:$0xff]
        %v2898 = vld [vmem:[#allocation10 + $0x280] sm:$0xff]
        %v2899 = vld [vmem:[#allocation10 + $0x288] sm:$0xff]
        %v2900 = vld [vmem:[#allocation10 + $0x290] sm:$0xff]
        %v2901 = vld [vmem:[#allocation10 + $0x298] sm:$0xff]
        %v2902 = vld [vmem:[#allocation10 + $0x2a0] sm:$0xff]
        %v2903 = vld [vmem:[#allocation10 + $0x2a8] sm:$0xff]
        %v2904 = vld [vmem:[#allocation10 + $0x2b0] sm:$0xff]
        %v2905 = vld [vmem:[#allocation10 + $0x2b8] sm:$0xff]
        %v2906 = vld [vmem:[#allocation10 + $0x2c0] sm:$0xff]
        %v2907 = vld [vmem:[#allocation10 + $0x2c8] sm:$0xff]
        %v2908 = vld [vmem:[#allocation10 + $0x2d0] sm:$0xff]
        %v2909 = vld [vmem:[#allocation10 + $0x2d8] sm:$0xff]
        %v2910 = vld [vmem:[#allocation10 + $0x2e0] sm:$0xff]
        %v2911 = vld [vmem:[#allocation10 + $0x2e8] sm:$0xff]
        %v2912 = vld [vmem:[#allocation10 + $0x2f0] sm:$0xff]
        %v2913 = vld [vmem:[#allocation10 + $0x2f8] sm:$0xff]
        %v2914 = vld [vmem:[#allocation10 + $0x300] sm:$0xff]
        %v2915 = vld [vmem:[#allocation10 + $0x308] sm:$0xff]
        %v2916 = vld [vmem:[#allocation10 + $0x310] sm:$0xff]
        %v2917 = vld [vmem:[#allocation10 + $0x318] sm:$0xff]
        %v2918 = vld [vmem:[#allocation10 + $0x320] sm:$0xff]
        %v2919 = vld [vmem:[#allocation10 + $0x328] sm:$0xff]
        %v2920 = vld [vmem:[#allocation10 + $0x330] sm:$0xff]
        %v2921 = vld [vmem:[#allocation10 + $0x338] sm:$0xff]
        %v2922 = vld [vmem:[#allocation10 + $0x340] sm:$0xff]
        %v2923 = vld [vmem:[#allocation10 + $0x348] sm:$0xff]
        %v2924 = vld [vmem:[#allocation10 + $0x350] sm:$0xff]
        %v2925 = vld [vmem:[#allocation10 + $0x358] sm:$0xff]
        %v2926 = vld [vmem:[#allocation10 + $0x360] sm:$0xff]
        %v2927 = vld [vmem:[#allocation10 + $0x368] sm:$0xff]
        %v2928 = vld [vmem:[#allocation10 + $0x370] sm:$0xff]
        %v2929 = vld [vmem:[#allocation10 + $0x378] sm:$0xff]
        %v2930 = vld [vmem:[#allocation10 + $0x380] sm:$0xff]
        %v2931 = vld [vmem:[#allocation10 + $0x388] sm:$0xff]
        %v2932 = vld [vmem:[#allocation10 + $0x390] sm:$0xff]
        %v2933 = vld [vmem:[#allocation10 + $0x398] sm:$0xff]
        %v2934 = vld [vmem:[#allocation10 + $0x3a0] sm:$0xff]
        %v2935 = vld [vmem:[#allocation10 + $0x3a8] sm:$0xff]
        %v2936 = vld [vmem:[#allocation10 + $0x3b0] sm:$0xff]
        %v2937 = vld [vmem:[#allocation10 + $0x3b8] sm:$0xff]
        %v2938 = vld [vmem:[#allocation10 + $0x3c0] sm:$0xff]
        %v2939 = vld [vmem:[#allocation10 + $0x3c8] sm:$0xff]
        %v2940 = vld [vmem:[#allocation10 + $0x3d0] sm:$0xff]
        %v2941 = vld [vmem:[#allocation10 + $0x3d8] sm:$0xff]
        %v2942 = vld [vmem:[#allocation10 + $0x3e0] sm:$0xff]
        %v2943 = vld [vmem:[#allocation10 + $0x3e8] sm:$0xff]
        %v2944 = vld [vmem:[#allocation10 + $0x3f0] sm:$0xff]
        %v2945 = vld [vmem:[#allocation10 + $0x3f8] sm:$0xff]
        %v2946 = vld [vmem:[%s7] sm:$0xff]
        %v2948 = vlaneseq
        %v2949 = vshrl.u32 %v2948, 7
        %v2950 = vsub.s32 0, %v2949
        %v2951 = vrot.slane %v2946, %v2950
        %v2952 = vlaneseq
        %v2953 = vshrl.u32 %v2952, 7
        %v2954 = vsub.s32 1, %v2953
        %v2955 = vrot.slane %v2946, %v2954
        %v2956 = vlaneseq
        %v2957 = vshrl.u32 %v2956, 7
        %v2958 = vsub.s32 2, %v2957
        %v2959 = vrot.slane %v2946, %v2958
        %v2960 = vlaneseq
        %v2961 = vshrl.u32 %v2960, 7
        %v2962 = vsub.s32 3, %v2961
        %v2963 = vrot.slane %v2946, %v2962
        %v2964 = vlaneseq
        %v2965 = vshrl.u32 %v2964, 7
        %v2966 = vsub.s32 4, %v2965
        %v2967 = vrot.slane %v2946, %v2966
        %v2968 = vlaneseq
        %v2969 = vshrl.u32 %v2968, 7
        %v2970 = vsub.s32 5, %v2969
        %v2971 = vrot.slane %v2946, %v2970
        %v2972 = vlaneseq
        %v2973 = vshrl.u32 %v2972, 7
        %v2974 = vsub.s32 6, %v2973
        %v2975 = vrot.slane %v2946, %v2974
        %v2976 = vlaneseq
        %v2977 = vshrl.u32 %v2976, 7
        %v2978 = vsub.s32 7, %v2977
        %v2979 = vrot.slane %v2946, %v2978
        %v3116 = vunpack.c.l.b16 %v2818
        %v3117 = vunpack.c.h.b16 %v2818
        %v3118 = vunpack.c.l.b16 %v2819
        %v3119 = vunpack.c.h.b16 %v2819
        %v3120 = vunpack.c.l.b16 %v2820
        %v3121 = vunpack.c.h.b16 %v2820
        %v3122 = vunpack.c.l.b16 %v2821
        %v3123 = vunpack.c.h.b16 %v2821
        %v3124 = vunpack.c.l.b16 %v2822
        %v3125 = vunpack.c.h.b16 %v2822
        %v3126 = vunpack.c.l.b16 %v2823
        %v3127 = vunpack.c.h.b16 %v2823
        %v3128 = vunpack.c.l.b16 %v2824
        %v3129 = vunpack.c.h.b16 %v2824
        %v3130 = vunpack.c.l.b16 %v2825
        %v3131 = vunpack.c.h.b16 %v2825
        %v3132 = vunpack.c.l.b16 %v2826
        %v3133 = vunpack.c.h.b16 %v2826
        %v3134 = vunpack.c.l.b16 %v2827
        %v3135 = vunpack.c.h.b16 %v2827
        %v3136 = vunpack.c.l.b16 %v2828
        %v3137 = vunpack.c.h.b16 %v2828
        %v3138 = vunpack.c.l.b16 %v2829
        %v3139 = vunpack.c.h.b16 %v2829
        %v3140 = vunpack.c.l.b16 %v2830
        %v3141 = vunpack.c.h.b16 %v2830
        %v3142 = vunpack.c.l.b16 %v2831
        %v3143 = vunpack.c.h.b16 %v2831
        %v3144 = vunpack.c.l.b16 %v2832
        %v3145 = vunpack.c.h.b16 %v2832
        %v3146 = vunpack.c.l.b16 %v2833
        %v3147 = vunpack.c.h.b16 %v2833
        %v3148 = vunpack.c.l.b16 %v2834
        %v3149 = vunpack.c.h.b16 %v2834
        %v3150 = vunpack.c.l.b16 %v2835
        %v3151 = vunpack.c.h.b16 %v2835
        %v3152 = vunpack.c.l.b16 %v2836
        %v3153 = vunpack.c.h.b16 %v2836
        %v3154 = vunpack.c.l.b16 %v2837
        %v3155 = vunpack.c.h.b16 %v2837
        %v3156 = vunpack.c.l.b16 %v2838
        %v3157 = vunpack.c.h.b16 %v2838
        %v3158 = vunpack.c.l.b16 %v2839
        %v3159 = vunpack.c.h.b16 %v2839
        %v3160 = vunpack.c.l.b16 %v2840
        %v3161 = vunpack.c.h.b16 %v2840
        %v3162 = vunpack.c.l.b16 %v2841
        %v3163 = vunpack.c.h.b16 %v2841
        %v3164 = vunpack.c.l.b16 %v2842
        %v3165 = vunpack.c.h.b16 %v2842
        %v3166 = vunpack.c.l.b16 %v2843
        %v3167 = vunpack.c.h.b16 %v2843
        %v3168 = vunpack.c.l.b16 %v2844
        %v3169 = vunpack.c.h.b16 %v2844
        %v3170 = vunpack.c.l.b16 %v2845
        %v3171 = vunpack.c.h.b16 %v2845
        %v3172 = vunpack.c.l.b16 %v2846
        %v3173 = vunpack.c.h.b16 %v2846
        %v3174 = vunpack.c.l.b16 %v2847
        %v3175 = vunpack.c.h.b16 %v2847
        %v3176 = vunpack.c.l.b16 %v2848
        %v3177 = vunpack.c.h.b16 %v2848
        %v3178 = vunpack.c.l.b16 %v2849
        %v3179 = vunpack.c.h.b16 %v2849
        %v3180 = vunpack.c.l.b16 %v2850
        %v3181 = vunpack.c.h.b16 %v2850
        %v3182 = vunpack.c.l.b16 %v2851
        %v3183 = vunpack.c.h.b16 %v2851
        %v3184 = vunpack.c.l.b16 %v2852
        %v3185 = vunpack.c.h.b16 %v2852
        %v3186 = vunpack.c.l.b16 %v2853
        %v3187 = vunpack.c.h.b16 %v2853
        %v3188 = vunpack.c.l.b16 %v2854
        %v3189 = vunpack.c.h.b16 %v2854
        %v3190 = vunpack.c.l.b16 %v2855
        %v3191 = vunpack.c.h.b16 %v2855
        %v3192 = vunpack.c.l.b16 %v2856
        %v3193 = vunpack.c.h.b16 %v2856
        %v3194 = vunpack.c.l.b16 %v2857
        %v3195 = vunpack.c.h.b16 %v2857
        %v3196 = vunpack.c.l.b16 %v2858
        %v3197 = vunpack.c.h.b16 %v2858
        %v3198 = vunpack.c.l.b16 %v2859
        %v3199 = vunpack.c.h.b16 %v2859
        %v3200 = vunpack.c.l.b16 %v2860
        %v3201 = vunpack.c.h.b16 %v2860
        %v3202 = vunpack.c.l.b16 %v2861
        %v3203 = vunpack.c.h.b16 %v2861
        %v3204 = vunpack.c.l.b16 %v2862
        %v3205 = vunpack.c.h.b16 %v2862
        %v3206 = vunpack.c.l.b16 %v2863
        %v3207 = vunpack.c.h.b16 %v2863
        %v3208 = vunpack.c.l.b16 %v2864
        %v3209 = vunpack.c.h.b16 %v2864
        %v3210 = vunpack.c.l.b16 %v2865
        %v3211 = vunpack.c.h.b16 %v2865
        %v3212 = vunpack.c.l.b16 %v2866
        %v3213 = vunpack.c.h.b16 %v2866
        %v3214 = vunpack.c.l.b16 %v2867
        %v3215 = vunpack.c.h.b16 %v2867
        %v3216 = vunpack.c.l.b16 %v2868
        %v3217 = vunpack.c.h.b16 %v2868
        %v3218 = vunpack.c.l.b16 %v2869
        %v3219 = vunpack.c.h.b16 %v2869
        %v3220 = vunpack.c.l.b16 %v2870
        %v3221 = vunpack.c.h.b16 %v2870
        %v3222 = vunpack.c.l.b16 %v2871
        %v3223 = vunpack.c.h.b16 %v2871
        %v3224 = vunpack.c.l.b16 %v2872
        %v3225 = vunpack.c.h.b16 %v2872
        %v3226 = vunpack.c.l.b16 %v2873
        %v3227 = vunpack.c.h.b16 %v2873
        %v3228 = vunpack.c.l.b16 %v2874
        %v3229 = vunpack.c.h.b16 %v2874
        %v3230 = vunpack.c.l.b16 %v2875
        %v3231 = vunpack.c.h.b16 %v2875
        %v3232 = vunpack.c.l.b16 %v2876
        %v3233 = vunpack.c.h.b16 %v2876
        %v3234 = vunpack.c.l.b16 %v2877
        %v3235 = vunpack.c.h.b16 %v2877
        %v3236 = vunpack.c.l.b16 %v2878
        %v3237 = vunpack.c.h.b16 %v2878
        %v3238 = vunpack.c.l.b16 %v2879
        %v3239 = vunpack.c.h.b16 %v2879
        %v3240 = vunpack.c.l.b16 %v2880
        %v3241 = vunpack.c.h.b16 %v2880
        %v3242 = vunpack.c.l.b16 %v2881
        %v3243 = vunpack.c.h.b16 %v2881
        %v3244 = vunpack.c.l.b16 %v2882
        %v3245 = vunpack.c.h.b16 %v2882
        %v3246 = vunpack.c.l.b16 %v2883
        %v3247 = vunpack.c.h.b16 %v2883
        %v3248 = vunpack.c.l.b16 %v2884
        %v3249 = vunpack.c.h.b16 %v2884
        %v3250 = vunpack.c.l.b16 %v2885
        %v3251 = vunpack.c.h.b16 %v2885
        %v3252 = vunpack.c.l.b16 %v2886
        %v3253 = vunpack.c.h.b16 %v2886
        %v3254 = vunpack.c.l.b16 %v2887
        %v3255 = vunpack.c.h.b16 %v2887
        %v3256 = vunpack.c.l.b16 %v2888
        %v3257 = vunpack.c.h.b16 %v2888
        %v3258 = vunpack.c.l.b16 %v2889
        %v3259 = vunpack.c.h.b16 %v2889
        %v3260 = vunpack.c.l.b16 %v2890
        %v3261 = vunpack.c.h.b16 %v2890
        %v3262 = vunpack.c.l.b16 %v2891
        %v3263 = vunpack.c.h.b16 %v2891
        %v3264 = vunpack.c.l.b16 %v2892
        %v3265 = vunpack.c.h.b16 %v2892
        %v3266 = vunpack.c.l.b16 %v2893
        %v3267 = vunpack.c.h.b16 %v2893
        %v3268 = vunpack.c.l.b16 %v2894
        %v3269 = vunpack.c.h.b16 %v2894
        %v3270 = vunpack.c.l.b16 %v2895
        %v3271 = vunpack.c.h.b16 %v2895
        %v3272 = vunpack.c.l.b16 %v2896
        %v3273 = vunpack.c.h.b16 %v2896
        %v3274 = vunpack.c.l.b16 %v2897
        %v3275 = vunpack.c.h.b16 %v2897
        %v3276 = vunpack.c.l.b16 %v2898
        %v3277 = vunpack.c.h.b16 %v2898
        %v3278 = vunpack.c.l.b16 %v2899
        %v3279 = vunpack.c.h.b16 %v2899
        %v3280 = vunpack.c.l.b16 %v2900
        %v3281 = vunpack.c.h.b16 %v2900
        %v3282 = vunpack.c.l.b16 %v2901
        %v3283 = vunpack.c.h.b16 %v2901
        %v3284 = vunpack.c.l.b16 %v2902
        %v3285 = vunpack.c.h.b16 %v2902
        %v3286 = vunpack.c.l.b16 %v2903
        %v3287 = vunpack.c.h.b16 %v2903
        %v3288 = vunpack.c.l.b16 %v2904
        %v3289 = vunpack.c.h.b16 %v2904
        %v3290 = vunpack.c.l.b16 %v2905
        %v3291 = vunpack.c.h.b16 %v2905
        %v3292 = vunpack.c.l.b16 %v2906
        %v3293 = vunpack.c.h.b16 %v2906
        %v3294 = vunpack.c.l.b16 %v2907
        %v3295 = vunpack.c.h.b16 %v2907
        %v3296 = vunpack.c.l.b16 %v2908
        %v3297 = vunpack.c.h.b16 %v2908
        %v3298 = vunpack.c.l.b16 %v2909
        %v3299 = vunpack.c.h.b16 %v2909
        %v3300 = vunpack.c.l.b16 %v2910
        %v3301 = vunpack.c.h.b16 %v2910
        %v3302 = vunpack.c.l.b16 %v2911
        %v3303 = vunpack.c.h.b16 %v2911
        %v3304 = vunpack.c.l.b16 %v2912
        %v3305 = vunpack.c.h.b16 %v2912
        %v3306 = vunpack.c.l.b16 %v2913
        %v3307 = vunpack.c.h.b16 %v2913
        %v3308 = vunpack.c.l.b16 %v2914
        %v3309 = vunpack.c.h.b16 %v2914
        %v3310 = vunpack.c.l.b16 %v2915
        %v3311 = vunpack.c.h.b16 %v2915
        %v3312 = vunpack.c.l.b16 %v2916
        %v3313 = vunpack.c.h.b16 %v2916
        %v3314 = vunpack.c.l.b16 %v2917
        %v3315 = vunpack.c.h.b16 %v2917
        %v3316 = vunpack.c.l.b16 %v2918
        %v3317 = vunpack.c.h.b16 %v2918
        %v3318 = vunpack.c.l.b16 %v2919
        %v3319 = vunpack.c.h.b16 %v2919
        %v3320 = vunpack.c.l.b16 %v2920
        %v3321 = vunpack.c.h.b16 %v2920
        %v3322 = vunpack.c.l.b16 %v2921
        %v3323 = vunpack.c.h.b16 %v2921
        %v3324 = vunpack.c.l.b16 %v2922
        %v3325 = vunpack.c.h.b16 %v2922
        %v3326 = vunpack.c.l.b16 %v2923
        %v3327 = vunpack.c.h.b16 %v2923
        %v3328 = vunpack.c.l.b16 %v2924
        %v3329 = vunpack.c.h.b16 %v2924
        %v3330 = vunpack.c.l.b16 %v2925
        %v3331 = vunpack.c.h.b16 %v2925
        %v3332 = vunpack.c.l.b16 %v2926
        %v3333 = vunpack.c.h.b16 %v2926
        %v3334 = vunpack.c.l.b16 %v2927
        %v3335 = vunpack.c.h.b16 %v2927
        %v3336 = vunpack.c.l.b16 %v2928
        %v3337 = vunpack.c.h.b16 %v2928
        %v3338 = vunpack.c.l.b16 %v2929
        %v3339 = vunpack.c.h.b16 %v2929
        %v3340 = vunpack.c.l.b16 %v2930
        %v3341 = vunpack.c.h.b16 %v2930
        %v3342 = vunpack.c.l.b16 %v2931
        %v3343 = vunpack.c.h.b16 %v2931
        %v3344 = vunpack.c.l.b16 %v2932
        %v3345 = vunpack.c.h.b16 %v2932
        %v3346 = vunpack.c.l.b16 %v2933
        %v3347 = vunpack.c.h.b16 %v2933
        %v3348 = vunpack.c.l.b16 %v2934
        %v3349 = vunpack.c.h.b16 %v2934
        %v3350 = vunpack.c.l.b16 %v2935
        %v3351 = vunpack.c.h.b16 %v2935
        %v3352 = vunpack.c.l.b16 %v2936
        %v3353 = vunpack.c.h.b16 %v2936
        %v3354 = vunpack.c.l.b16 %v2937
        %v3355 = vunpack.c.h.b16 %v2937
        %v3356 = vunpack.c.l.b16 %v2938
        %v3357 = vunpack.c.h.b16 %v2938
        %v3358 = vunpack.c.l.b16 %v2939
        %v3359 = vunpack.c.h.b16 %v2939
        %v3360 = vunpack.c.l.b16 %v2940
        %v3361 = vunpack.c.h.b16 %v2940
        %v3362 = vunpack.c.l.b16 %v2941
        %v3363 = vunpack.c.h.b16 %v2941
        %v3364 = vunpack.c.l.b16 %v2942
        %v3365 = vunpack.c.h.b16 %v2942
        %v3366 = vunpack.c.l.b16 %v2943
        %v3367 = vunpack.c.h.b16 %v2943
        %v3368 = vunpack.c.l.b16 %v2944
        %v3369 = vunpack.c.h.b16 %v2944
        %v3370 = vunpack.c.l.b16 %v2945
        %v3371 = vunpack.c.h.b16 %v2945
        %v3372 = vpack.c.b16 %v3124, %v3116
        %v3373 = vpack.c.b16 %v3125, %v3117
        %v3374 = vpack.c.b16 %v3126, %v3118
        %v3375 = vpack.c.b16 %v3127, %v3119
        %v3376 = vpack.c.b16 %v3128, %v3120
        %v3377 = vpack.c.b16 %v3129, %v3121
        %v3378 = vpack.c.b16 %v3130, %v3122
        %v3379 = vpack.c.b16 %v3131, %v3123
        %v3380 = vpack.c.b16 %v3140, %v3132
        %v3381 = vpack.c.b16 %v3141, %v3133
        %v3382 = vpack.c.b16 %v3142, %v3134
        %v3383 = vpack.c.b16 %v3143, %v3135
        %v3384 = vpack.c.b16 %v3144, %v3136
        %v3385 = vpack.c.b16 %v3145, %v3137
        %v3386 = vpack.c.b16 %v3146, %v3138
        %v3387 = vpack.c.b16 %v3147, %v3139
        %v3388 = vpack.c.b16 %v3156, %v3148
        %v3389 = vpack.c.b16 %v3157, %v3149
        %v3390 = vpack.c.b16 %v3158, %v3150
        %v3391 = vpack.c.b16 %v3159, %v3151
        %v3392 = vpack.c.b16 %v3160, %v3152
        %v3393 = vpack.c.b16 %v3161, %v3153
        %v3394 = vpack.c.b16 %v3162, %v3154
        %v3395 = vpack.c.b16 %v3163, %v3155
        %v3396 = vpack.c.b16 %v3172, %v3164
        %v3397 = vpack.c.b16 %v3173, %v3165
        %v3398 = vpack.c.b16 %v3174, %v3166
        %v3399 = vpack.c.b16 %v3175, %v3167
        %v3400 = vpack.c.b16 %v3176, %v3168
        %v3401 = vpack.c.b16 %v3177, %v3169
        %v3402 = vpack.c.b16 %v3178, %v3170
        %v3403 = vpack.c.b16 %v3179, %v3171
        %v3404 = vpack.c.b16 %v3188, %v3180
        %v3405 = vpack.c.b16 %v3189, %v3181
        %v3406 = vpack.c.b16 %v3190, %v3182
        %v3407 = vpack.c.b16 %v3191, %v3183
        %v3408 = vpack.c.b16 %v3192, %v3184
        %v3409 = vpack.c.b16 %v3193, %v3185
        %v3410 = vpack.c.b16 %v3194, %v3186
        %v3411 = vpack.c.b16 %v3195, %v3187
        %v3412 = vpack.c.b16 %v3204, %v3196
        %v3413 = vpack.c.b16 %v3205, %v3197
        %v3414 = vpack.c.b16 %v3206, %v3198
        %v3415 = vpack.c.b16 %v3207, %v3199
        %v3416 = vpack.c.b16 %v3208, %v3200
        %v3417 = vpack.c.b16 %v3209, %v3201
        %v3418 = vpack.c.b16 %v3210, %v3202
        %v3419 = vpack.c.b16 %v3211, %v3203
        %v3420 = vpack.c.b16 %v3220, %v3212
        %v3421 = vpack.c.b16 %v3221, %v3213
        %v3422 = vpack.c.b16 %v3222, %v3214
        %v3423 = vpack.c.b16 %v3223, %v3215
        %v3424 = vpack.c.b16 %v3224, %v3216
        %v3425 = vpack.c.b16 %v3225, %v3217
        %v3426 = vpack.c.b16 %v3226, %v3218
        %v3427 = vpack.c.b16 %v3227, %v3219
        %v3428 = vpack.c.b16 %v3236, %v3228
        %v3429 = vpack.c.b16 %v3237, %v3229
        %v3430 = vpack.c.b16 %v3238, %v3230
        %v3431 = vpack.c.b16 %v3239, %v3231
        %v3432 = vpack.c.b16 %v3240, %v3232
        %v3433 = vpack.c.b16 %v3241, %v3233
        %v3434 = vpack.c.b16 %v3242, %v3234
        %v3435 = vpack.c.b16 %v3243, %v3235
        %v3436 = vpack.c.b16 %v3252, %v3244
        %v3437 = vpack.c.b16 %v3253, %v3245
        %v3438 = vpack.c.b16 %v3254, %v3246
        %v3439 = vpack.c.b16 %v3255, %v3247
        %v3440 = vpack.c.b16 %v3256, %v3248
        %v3441 = vpack.c.b16 %v3257, %v3249
        %v3442 = vpack.c.b16 %v3258, %v3250
        %v3443 = vpack.c.b16 %v3259, %v3251
        %v3444 = vpack.c.b16 %v3268, %v3260
        %v3445 = vpack.c.b16 %v3269, %v3261
        %v3446 = vpack.c.b16 %v3270, %v3262
        %v3447 = vpack.c.b16 %v3271, %v3263
        %v3448 = vpack.c.b16 %v3272, %v3264
        %v3449 = vpack.c.b16 %v3273, %v3265
        %v3450 = vpack.c.b16 %v3274, %v3266
        %v3451 = vpack.c.b16 %v3275, %v3267
        %v3452 = vpack.c.b16 %v3284, %v3276
        %v3453 = vpack.c.b16 %v3285, %v3277
        %v3454 = vpack.c.b16 %v3286, %v3278
        %v3455 = vpack.c.b16 %v3287, %v3279
        %v3456 = vpack.c.b16 %v3288, %v3280
        %v3457 = vpack.c.b16 %v3289, %v3281
        %v3458 = vpack.c.b16 %v3290, %v3282
        %v3459 = vpack.c.b16 %v3291, %v3283
        %v3460 = vpack.c.b16 %v3300, %v3292
        %v3461 = vpack.c.b16 %v3301, %v3293
        %v3462 = vpack.c.b16 %v3302, %v3294
        %v3463 = vpack.c.b16 %v3303, %v3295
        %v3464 = vpack.c.b16 %v3304, %v3296
        %v3465 = vpack.c.b16 %v3305, %v3297
        %v3466 = vpack.c.b16 %v3306, %v3298
        %v3467 = vpack.c.b16 %v3307, %v3299
        %v3468 = vpack.c.b16 %v3316, %v3308
        %v3469 = vpack.c.b16 %v3317, %v3309
        %v3470 = vpack.c.b16 %v3318, %v3310
        %v3471 = vpack.c.b16 %v3319, %v3311
        %v3472 = vpack.c.b16 %v3320, %v3312
        %v3473 = vpack.c.b16 %v3321, %v3313
        %v3474 = vpack.c.b16 %v3322, %v3314
        %v3475 = vpack.c.b16 %v3323, %v3315
        %v3476 = vpack.c.b16 %v3332, %v3324
        %v3477 = vpack.c.b16 %v3333, %v3325
        %v3478 = vpack.c.b16 %v3334, %v3326
        %v3479 = vpack.c.b16 %v3335, %v3327
        %v3480 = vpack.c.b16 %v3336, %v3328
        %v3481 = vpack.c.b16 %v3337, %v3329
        %v3482 = vpack.c.b16 %v3338, %v3330
        %v3483 = vpack.c.b16 %v3339, %v3331
        %v3484 = vpack.c.b16 %v3348, %v3340
        %v3485 = vpack.c.b16 %v3349, %v3341
        %v3486 = vpack.c.b16 %v3350, %v3342
        %v3487 = vpack.c.b16 %v3351, %v3343
        %v3488 = vpack.c.b16 %v3352, %v3344
        %v3489 = vpack.c.b16 %v3353, %v3345
        %v3490 = vpack.c.b16 %v3354, %v3346
        %v3491 = vpack.c.b16 %v3355, %v3347
        %v3492 = vpack.c.b16 %v3364, %v3356
        %v3493 = vpack.c.b16 %v3365, %v3357
        %v3494 = vpack.c.b16 %v3366, %v3358
        %v3495 = vpack.c.b16 %v3367, %v3359
        %v3496 = vpack.c.b16 %v3368, %v3360
        %v3497 = vpack.c.b16 %v3369, %v3361
        %v3498 = vpack.c.b16 %v3370, %v3362
        %v3499 = vpack.c.b16 %v3371, %v3363
        %3628 = vmatprep.subr.bf16.mxu0 %v3429
        %3629 = vmatpush1.bf16.msra.mxu0 %v3428
        %3630 = vmatprep.subr.bf16.mxu0 %v3421
        %3631 = vmatpush1.bf16.msra.mxu0 %v3420
        %3632 = vmatprep.subr.bf16.mxu0 %v3413
        %3633 = vmatpush1.bf16.msra.mxu0 %v3412
        %3634 = vmatprep.subr.bf16.mxu0 %v3405
        %3635 = vmatpush1.bf16.msra.mxu0 %v3404
        %3636 = vmatprep.subr.bf16.mxu0 %v3397
        %3637 = vmatpush1.bf16.msra.mxu0 %v3396
        %3638 = vmatprep.subr.bf16.mxu0 %v3389
        %3639 = vmatpush1.bf16.msra.mxu0 %v3388
        %3640 = vmatprep.subr.bf16.mxu0 %v3381
        %3641 = vmatpush1.bf16.msra.mxu0 %v3380
        %3642 = vmatprep.subr.bf16.mxu0 %v3373
        %3643 = vmatpush1.bf16.msra.mxu0 %v3372
        %3644 = vmatprep.subr.bf16.mxu0 %v3493
        %3645 = vmatpush2.bf16.msra.mxu0 %v3492
        %3646 = vmatprep.subr.bf16.mxu0 %v3485
        %3647 = vmatpush2.bf16.msra.mxu0 %v3484
        %3648 = vmatprep.subr.bf16.mxu0 %v3477
        %3649 = vmatpush2.bf16.msra.mxu0 %v3476
        %3650 = vmatprep.subr.bf16.mxu0 %v3469
        %3651 = vmatpush2.bf16.msra.mxu0 %v3468
        %3652 = vmatprep.subr.bf16.mxu0 %v3461
        %3653 = vmatpush2.bf16.msra.mxu0 %v3460
        %3654 = vmatprep.subr.bf16.mxu0 %v3453
        %3655 = vmatpush2.bf16.msra.mxu0 %v3452
        %3656 = vmatprep.subr.bf16.mxu0 %v3445
        %3657 = vmatpush2.bf16.msra.mxu0 %v3444
        %3658 = vmatprep.subr.bf16.mxu0 %v3437
        %3659 = vmatpush2.bf16.msra.mxu0 %v3436
        %3660 = vmatprep.mubr.bf16.mxu0 %v2817
        %3661 = vmatmul.mubr.bf16.gmra.mxu0 %v2816
        %v3662 = vpop.f32.mrf.mxu0
        %v3663 = vadd.f32 %v2951, %v3662
        %v3664 = vpop.f32.mrf.mxu0
        %v3665 = vadd.f32 %v2955, %v3664
        %v3666 = vpop.f32.mrf.mxu0
        %v3667 = vpop.f32.mrf.mxu0
        %3668 = vdwg.mxu0
        %3669 = vmatprep.subr.bf16.mxu0 %v3431
        %3670 = vmatpush1.bf16.msra.mxu0 %v3430
        %3671 = vmatprep.subr.bf16.mxu0 %v3423
        %3672 = vmatpush1.bf16.msra.mxu0 %v3422
        %3673 = vmatprep.subr.bf16.mxu0 %v3415
        %3674 = vmatpush1.bf16.msra.mxu0 %v3414
        %3675 = vmatprep.subr.bf16.mxu0 %v3407
        %3676 = vmatpush1.bf16.msra.mxu0 %v3406
        %3677 = vmatprep.subr.bf16.mxu0 %v3399
        %3678 = vmatpush1.bf16.msra.mxu0 %v3398
        %3679 = vmatprep.subr.bf16.mxu0 %v3391
        %3680 = vmatpush1.bf16.msra.mxu0 %v3390
        %3681 = vmatprep.subr.bf16.mxu0 %v3383
        %3682 = vmatpush1.bf16.msra.mxu0 %v3382
        %3683 = vmatprep.subr.bf16.mxu0 %v3375
        %3684 = vmatpush1.bf16.msra.mxu0 %v3374
        %3685 = vmatprep.subr.bf16.mxu0 %v3495
        %3686 = vmatpush2.bf16.msra.mxu0 %v3494
        %3687 = vmatprep.subr.bf16.mxu0 %v3487
        %3688 = vmatpush2.bf16.msra.mxu0 %v3486
        %3689 = vmatprep.subr.bf16.mxu0 %v3479
        %3690 = vmatpush2.bf16.msra.mxu0 %v3478
        %3691 = vmatprep.subr.bf16.mxu0 %v3471
        %3692 = vmatpush2.bf16.msra.mxu0 %v3470
        %3693 = vmatprep.subr.bf16.mxu0 %v3463
        %3694 = vmatpush2.bf16.msra.mxu0 %v3462
        %3695 = vmatprep.subr.bf16.mxu0 %v3455
        %3696 = vmatpush2.bf16.msra.mxu0 %v3454
        %3697 = vmatprep.subr.bf16.mxu0 %v3447
        %3698 = vmatpush2.bf16.msra.mxu0 %v3446
        %3699 = vmatprep.subr.bf16.mxu0 %v3439
        %3700 = vmatpush2.bf16.msra.mxu0 %v3438
        %3701 = vmatprep.mubr.bf16.mxu0 %v2817
        %3702 = vmatmul.mubr.bf16.gmra.mxu0 %v2816
        %v3703 = vpop.f32.mrf.mxu0
        %v3704 = vadd.f32 %v2959, %v3703
        %v3705 = vpop.f32.mrf.mxu0
        %v3706 = vadd.f32 %v2963, %v3705
        %v3707 = vpop.f32.mrf.mxu0
        %v3708 = vpop.f32.mrf.mxu0
        %3709 = vdwg.mxu0
        %3710 = vmatprep.subr.bf16.mxu0 %v3433
        %3711 = vmatpush1.bf16.msra.mxu0 %v3432
        %3712 = vmatprep.subr.bf16.mxu0 %v3425
        %3713 = vmatpush1.bf16.msra.mxu0 %v3424
        %3714 = vmatprep.subr.bf16.mxu0 %v3417
        %3715 = vmatpush1.bf16.msra.mxu0 %v3416
        %3716 = vmatprep.subr.bf16.mxu0 %v3409
        %3717 = vmatpush1.bf16.msra.mxu0 %v3408
        %3718 = vmatprep.subr.bf16.mxu0 %v3401
        %3719 = vmatpush1.bf16.msra.mxu0 %v3400
        %3720 = vmatprep.subr.bf16.mxu0 %v3393
        %3721 = vmatpush1.bf16.msra.mxu0 %v3392
        %3722 = vmatprep.subr.bf16.mxu0 %v3385
        %3723 = vmatpush1.bf16.msra.mxu0 %v3384
        %3724 = vmatprep.subr.bf16.mxu0 %v3377
        %3725 = vmatpush1.bf16.msra.mxu0 %v3376
        %3726 = vmatprep.subr.bf16.mxu0 %v3497
        %3727 = vmatpush2.bf16.msra.mxu0 %v3496
        %3728 = vmatprep.subr.bf16.mxu0 %v3489
        %3729 = vmatpush2.bf16.msra.mxu0 %v3488
        %3730 = vmatprep.subr.bf16.mxu0 %v3481
        %3731 = vmatpush2.bf16.msra.mxu0 %v3480
        %3732 = vmatprep.subr.bf16.mxu0 %v3473
        %3733 = vmatpush2.bf16.msra.mxu0 %v3472
        %3734 = vmatprep.subr.bf16.mxu0 %v3465
        %3735 = vmatpush2.bf16.msra.mxu0 %v3464
        %3736 = vmatprep.subr.bf16.mxu0 %v3457
        %3737 = vmatpush2.bf16.msra.mxu0 %v3456
        %3738 = vmatprep.subr.bf16.mxu0 %v3449
        %3739 = vmatpush2.bf16.msra.mxu0 %v3448
        %3740 = vmatprep.subr.bf16.mxu0 %v3441
        %3741 = vmatpush2.bf16.msra.mxu0 %v3440
        %3742 = vmatprep.mubr.bf16.mxu0 %v2817
        %3743 = vmatmul.mubr.bf16.gmra.mxu0 %v2816
        %v3744 = vpop.f32.mrf.mxu0
        %v3745 = vadd.f32 %v2967, %v3744
        %v3746 = vpop.f32.mrf.mxu0
        %v3747 = vadd.f32 %v2971, %v3746
        %v3748 = vpop.f32.mrf.mxu0
        %v3749 = vpop.f32.mrf.mxu0
        %3750 = vdwg.mxu0
        %3751 = vmatprep.subr.bf16.mxu0 %v3435
        %3752 = vmatpush1.bf16.msra.mxu0 %v3434
        %3753 = vmatprep.subr.bf16.mxu0 %v3427
        %3754 = vmatpush1.bf16.msra.mxu0 %v3426
        %3755 = vmatprep.subr.bf16.mxu0 %v3419
        %3756 = vmatpush1.bf16.msra.mxu0 %v3418
        %3757 = vmatprep.subr.bf16.mxu0 %v3411
        %3758 = vmatpush1.bf16.msra.mxu0 %v3410
        %3759 = vmatprep.subr.bf16.mxu0 %v3403
        %3760 = vmatpush1.bf16.msra.mxu0 %v3402
        %3761 = vmatprep.subr.bf16.mxu0 %v3395
        %3762 = vmatpush1.bf16.msra.mxu0 %v3394
        %3763 = vmatprep.subr.bf16.mxu0 %v3387
        %3764 = vmatpush1.bf16.msra.mxu0 %v3386
        %3765 = vmatprep.subr.bf16.mxu0 %v3379
        %3766 = vmatpush1.bf16.msra.mxu0 %v3378
        %3767 = vmatprep.subr.bf16.mxu0 %v3499
        %3768 = vmatpush2.bf16.msra.mxu0 %v3498
        %3769 = vmatprep.subr.bf16.mxu0 %v3491
        %3770 = vmatpush2.bf16.msra.mxu0 %v3490
        %3771 = vmatprep.subr.bf16.mxu0 %v3483
        %3772 = vmatpush2.bf16.msra.mxu0 %v3482
        %3773 = vmatprep.subr.bf16.mxu0 %v3475
        %3774 = vmatpush2.bf16.msra.mxu0 %v3474
        %3775 = vmatprep.subr.bf16.mxu0 %v3467
        %3776 = vmatpush2.bf16.msra.mxu0 %v3466
        %3777 = vmatprep.subr.bf16.mxu0 %v3459
        %3778 = vmatpush2.bf16.msra.mxu0 %v3458
        %3779 = vmatprep.subr.bf16.mxu0 %v3451
        %3780 = vmatpush2.bf16.msra.mxu0 %v3450
        %3781 = vmatprep.subr.bf16.mxu0 %v3443
        %3782 = vmatpush2.bf16.msra.mxu0 %v3442
        %3783 = vmatprep.mubr.bf16.mxu0 %v2817
        %3784 = vmatmul.mubr.bf16.gmra.mxu0 %v2816
        %v3785 = vpop.f32.mrf.mxu0
        %v3786 = vadd.f32 %v2975, %v3785
        %v3787 = vpop.f32.mrf.mxu0
        %v3788 = vadd.f32 %v2979, %v3787
        %v3789 = vpop.f32.mrf.mxu0
        %v3790 = vpop.f32.mrf.mxu0
        %3791 = vdwg.mxu0
        %v3792 = vmax.f32 %v3663, 0.0
        %v3793 = vmax.f32 %v3665, 0.0
        %v3794 = vmax.f32 %v3704, 0.0
        %v3795 = vmax.f32 %v3706, 0.0
        %v3796 = vmax.f32 %v3745, 0.0
        %v3797 = vmax.f32 %v3747, 0.0
        %v3798 = vmax.f32 %v3786, 0.0
        %v3799 = vmax.f32 %v3788, 0.0
        %v3800 = vpack.c.bf16 %v3792, %v3792
        %v3801 = vpack.c.bf16 %v3793, %v3793
        %v3802 = vpack.c.bf16 %v3794, %v3794
        %v3803 = vpack.c.bf16 %v3795, %v3795
        %v3804 = vpack.c.bf16 %v3796, %v3796
        %v3805 = vpack.c.bf16 %v3797, %v3797
        %v3806 = vpack.c.bf16 %v3798, %v3798
        %v3807 = vpack.c.bf16 %v3799, %v3799
        %v3808 = vld [vmem:[#allocation12] sm:$0xf]
        %v3809 = vld [vmem:[#allocation12 + $0x4] sm:$0xf]
        %v3810 = vld [vmem:[#allocation12 + $0x8] sm:$0xf]
        %v3811 = vld [vmem:[#allocation12 + $0xc] sm:$0xf]
        %v3812 = vld [vmem:[#allocation12 + $0x10] sm:$0xf]
        %v3813 = vld [vmem:[#allocation12 + $0x14] sm:$0xf]
        %v3814 = vld [vmem:[#allocation12 + $0x18] sm:$0xf]
        %v3815 = vld [vmem:[#allocation12 + $0x1c] sm:$0xf]
        %v3816 = vld [vmem:[#allocation12 + $0x20] sm:$0xf]
        %v3817 = vld [vmem:[#allocation12 + $0x24] sm:$0xf]
        %v3818 = vld [vmem:[#allocation12 + $0x28] sm:$0xf]
        %v3819 = vld [vmem:[#allocation12 + $0x2c] sm:$0xf]
        %v3820 = vld [vmem:[#allocation12 + $0x30] sm:$0xf]
        %v3821 = vld [vmem:[#allocation12 + $0x34] sm:$0xf]
        %v3822 = vld [vmem:[#allocation12 + $0x38] sm:$0xf]
        %v3823 = vld [vmem:[#allocation12 + $0x3c] sm:$0xf]
        %v3824 = vld [vmem:[#allocation12 + $0x40] sm:$0xf]
        %v3825 = vld [vmem:[#allocation12 + $0x44] sm:$0xf]
        %v3826 = vld [vmem:[#allocation12 + $0x48] sm:$0xf]
        %v3827 = vld [vmem:[#allocation12 + $0x4c] sm:$0xf]
        %v3828 = vld [vmem:[#allocation12 + $0x50] sm:$0xf]
        %v3829 = vld [vmem:[#allocation12 + $0x54] sm:$0xf]
        %v3830 = vld [vmem:[#allocation12 + $0x58] sm:$0xf]
        %v3831 = vld [vmem:[#allocation12 + $0x5c] sm:$0xf]
        %v3832 = vld [vmem:[#allocation12 + $0x60] sm:$0xf]
        %v3833 = vld [vmem:[#allocation12 + $0x64] sm:$0xf]
        %v3834 = vld [vmem:[#allocation12 + $0x68] sm:$0xf]
        %v3835 = vld [vmem:[#allocation12 + $0x6c] sm:$0xf]
        %v3836 = vld [vmem:[#allocation12 + $0x70] sm:$0xf]
        %v3837 = vld [vmem:[#allocation12 + $0x74] sm:$0xf]
        %v3838 = vld [vmem:[#allocation12 + $0x78] sm:$0xf]
        %v3839 = vld [vmem:[#allocation12 + $0x7c] sm:$0xf]
        %v3840 = vld [vmem:[#allocation12 + $0x80] sm:$0xf]
        %v3841 = vld [vmem:[#allocation12 + $0x84] sm:$0xf]
        %v3842 = vld [vmem:[#allocation12 + $0x88] sm:$0xf]
        %v3843 = vld [vmem:[#allocation12 + $0x8c] sm:$0xf]
        %v3844 = vld [vmem:[#allocation12 + $0x90] sm:$0xf]
        %v3845 = vld [vmem:[#allocation12 + $0x94] sm:$0xf]
        %v3846 = vld [vmem:[#allocation12 + $0x98] sm:$0xf]
        %v3847 = vld [vmem:[#allocation12 + $0x9c] sm:$0xf]
        %v3848 = vld [vmem:[#allocation12 + $0xa0] sm:$0xf]
        %v3849 = vld [vmem:[#allocation12 + $0xa4] sm:$0xf]
        %v3850 = vld [vmem:[#allocation12 + $0xa8] sm:$0xf]
        %v3851 = vld [vmem:[#allocation12 + $0xac] sm:$0xf]
        %v3852 = vld [vmem:[#allocation12 + $0xb0] sm:$0xf]
        %v3853 = vld [vmem:[#allocation12 + $0xb4] sm:$0xf]
        %v3854 = vld [vmem:[#allocation12 + $0xb8] sm:$0xf]
        %v3855 = vld [vmem:[#allocation12 + $0xbc] sm:$0xf]
        %v3856 = vld [vmem:[#allocation12 + $0xc0] sm:$0xf]
        %v3857 = vld [vmem:[#allocation12 + $0xc4] sm:$0xf]
        %v3858 = vld [vmem:[#allocation12 + $0xc8] sm:$0xf]
        %v3859 = vld [vmem:[#allocation12 + $0xcc] sm:$0xf]
        %v3860 = vld [vmem:[#allocation12 + $0xd0] sm:$0xf]
        %v3861 = vld [vmem:[#allocation12 + $0xd4] sm:$0xf]
        %v3862 = vld [vmem:[#allocation12 + $0xd8] sm:$0xf]
        %v3863 = vld [vmem:[#allocation12 + $0xdc] sm:$0xf]
        %v3864 = vld [vmem:[#allocation12 + $0xe0] sm:$0xf]
        %v3865 = vld [vmem:[#allocation12 + $0xe4] sm:$0xf]
        %v3866 = vld [vmem:[#allocation12 + $0xe8] sm:$0xf]
        %v3867 = vld [vmem:[#allocation12 + $0xec] sm:$0xf]
        %v3868 = vld [vmem:[#allocation12 + $0xf0] sm:$0xf]
        %v3869 = vld [vmem:[#allocation12 + $0xf4] sm:$0xf]
        %v3870 = vld [vmem:[#allocation12 + $0xf8] sm:$0xf]
        %v3871 = vld [vmem:[#allocation12 + $0xfc] sm:$0xf]
        %v3872 = vld [vmem:[#allocation12 + $0x100] sm:$0xf]
        %v3873 = vld [vmem:[#allocation12 + $0x104] sm:$0xf]
        %v3874 = vld [vmem:[#allocation12 + $0x108] sm:$0xf]
        %v3875 = vld [vmem:[#allocation12 + $0x10c] sm:$0xf]
        %v3876 = vld [vmem:[#allocation12 + $0x110] sm:$0xf]
        %v3877 = vld [vmem:[#allocation12 + $0x114] sm:$0xf]
        %v3878 = vld [vmem:[#allocation12 + $0x118] sm:$0xf]
        %v3879 = vld [vmem:[#allocation12 + $0x11c] sm:$0xf]
        %v3880 = vld [vmem:[#allocation12 + $0x120] sm:$0xf]
        %v3881 = vld [vmem:[#allocation12 + $0x124] sm:$0xf]
        %v3882 = vld [vmem:[#allocation12 + $0x128] sm:$0xf]
        %v3883 = vld [vmem:[#allocation12 + $0x12c] sm:$0xf]
        %v3884 = vld [vmem:[#allocation12 + $0x130] sm:$0xf]
        %v3885 = vld [vmem:[#allocation12 + $0x134] sm:$0xf]
        %v3886 = vld [vmem:[#allocation12 + $0x138] sm:$0xf]
        %v3887 = vld [vmem:[#allocation12 + $0x13c] sm:$0xf]
        %v3888 = vld [vmem:[#allocation12 + $0x140] sm:$0xf]
        %v3889 = vld [vmem:[#allocation12 + $0x144] sm:$0xf]
        %v3890 = vld [vmem:[#allocation12 + $0x148] sm:$0xf]
        %v3891 = vld [vmem:[#allocation12 + $0x14c] sm:$0xf]
        %v3892 = vld [vmem:[#allocation12 + $0x150] sm:$0xf]
        %v3893 = vld [vmem:[#allocation12 + $0x154] sm:$0xf]
        %v3894 = vld [vmem:[#allocation12 + $0x158] sm:$0xf]
        %v3895 = vld [vmem:[#allocation12 + $0x15c] sm:$0xf]
        %v3896 = vld [vmem:[#allocation12 + $0x160] sm:$0xf]
        %v3897 = vld [vmem:[#allocation12 + $0x164] sm:$0xf]
        %v3898 = vld [vmem:[#allocation12 + $0x168] sm:$0xf]
        %v3899 = vld [vmem:[#allocation12 + $0x16c] sm:$0xf]
        %v3900 = vld [vmem:[#allocation12 + $0x170] sm:$0xf]
        %v3901 = vld [vmem:[#allocation12 + $0x174] sm:$0xf]
        %v3902 = vld [vmem:[#allocation12 + $0x178] sm:$0xf]
        %v3903 = vld [vmem:[#allocation12 + $0x17c] sm:$0xf]
        %v3904 = vld [vmem:[#allocation12 + $0x180] sm:$0xf]
        %v3905 = vld [vmem:[#allocation12 + $0x184] sm:$0xf]
        %v3906 = vld [vmem:[#allocation12 + $0x188] sm:$0xf]
        %v3907 = vld [vmem:[#allocation12 + $0x18c] sm:$0xf]
        %v3908 = vld [vmem:[#allocation12 + $0x190] sm:$0xf]
        %v3909 = vld [vmem:[#allocation12 + $0x194] sm:$0xf]
        %v3910 = vld [vmem:[#allocation12 + $0x198] sm:$0xf]
        %v3911 = vld [vmem:[#allocation12 + $0x19c] sm:$0xf]
        %v3912 = vld [vmem:[#allocation12 + $0x1a0] sm:$0xf]
        %v3913 = vld [vmem:[#allocation12 + $0x1a4] sm:$0xf]
        %v3914 = vld [vmem:[#allocation12 + $0x1a8] sm:$0xf]
        %v3915 = vld [vmem:[#allocation12 + $0x1ac] sm:$0xf]
        %v3916 = vld [vmem:[#allocation12 + $0x1b0] sm:$0xf]
        %v3917 = vld [vmem:[#allocation12 + $0x1b4] sm:$0xf]
        %v3918 = vld [vmem:[#allocation12 + $0x1b8] sm:$0xf]
        %v3919 = vld [vmem:[#allocation12 + $0x1bc] sm:$0xf]
        %v3920 = vld [vmem:[#allocation12 + $0x1c0] sm:$0xf]
        %v3921 = vld [vmem:[#allocation12 + $0x1c4] sm:$0xf]
        %v3922 = vld [vmem:[#allocation12 + $0x1c8] sm:$0xf]
        %v3923 = vld [vmem:[#allocation12 + $0x1cc] sm:$0xf]
        %v3924 = vld [vmem:[#allocation12 + $0x1d0] sm:$0xf]
        %v3925 = vld [vmem:[#allocation12 + $0x1d4] sm:$0xf]
        %v3926 = vld [vmem:[#allocation12 + $0x1d8] sm:$0xf]
        %v3927 = vld [vmem:[#allocation12 + $0x1dc] sm:$0xf]
        %v3928 = vld [vmem:[#allocation12 + $0x1e0] sm:$0xf]
        %v3929 = vld [vmem:[#allocation12 + $0x1e4] sm:$0xf]
        %v3930 = vld [vmem:[#allocation12 + $0x1e8] sm:$0xf]
        %v3931 = vld [vmem:[#allocation12 + $0x1ec] sm:$0xf]
        %v3932 = vld [vmem:[#allocation12 + $0x1f0] sm:$0xf]
        %v3933 = vld [vmem:[#allocation12 + $0x1f4] sm:$0xf]
        %v3934 = vld [vmem:[#allocation12 + $0x1f8] sm:$0xf]
        %v3935 = vld [vmem:[#allocation12 + $0x1fc] sm:$0xf]
        %v3936 = vld [vmem:[%s9] sm:$0x1]
        %v3938 = vlaneseq
        %v3939 = vshrl.u32 %v3938, 7
        %v3940 = vsub.s32 0, %v3939
        %v3941 = vrot.slane %v3936, %v3940
        %v4071 = vunpack.c.l.b16 %v3808
        %v4072 = vunpack.c.l.b16 %v3809
        %v4073 = vunpack.c.l.b16 %v3810
        %v4074 = vunpack.c.l.b16 %v3811
        %v4075 = vunpack.c.l.b16 %v3812
        %v4076 = vunpack.c.l.b16 %v3813
        %v4077 = vunpack.c.l.b16 %v3814
        %v4078 = vunpack.c.l.b16 %v3815
        %v4079 = vunpack.c.l.b16 %v3816
        %v4080 = vunpack.c.l.b16 %v3817
        %v4081 = vunpack.c.l.b16 %v3818
        %v4082 = vunpack.c.l.b16 %v3819
        %v4083 = vunpack.c.l.b16 %v3820
        %v4084 = vunpack.c.l.b16 %v3821
        %v4085 = vunpack.c.l.b16 %v3822
        %v4086 = vunpack.c.l.b16 %v3823
        %v4087 = vunpack.c.l.b16 %v3824
        %v4088 = vunpack.c.l.b16 %v3825
        %v4089 = vunpack.c.l.b16 %v3826
        %v4090 = vunpack.c.l.b16 %v3827
        %v4091 = vunpack.c.l.b16 %v3828
        %v4092 = vunpack.c.l.b16 %v3829
        %v4093 = vunpack.c.l.b16 %v3830
        %v4094 = vunpack.c.l.b16 %v3831
        %v4095 = vunpack.c.l.b16 %v3832
        %v4096 = vunpack.c.l.b16 %v3833
        %v4097 = vunpack.c.l.b16 %v3834
        %v4098 = vunpack.c.l.b16 %v3835
        %v4099 = vunpack.c.l.b16 %v3836
        %v4100 = vunpack.c.l.b16 %v3837
        %v4101 = vunpack.c.l.b16 %v3838
        %v4102 = vunpack.c.l.b16 %v3839
        %v4103 = vunpack.c.l.b16 %v3840
        %v4104 = vunpack.c.l.b16 %v3841
        %v4105 = vunpack.c.l.b16 %v3842
        %v4106 = vunpack.c.l.b16 %v3843
        %v4107 = vunpack.c.l.b16 %v3844
        %v4108 = vunpack.c.l.b16 %v3845
        %v4109 = vunpack.c.l.b16 %v3846
        %v4110 = vunpack.c.l.b16 %v3847
        %v4111 = vunpack.c.l.b16 %v3848
        %v4112 = vunpack.c.l.b16 %v3849
        %v4113 = vunpack.c.l.b16 %v3850
        %v4114 = vunpack.c.l.b16 %v3851
        %v4115 = vunpack.c.l.b16 %v3852
        %v4116 = vunpack.c.l.b16 %v3853
        %v4117 = vunpack.c.l.b16 %v3854
        %v4118 = vunpack.c.l.b16 %v3855
        %v4119 = vunpack.c.l.b16 %v3856
        %v4120 = vunpack.c.l.b16 %v3857
        %v4121 = vunpack.c.l.b16 %v3858
        %v4122 = vunpack.c.l.b16 %v3859
        %v4123 = vunpack.c.l.b16 %v3860
        %v4124 = vunpack.c.l.b16 %v3861
        %v4125 = vunpack.c.l.b16 %v3862
        %v4126 = vunpack.c.l.b16 %v3863
        %v4127 = vunpack.c.l.b16 %v3864
        %v4128 = vunpack.c.l.b16 %v3865
        %v4129 = vunpack.c.l.b16 %v3866
        %v4130 = vunpack.c.l.b16 %v3867
        %v4131 = vunpack.c.l.b16 %v3868
        %v4132 = vunpack.c.l.b16 %v3869
        %v4133 = vunpack.c.l.b16 %v3870
        %v4134 = vunpack.c.l.b16 %v3871
        %v4135 = vunpack.c.l.b16 %v3872
        %v4136 = vunpack.c.l.b16 %v3873
        %v4137 = vunpack.c.l.b16 %v3874
        %v4138 = vunpack.c.l.b16 %v3875
        %v4139 = vunpack.c.l.b16 %v3876
        %v4140 = vunpack.c.l.b16 %v3877
        %v4141 = vunpack.c.l.b16 %v3878
        %v4142 = vunpack.c.l.b16 %v3879
        %v4143 = vunpack.c.l.b16 %v3880
        %v4144 = vunpack.c.l.b16 %v3881
        %v4145 = vunpack.c.l.b16 %v3882
        %v4146 = vunpack.c.l.b16 %v3883
        %v4147 = vunpack.c.l.b16 %v3884
        %v4148 = vunpack.c.l.b16 %v3885
        %v4149 = vunpack.c.l.b16 %v3886
        %v4150 = vunpack.c.l.b16 %v3887
        %v4151 = vunpack.c.l.b16 %v3888
        %v4152 = vunpack.c.l.b16 %v3889
        %v4153 = vunpack.c.l.b16 %v3890
        %v4154 = vunpack.c.l.b16 %v3891
        %v4155 = vunpack.c.l.b16 %v3892
        %v4156 = vunpack.c.l.b16 %v3893
        %v4157 = vunpack.c.l.b16 %v3894
        %v4158 = vunpack.c.l.b16 %v3895
        %v4159 = vunpack.c.l.b16 %v3896
        %v4160 = vunpack.c.l.b16 %v3897
        %v4161 = vunpack.c.l.b16 %v3898
        %v4162 = vunpack.c.l.b16 %v3899
        %v4163 = vunpack.c.l.b16 %v3900
        %v4164 = vunpack.c.l.b16 %v3901
        %v4165 = vunpack.c.l.b16 %v3902
        %v4166 = vunpack.c.l.b16 %v3903
        %v4167 = vunpack.c.l.b16 %v3904
        %v4168 = vunpack.c.l.b16 %v3905
        %v4169 = vunpack.c.l.b16 %v3906
        %v4170 = vunpack.c.l.b16 %v3907
        %v4171 = vunpack.c.l.b16 %v3908
        %v4172 = vunpack.c.l.b16 %v3909
        %v4173 = vunpack.c.l.b16 %v3910
        %v4174 = vunpack.c.l.b16 %v3911
        %v4175 = vunpack.c.l.b16 %v3912
        %v4176 = vunpack.c.l.b16 %v3913
        %v4177 = vunpack.c.l.b16 %v3914
        %v4178 = vunpack.c.l.b16 %v3915
        %v4179 = vunpack.c.l.b16 %v3916
        %v4180 = vunpack.c.l.b16 %v3917
        %v4181 = vunpack.c.l.b16 %v3918
        %v4182 = vunpack.c.l.b16 %v3919
        %v4183 = vunpack.c.l.b16 %v3920
        %v4184 = vunpack.c.l.b16 %v3921
        %v4185 = vunpack.c.l.b16 %v3922
        %v4186 = vunpack.c.l.b16 %v3923
        %v4187 = vunpack.c.l.b16 %v3924
        %v4188 = vunpack.c.l.b16 %v3925
        %v4189 = vunpack.c.l.b16 %v3926
        %v4190 = vunpack.c.l.b16 %v3927
        %v4191 = vunpack.c.l.b16 %v3928
        %v4192 = vunpack.c.l.b16 %v3929
        %v4193 = vunpack.c.l.b16 %v3930
        %v4194 = vunpack.c.l.b16 %v3931
        %v4195 = vunpack.c.l.b16 %v3932
        %v4196 = vunpack.c.l.b16 %v3933
        %v4197 = vunpack.c.l.b16 %v3934
        %v4198 = vunpack.c.l.b16 %v3935
        %v4199 = vpack.c.b16 %v4072, %v4071
        %v4200 = vpack.c.b16 %v4074, %v4073
        %v4201 = vpack.c.b16 %v4076, %v4075
        %v4202 = vpack.c.b16 %v4078, %v4077
        %v4203 = vpack.c.b16 %v4080, %v4079
        %v4204 = vpack.c.b16 %v4082, %v4081
        %v4205 = vpack.c.b16 %v4084, %v4083
        %v4206 = vpack.c.b16 %v4086, %v4085
        %v4207 = vpack.c.b16 %v4088, %v4087
        %v4208 = vpack.c.b16 %v4090, %v4089
        %v4209 = vpack.c.b16 %v4092, %v4091
        %v4210 = vpack.c.b16 %v4094, %v4093
        %v4211 = vpack.c.b16 %v4096, %v4095
        %v4212 = vpack.c.b16 %v4098, %v4097
        %v4213 = vpack.c.b16 %v4100, %v4099
        %v4214 = vpack.c.b16 %v4102, %v4101
        %v4215 = vpack.c.b16 %v4104, %v4103
        %v4216 = vpack.c.b16 %v4106, %v4105
        %v4217 = vpack.c.b16 %v4108, %v4107
        %v4218 = vpack.c.b16 %v4110, %v4109
        %v4219 = vpack.c.b16 %v4112, %v4111
        %v4220 = vpack.c.b16 %v4114, %v4113
        %v4221 = vpack.c.b16 %v4116, %v4115
        %v4222 = vpack.c.b16 %v4118, %v4117
        %v4223 = vpack.c.b16 %v4120, %v4119
        %v4224 = vpack.c.b16 %v4122, %v4121
        %v4225 = vpack.c.b16 %v4124, %v4123
        %v4226 = vpack.c.b16 %v4126, %v4125
        %v4227 = vpack.c.b16 %v4128, %v4127
        %v4228 = vpack.c.b16 %v4130, %v4129
        %v4229 = vpack.c.b16 %v4132, %v4131
        %v4230 = vpack.c.b16 %v4134, %v4133
        %v4231 = vpack.c.b16 %v4136, %v4135
        %v4232 = vpack.c.b16 %v4138, %v4137
        %v4233 = vpack.c.b16 %v4140, %v4139
        %v4234 = vpack.c.b16 %v4142, %v4141
        %v4235 = vpack.c.b16 %v4144, %v4143
        %v4236 = vpack.c.b16 %v4146, %v4145
        %v4237 = vpack.c.b16 %v4148, %v4147
        %v4238 = vpack.c.b16 %v4150, %v4149
        %v4239 = vpack.c.b16 %v4152, %v4151
        %v4240 = vpack.c.b16 %v4154, %v4153
        %v4241 = vpack.c.b16 %v4156, %v4155
        %v4242 = vpack.c.b16 %v4158, %v4157
        %v4243 = vpack.c.b16 %v4160, %v4159
        %v4244 = vpack.c.b16 %v4162, %v4161
        %v4245 = vpack.c.b16 %v4164, %v4163
        %v4246 = vpack.c.b16 %v4166, %v4165
        %v4247 = vpack.c.b16 %v4168, %v4167
        %v4248 = vpack.c.b16 %v4170, %v4169
        %v4249 = vpack.c.b16 %v4172, %v4171
        %v4250 = vpack.c.b16 %v4174, %v4173
        %v4251 = vpack.c.b16 %v4176, %v4175
        %v4252 = vpack.c.b16 %v4178, %v4177
        %v4253 = vpack.c.b16 %v4180, %v4179
        %v4254 = vpack.c.b16 %v4182, %v4181
        %v4255 = vpack.c.b16 %v4184, %v4183
        %v4256 = vpack.c.b16 %v4186, %v4185
        %v4257 = vpack.c.b16 %v4188, %v4187
        %v4258 = vpack.c.b16 %v4190, %v4189
        %v4259 = vpack.c.b16 %v4192, %v4191
        %v4260 = vpack.c.b16 %v4194, %v4193
        %v4261 = vpack.c.b16 %v4196, %v4195
        %v4262 = vpack.c.b16 %v4198, %v4197
        %4327 = vmatprep.subr.bf16.mxu0 0
        %4328 = vmatpush1.bf16.msra.mxu0 %v4206
        %4329 = vmatprep.subr.bf16.mxu0 0
        %4330 = vmatpush1.bf16.msra.mxu0 %v4205
        %4331 = vmatprep.subr.bf16.mxu0 0
        %4332 = vmatpush1.bf16.msra.mxu0 %v4204
        %4333 = vmatprep.subr.bf16.mxu0 0
        %4334 = vmatpush1.bf16.msra.mxu0 %v4203
        %4335 = vmatprep.subr.bf16.mxu0 0
        %4336 = vmatpush1.bf16.msra.mxu0 %v4202
        %4337 = vmatprep.subr.bf16.mxu0 0
        %4338 = vmatpush1.bf16.msra.mxu0 %v4201
        %4339 = vmatprep.subr.bf16.mxu0 0
        %4340 = vmatpush1.bf16.msra.mxu0 %v4200
        %4341 = vmatprep.subr.bf16.mxu0 0
        %4342 = vmatpush1.bf16.msra.mxu0 %v4199
        %4343 = vmatprep.subr.bf16.mxu0 0
        %4344 = vmatpush2.bf16.msra.mxu0 %v4214
        %4345 = vmatprep.subr.bf16.mxu0 0
        %4346 = vmatpush2.bf16.msra.mxu0 %v4213
        %4347 = vmatprep.subr.bf16.mxu0 0
        %4348 = vmatpush2.bf16.msra.mxu0 %v4212
        %4349 = vmatprep.subr.bf16.mxu0 0
        %4350 = vmatpush2.bf16.msra.mxu0 %v4211
        %4351 = vmatprep.subr.bf16.mxu0 0
        %4352 = vmatpush2.bf16.msra.mxu0 %v4210
        %4353 = vmatprep.subr.bf16.mxu0 0
        %4354 = vmatpush2.bf16.msra.mxu0 %v4209
        %4355 = vmatprep.subr.bf16.mxu0 0
        %4356 = vmatpush2.bf16.msra.mxu0 %v4208
        %4357 = vmatprep.subr.bf16.mxu0 0
        %4358 = vmatpush2.bf16.msra.mxu0 %v4207
        %4359 = vmatprep.mubr.bf16.mxu0 %v3801
        %4360 = vmatmul.mubr.bf16.gmra.mxu0 %v3800
        %v4361 = vpop.f32.mrf.mxu0
        %v4362 = vadd.f32 %v3941, %v4361
        %v4363 = vpop.f32.mrf.mxu0
        %v4364 = vpop.f32.mrf.mxu0
        %v4365 = vpop.f32.mrf.mxu0
        %4366 = vdwg.mxu0
        %4367 = vmatprep.subr.bf16.mxu0 0
        %4368 = vmatpush1.bf16.msra.mxu0 %v4222
        %4369 = vmatprep.subr.bf16.mxu0 0
        %4370 = vmatpush1.bf16.msra.mxu0 %v4221
        %4371 = vmatprep.subr.bf16.mxu0 0
        %4372 = vmatpush1.bf16.msra.mxu0 %v4220
        %4373 = vmatprep.subr.bf16.mxu0 0
        %4374 = vmatpush1.bf16.msra.mxu0 %v4219
        %4375 = vmatprep.subr.bf16.mxu0 0
        %4376 = vmatpush1.bf16.msra.mxu0 %v4218
        %4377 = vmatprep.subr.bf16.mxu0 0
        %4378 = vmatpush1.bf16.msra.mxu0 %v4217
        %4379 = vmatprep.subr.bf16.mxu0 0
        %4380 = vmatpush1.bf16.msra.mxu0 %v4216
        %4381 = vmatprep.subr.bf16.mxu0 0
        %4382 = vmatpush1.bf16.msra.mxu0 %v4215
        %4383 = vmatprep.subr.bf16.mxu0 0
        %4384 = vmatpush2.bf16.msra.mxu0 %v4230
        %4385 = vmatprep.subr.bf16.mxu0 0
        %4386 = vmatpush2.bf16.msra.mxu0 %v4229
        %4387 = vmatprep.subr.bf16.mxu0 0
        %4388 = vmatpush2.bf16.msra.mxu0 %v4228
        %4389 = vmatprep.subr.bf16.mxu0 0
        %4390 = vmatpush2.bf16.msra.mxu0 %v4227
        %4391 = vmatprep.subr.bf16.mxu0 0
        %4392 = vmatpush2.bf16.msra.mxu0 %v4226
        %4393 = vmatprep.subr.bf16.mxu0 0
        %4394 = vmatpush2.bf16.msra.mxu0 %v4225
        %4395 = vmatprep.subr.bf16.mxu0 0
        %4396 = vmatpush2.bf16.msra.mxu0 %v4224
        %4397 = vmatprep.subr.bf16.mxu0 0
        %4398 = vmatpush2.bf16.msra.mxu0 %v4223
        %4399 = vmatprep.mubr.bf16.mxu0 %v3803
        %4400 = vmatmul.mubr.bf16.gmra.mxu0 %v3802
        %v4401 = vpop.f32.mrf.mxu0
        %v4402 = vadd.f32 %v4362, %v4401
        %v4403 = vpop.f32.mrf.mxu0
        %v4404 = vpop.f32.mrf.mxu0
        %v4405 = vpop.f32.mrf.mxu0
        %4406 = vdwg.mxu0
        %4407 = vmatprep.subr.bf16.mxu0 0
        %4408 = vmatpush1.bf16.msra.mxu0 %v4238
        %4409 = vmatprep.subr.bf16.mxu0 0
        %4410 = vmatpush1.bf16.msra.mxu0 %v4237
        %4411 = vmatprep.subr.bf16.mxu0 0
        %4412 = vmatpush1.bf16.msra.mxu0 %v4236
        %4413 = vmatprep.subr.bf16.mxu0 0
        %4414 = vmatpush1.bf16.msra.mxu0 %v4235
        %4415 = vmatprep.subr.bf16.mxu0 0
        %4416 = vmatpush1.bf16.msra.mxu0 %v4234
        %4417 = vmatprep.subr.bf16.mxu0 0
        %4418 = vmatpush1.bf16.msra.mxu0 %v4233
        %4419 = vmatprep.subr.bf16.mxu0 0
        %4420 = vmatpush1.bf16.msra.mxu0 %v4232
        %4421 = vmatprep.subr.bf16.mxu0 0
        %4422 = vmatpush1.bf16.msra.mxu0 %v4231
        %4423 = vmatprep.subr.bf16.mxu0 0
        %4424 = vmatpush2.bf16.msra.mxu0 %v4246
        %4425 = vmatprep.subr.bf16.mxu0 0
        %4426 = vmatpush2.bf16.msra.mxu0 %v4245
        %4427 = vmatprep.subr.bf16.mxu0 0
        %4428 = vmatpush2.bf16.msra.mxu0 %v4244
        %4429 = vmatprep.subr.bf16.mxu0 0
        %4430 = vmatpush2.bf16.msra.mxu0 %v4243
        %4431 = vmatprep.subr.bf16.mxu0 0
        %4432 = vmatpush2.bf16.msra.mxu0 %v4242
        %4433 = vmatprep.subr.bf16.mxu0 0
        %4434 = vmatpush2.bf16.msra.mxu0 %v4241
        %4435 = vmatprep.subr.bf16.mxu0 0
        %4436 = vmatpush2.bf16.msra.mxu0 %v4240
        %4437 = vmatprep.subr.bf16.mxu0 0
        %4438 = vmatpush2.bf16.msra.mxu0 %v4239
        %4439 = vmatprep.mubr.bf16.mxu0 %v3805
        %4440 = vmatmul.mubr.bf16.gmra.mxu0 %v3804
        %v4441 = vpop.f32.mrf.mxu0
        %v4442 = vadd.f32 %v4402, %v4441
        %v4443 = vpop.f32.mrf.mxu0
        %v4444 = vpop.f32.mrf.mxu0
        %v4445 = vpop.f32.mrf.mxu0
        %4446 = vdwg.mxu0
        %4447 = vmatprep.subr.bf16.mxu0 0
        %4448 = vmatpush1.bf16.msra.mxu0 %v4254
        %4449 = vmatprep.subr.bf16.mxu0 0
        %4450 = vmatpush1.bf16.msra.mxu0 %v4253
        %4451 = vmatprep.subr.bf16.mxu0 0
        %4452 = vmatpush1.bf16.msra.mxu0 %v4252
        %4453 = vmatprep.subr.bf16.mxu0 0
        %4454 = vmatpush1.bf16.msra.mxu0 %v4251
        %4455 = vmatprep.subr.bf16.mxu0 0
        %4456 = vmatpush1.bf16.msra.mxu0 %v4250
        %4457 = vmatprep.subr.bf16.mxu0 0
        %4458 = vmatpush1.bf16.msra.mxu0 %v4249
        %4459 = vmatprep.subr.bf16.mxu0 0
        %4460 = vmatpush1.bf16.msra.mxu0 %v4248
        %4461 = vmatprep.subr.bf16.mxu0 0
        %4462 = vmatpush1.bf16.msra.mxu0 %v4247
        %4463 = vmatprep.subr.bf16.mxu0 0
        %4464 = vmatpush2.bf16.msra.mxu0 %v4262
        %4465 = vmatprep.subr.bf16.mxu0 0
        %4466 = vmatpush2.bf16.msra.mxu0 %v4261
        %4467 = vmatprep.subr.bf16.mxu0 0
        %4468 = vmatpush2.bf16.msra.mxu0 %v4260
        %4469 = vmatprep.subr.bf16.mxu0 0
        %4470 = vmatpush2.bf16.msra.mxu0 %v4259
        %4471 = vmatprep.subr.bf16.mxu0 0
        %4472 = vmatpush2.bf16.msra.mxu0 %v4258
        %4473 = vmatprep.subr.bf16.mxu0 0
        %4474 = vmatpush2.bf16.msra.mxu0 %v4257
        %4475 = vmatprep.subr.bf16.mxu0 0
        %4476 = vmatpush2.bf16.msra.mxu0 %v4256
        %4477 = vmatprep.subr.bf16.mxu0 0
        %4478 = vmatpush2.bf16.msra.mxu0 %v4255
        %4479 = vmatprep.mubr.bf16.mxu0 %v3807
        %4480 = vmatmul.mubr.bf16.gmra.mxu0 %v3806
        %v4481 = vpop.f32.mrf.mxu0
        %v4482 = vadd.f32 %v4442, %v4481
        %v4483 = vpop.f32.mrf.mxu0
        %v4484 = vpop.f32.mrf.mxu0
        %v4485 = vpop.f32.mrf.mxu0
        %4486 = vdwg.mxu0
        %4487 = vmax.xlane.f32.xlu0 %v4482
        %v4488 = vpop.xlane.xlu0 %4487
        %v4489 = vsub.f32 %v4482, %v4488
        %v4490 = vmul.f32 %v4489, 1.442695
        %v4491 = vpow.pop %v4490
        %4492 = vadd.xlane.f32.xlu0 %v4491
        %v4493 = vpop.xlane.xlu0 %4492
        %v4494 = vlog2.pop %v4493
        %v4495 = vmul.f32 %v4494, 0.6931472
        %v4496 = vsub.f32 %v4489, %v4495
        %v4497 = vlaneseq
        %v4498 = vand.u32 %v4497, 127
        %v4499 = vld [vmem:[%s474] sm:$0xff]
        %4500 = vset.pattern.permute.xlu0 0
        %4501 = vperm.xlu0 %4500, %v4499
        %v4502 = vpop.permute.xlu0 %4501
        %vm4503 = vcmp.eq.s32.totalorder %v4498, %v4502
        %v4504 = vsel %vm4503, %v4496, 0.0
        %4505 = vadd.xlane.f32.xlu0 %v4504
        %v4506 = vpop.xlane.xlu0 %4505
        %v4507 = vrot.slane %v4506, 4
        %v4508 = vadd.f32 %v4506, %v4507
        %v4509 = vrot.slane %v4508, 2
        %v4510 = vadd.f32 %v4508, %v4509
        %v4511 = vrot.slane %v4510, 1
        %v4512 = vadd.f32 %v4510, %v4511
        %s4513 = vtos %v4512
        %s4514 = ssub.f32 0.0, %s4513
        %s4515 = smul.f32 %s4514, 0.125
        %v4516 = vld [vmem:[#allocation2] sm:$0xff]
        %v4517 = vld [vmem:[#allocation2 + $0x8] sm:$0xff]
        %v4518 = vld [vmem:[#allocation2 + $0x10] sm:$0xff]
        %v4519 = vld [vmem:[#allocation2 + $0x18] sm:$0xff]
        %v4520 = vpack.c.bf16 %v4518, %v4516
        %v4521 = vpack.c.bf16 %v4519, %v4517
        %4522 = vmatprep.subr.bf16.mxu0 0
        %4523 = vmatpush1.bf16.xpose.msra.mxu0 0
        %4524 = vmatprep.subr.bf16.mxu0 0
        %4525 = vmatpush1.bf16.xpose.msra.mxu0 0
        %4526 = vmatprep.subr.bf16.mxu0 0
        %4527 = vmatpush1.bf16.xpose.msra.mxu0 0
        %4528 = vmatprep.subr.bf16.mxu0 0
        %4529 = vmatpush1.bf16.xpose.msra.mxu0 0
        %4530 = vmatprep.subr.bf16.mxu0 0
        %4531 = vmatpush1.bf16.xpose.msra.mxu0 0
        %4532 = vmatprep.subr.bf16.mxu0 0
        %4533 = vmatpush1.bf16.xpose.msra.mxu0 0
        %4534 = vmatprep.subr.bf16.mxu0 0
        %4535 = vmatpush1.bf16.xpose.msra.mxu0 0
        %4536 = vmatprep.subr.bf16.mxu0 %v4521
        %4537 = vmatpush1.bf16.xpose.msra.mxu0 %v4520
        %4538 = vmatprep.subr.bf16.mxu0 0
        %4539 = vmatpush2.bf16.xpose.msra.mxu0 0
        %4540 = vmatprep.subr.bf16.mxu0 0
        %4541 = vmatpush2.bf16.xpose.msra.mxu0 0
        %4542 = vmatprep.subr.bf16.mxu0 0
        %4543 = vmatpush2.bf16.xpose.msra.mxu0 0
        %4544 = vmatprep.subr.bf16.mxu0 0
        %4545 = vmatpush2.bf16.xpose.msra.mxu0 0
        %4546 = vmatprep.subr.bf16.mxu0 0
        %4547 = vmatpush2.bf16.xpose.msra.mxu0 0
        %4548 = vmatprep.subr.bf16.mxu0 0
        %4549 = vmatpush2.bf16.xpose.msra.mxu0 0
        %4550 = vmatprep.subr.bf16.mxu0 0
        %4551 = vmatpush2.bf16.xpose.msra.mxu0 0
        %4552 = vmatprep.subr.bf16.mxu0 0
        %4553 = vmatpush2.bf16.xpose.msra.mxu0 0
        %4554 = vmatprep.mubr.bf16.mxu0 %v4521
        %4555 = vmatmul.mubr.bf16.gmra.mxu0 %v4520
        %v4556 = vpop.f32.mrf.mxu0
        %v4557 = vadd.f32 0.0, %v4556
        %v4558 = vpop.f32.mrf.mxu0
        %v4559 = vpop.f32.mrf.mxu0
        %v4560 = vadd.f32 0.0, %v4559
        %v4561 = vpop.f32.mrf.mxu0
        %4562 = vdwg.mxu0
        %v4563 = vmul.f32 %v4516, %v4516
        %v4564 = vmul.f32 %v4517, %v4517
        %v4565 = vmul.f32 %v4518, %v4518
        %v4566 = vmul.f32 %v4519, %v4519
        %v4567 = vadd.f32 %v4563, %v4564
        %4568 = vadd.xlane.f32.xlu0 %v4567
        %v4569 = vpop.xlane.xlu0 %4568
        %v4570 = vadd.f32 %v4565, %v4566
        %4571 = vadd.xlane.f32.xlu0 %v4570
        %v4572 = vpop.xlane.xlu0 %4571
        %4573 = vmatprep.subr.mxu0 0.0
        %4574 = vmatpush1.xpose.msra.mxu0 0.0
        %4575 = vmatprep.subr.mxu0 0.0
        %4576 = vmatpush1.xpose.msra.mxu0 0.0
        %4577 = vmatprep.subr.mxu0 0.0
        %4578 = vmatpush1.xpose.msra.mxu0 0.0
        %4579 = vmatprep.subr.mxu0 0.0
        %4580 = vmatpush1.xpose.msra.mxu0 0.0
        %4581 = vmatprep.subr.mxu0 0.0
        %4582 = vmatpush1.xpose.msra.mxu0 0.0
        %4583 = vmatprep.subr.mxu0 0.0
        %4584 = vmatpush1.xpose.msra.mxu0 0.0
        %4585 = vmatprep.subr.mxu0 0.0
        %4586 = vmatpush1.xpose.msra.mxu0 0.0
        %4587 = vmatprep.subr.mxu0 0.0
        %4588 = vmatpush1.xpose.msra.mxu0 0.0
        %4589 = vmatprep.subr.mxu0 0.0
        %4590 = vmatpush1.xpose.msra.mxu0 0.0
        %4591 = vmatprep.subr.mxu0 0.0
        %4592 = vmatpush1.xpose.msra.mxu0 0.0
        %4593 = vmatprep.subr.mxu0 0.0
        %4594 = vmatpush1.xpose.msra.mxu0 0.0
        %4595 = vmatprep.subr.mxu0 0.0
        %4596 = vmatpush1.xpose.msra.mxu0 0.0
        %4597 = vmatprep.subr.mxu0 0.0
        %4598 = vmatpush1.xpose.msra.mxu0 0.0
        %4599 = vmatprep.subr.mxu0 0.0
        %4600 = vmatpush1.xpose.msra.mxu0 0.0
        %4601 = vmatprep.subr.mxu0 %v4566
        %4602 = vmatpush1.xpose.msra.mxu0 %v4565
        %4603 = vmatprep.subr.mxu0 %v4564
        %4604 = vmatpush1.xpose.msra.mxu0 %v4563
        %4605 = vmatprep.subr.mxu0 0.0
        %4606 = vmatpush2.xpose.msra.mxu0 0.0
        %4607 = vmatprep.subr.mxu0 0.0
        %4608 = vmatpush2.xpose.msra.mxu0 0.0
        %4609 = vmatprep.subr.mxu0 0.0
        %4610 = vmatpush2.xpose.msra.mxu0 0.0
        %4611 = vmatprep.subr.mxu0 0.0
        %4612 = vmatpush2.xpose.msra.mxu0 0.0
        %4613 = vmatprep.subr.mxu0 0.0
        %4614 = vmatpush2.xpose.msra.mxu0 0.0
        %4615 = vmatprep.subr.mxu0 0.0
        %4616 = vmatpush2.xpose.msra.mxu0 0.0
        %4617 = vmatprep.subr.mxu0 0.0
        %4618 = vmatpush2.xpose.msra.mxu0 0.0
        %4619 = vmatprep.subr.mxu0 0.0
        %4620 = vmatpush2.xpose.msra.mxu0 0.0
        %4621 = vmatprep.subr.mxu0 0.0
        %4622 = vmatpush2.xpose.msra.mxu0 0.0
        %4623 = vmatprep.subr.mxu0 0.0
        %4624 = vmatpush2.xpose.msra.mxu0 0.0
        %4625 = vmatprep.subr.mxu0 0.0
        %4626 = vmatpush2.xpose.msra.mxu0 0.0
        %4627 = vmatprep.subr.mxu0 0.0
        %4628 = vmatpush2.xpose.msra.mxu0 0.0
        %4629 = vmatprep.subr.mxu0 0.0
        %4630 = vmatpush2.xpose.msra.mxu0 0.0
        %4631 = vmatprep.subr.mxu0 0.0
        %4632 = vmatpush2.xpose.msra.mxu0 0.0
        %4633 = vmatprep.subr.mxu0 0.0
        %4634 = vmatpush2.xpose.msra.mxu0 0.0
        %4635 = vmatprep.subr.mxu0 0.0
        %4636 = vmatpush2.xpose.msra.mxu0 0.0
        %4637 = vmatprep.mubr.f32.mxu0 1.0
        %4638 = vmatmul.mubr.f32.gmra.mxu0 1.0
        %v4639 = vpop.f32.mrf.mxu0
        %v4640 = vadd.f32 0.0, %v4639
        %v4641 = vpop.f32.mrf.mxu0
        %4642 = vdwg.mxu0
        %v4643 = vlaneseq
        %v4644 = vshrl.u32 %v4643, 7
        %v4645 = vsub.s32 0, %v4644
        %v4646 = vrot.slane %v4640, %v4645
        %v4647 = vadd.f32 %v4569, %v4646
        %v4648 = vadd.f32 %v4572, %v4646
        %v4649 = vmul.f32 %v4557, 2.0
        %v4650 = vmul.f32 %v4560, 2.0
        %v4651 = vsub.f32 %v4647, %v4649
        %v4652 = vsub.f32 %v4648, %v4650
        %vm4653 = vcmask 130048
        %v4654 = vsel %vm4653, %v4651, 0.0
        %v4655 = vsel %vm4653, %v4652, 0.0
        %v4656 = vadd.f32 %v4654, %v4655
        %4657 = vadd.xlane.f32.xlu0 %v4656
        %v4658 = vpop.xlane.xlu0 %4657
        %v4659 = vrot.slane %v4658, 4
        %v4660 = vadd.f32 %v4658, %v4659
        %v4661 = vrot.slane %v4660, 2
        %v4662 = vadd.f32 %v4660, %v4661
        %v4663 = vrot.slane %v4662, 1
        %v4664 = vadd.f32 %v4662, %v4663
        %s4665 = vtos %v4664
        %v4666 = vstv %s4665
        %v4667 = vrcp.pop %v4666
        %s4668 = vtos %v4667
        %s4669 = smul.f32 960.0, %s4668
        %v4670 = vmax.f32 %v4651, 0.0
        %v4671 = vmax.f32 %v4652, 0.0
        %s4672 = smul.f32 %s4669, -1.0
        %v4673 = vstv %s4672
        %v4674 = vmul.f32 %v4670, %v4673
        %v4675 = vmul.f32 %v4671, %v4673
        %v4676 = vmul.f32 %v4674, 1.442695
        %v4677 = vpow.pop %v4676
        %v4678 = vmul.f32 %v4675, 1.442695
        %v4679 = vpow.pop %v4678
        %s4680 = smul.f32 %s4669, -0.5
        %v4681 = vstv %s4680
        %v4682 = vmul.f32 %v4670, %v4681
        %v4683 = vmul.f32 %v4671, %v4681
        %v4684 = vmul.f32 %v4682, 1.442695
        %v4685 = vpow.pop %v4684
        %v4686 = vmul.f32 %v4683, 1.442695
        %v4687 = vpow.pop %v4686
        %v4688 = vadd.f32 %v4677, %v4685
        %v4689 = vadd.f32 %v4679, %v4687
        %s4690 = smul.f32 %s4669, -0.25
        %v4691 = vstv %s4690
        %v4692 = vmul.f32 %v4670, %v4691
        %v4693 = vmul.f32 %v4671, %v4691
        %v4694 = vmul.f32 %v4692, 1.442695
        %v4695 = vpow.pop %v4694
        %v4696 = vmul.f32 %v4693, 1.442695
        %v4697 = vpow.pop %v4696
        %v4698 = vadd.f32 %v4688, %v4695
        %v4699 = vadd.f32 %v4689, %v4697
        %s4700 = smul.f32 %s4669, -0.125
        %v4701 = vstv %s4700
        %v4702 = vmul.f32 %v4670, %v4701
        %v4703 = vmul.f32 %v4671, %v4701
        %v4704 = vmul.f32 %v4702, 1.442695
        %v4705 = vpow.pop %v4704
        %v4706 = vmul.f32 %v4703, 1.442695
        %v4707 = vpow.pop %v4706
        %v4708 = vadd.f32 %v4698, %v4705
        %v4709 = vadd.f32 %v4699, %v4707
        %s4710 = smul.f32 %s4669, -0.0625
        %v4711 = vstv %s4710
        %v4712 = vmul.f32 %v4670, %v4711
        %v4713 = vmul.f32 %v4671, %v4711
        %v4714 = vmul.f32 %v4712, 1.442695
        %v4715 = vpow.pop %v4714
        %v4716 = vmul.f32 %v4713, 1.442695
        %v4717 = vpow.pop %v4716
        %v4718 = vadd.f32 %v4708, %v4715
        %v4719 = vadd.f32 %v4709, %v4717
        %v4720 = vlaneseq
        %v4721 = vshrl.u32 %v4720, 7
        %v4722 = vadd.s32 %v4721, 8
        %vm4723 = vcmp.lt.s32.totalorder %v4721, 8
        %vm4724 = vcmp.lt.s32.totalorder %v4722, 8
        %vm4725 = vcmp.lt.s32.totalorder %v4498, 8
        %vm4726 = vmxor %vm4723, %vm4725
        %vm4727 = vmxor %vm4724, %vm4725
        %vm4728 = vmxor %vm4726, 1
        %vm4729 = vmxor %vm4727, 1
        %v4730 = vsel %vm4728, 1.0, -1.0
        %v4731 = vsel %vm4729, 1.0, -1.0
        %v4732 = vmul.f32 %v4718, %v4730
        %v4733 = vmul.f32 %v4719, %v4731
        %v4734 = vsel %vm4653, %v4732, 0.0
        %v4735 = vsel %vm4653, %v4733, 0.0
        %v4736 = vadd.f32 %v4734, %v4735
        %4737 = vadd.xlane.f32.xlu0 %v4736
        %v4738 = vpop.xlane.xlu0 %4737
        %v4739 = vrot.slane %v4738, 4
        %v4740 = vadd.f32 %v4738, %v4739
        %v4741 = vrot.slane %v4740, 2
        %v4742 = vadd.f32 %v4740, %v4741
        %v4743 = vrot.slane %v4742, 1
        %v4744 = vadd.f32 %v4742, %v4743
        %s4745 = vtos %v4744
        %s4746 = smul.f32 %s4745, 0.015625
        %s4747 = sld [smem:[#allocation3]]
        %s4748 = smul.f32 %s4747, %s4746
        %s4749 = sadd.f32 %s4515, %s4748
        %v4750 = vstv %s4749
        %4751 = vst [vmem:[%s470] sm:$0xff] %v4750
        %s4752 = sand.u32 %s265, 1
        %s4753 = scalar_lea.sflag [#allocation6], %s4752
        %s4754 = sand.u32 %s265, 1
        %s4755 = smul.addr %s4754, 8
        %s4756 = scalar_lea.vmem [#allocation13], %s4755
        // Predicated region
        $region81: #{tpu_custom_call.1} parent=59 // pred_check
          %p4757 = pneg %p275
        $region82: #{tpu_custom_call.1} parent=59 // pred_check_branch
          %4759 = sbr.rel (%p4757) target = $region84
        $region83: #{tpu_custom_call.1} parent=59 // pred_region
          %s4761 = ssub.s32 128, 128
          %4762 = vsyncadd %s4753, %s4761
          %s4763 = smul.addr %s32, 128
          %s4764 = scalar_lea.hbm %s10, %s4763
          %s4766 = sshll.u32 %s4756, 4
          %s4767 = int_to_ptr.vmem [resolvable:$true] %s4766
          %4769 = dma.vmem_to_hbm [thread:$0]  %s4767, 128, %s4764, %s4753
        $region84: #{tpu_custom_call.1} parent=59 // pred_fallthru
          _
      $region60: #{tpu_custom_call.1} parent=5 // pred_fallthru
        _
      %p4770 = scmp.le.s32.totalorder 2, %s27
      // Predicated region
      $region85: #{tpu_custom_call.1} parent=5 // pred_check
        %p4771 = pneg %p4770
      $region86: #{tpu_custom_call.1} parent=5 // pred_check_branch
        %4773 = sbr.rel (%p4771) target = $region88
      $region87: #{tpu_custom_call.1} parent=5 // pred_region
        %s4774 = ssub.s32 %s27, 2
        // Predicated region
        $region89: #{tpu_custom_call.1} parent=87 // pred_check
          %p4775 = pneg %p281
        $region90: #{tpu_custom_call.1} parent=87 // pred_check_branch
          %4777 = sbr.rel (%p4775) target = $region92
        $region91: #{tpu_custom_call.1} parent=87 // pred_region
          %s4778 = sand.u32 %s266, 1
          %s4779 = scalar_lea.sflag [#allocation6], %s4778
          %s4780 = sand.u32 %s266, 1
          %s4781 = smul.addr %s4780, 8
          %s4782 = scalar_lea.vmem [#allocation13], %s4781
          %4783 = dma.done %s4779, 128
        $region92: #{tpu_custom_call.1} parent=87 // pred_fallthru
          _
      $region88: #{tpu_custom_call.1} parent=5 // pred_fallthru
        _
    $region6: #{tpu_custom_call.1} parent=1 // loop_footer
      %s31 = sadd.s32 1, %s27
    $region7: #{tpu_custom_call.1} parent=1 // loop_footer_branch
      %26 = sbr.rel target = $region3
    $region8: #{tpu_custom_call.1} parent=1 // loop_exit
      _
    %4784 = vsyncpa [#allocation5], 1
    %s4785 = scalar_lea.sflag [#allocation5], 1
    %4786 = vsyncpa %s4785, 1
    %4787 = vsyncpa [#allocation8], 1
    %s4788 = scalar_lea.sflag [#allocation8], 1
    %4789 = vsyncpa %s4788, 1
    %4790 = vsyncpa [#allocation11], 1
    %4791 = vsyncpa [#allocation6], 1
    %s4792 = scalar_lea.sflag [#allocation6], 1
    %4793 = vsyncpa %s4792, 1

</llo_original>
